<compile_context>
chip_gen: v7x
topology: tpu7x:2x2x1
jax: 0.10.0
libtpu: 0.0.40
codegen_flags: <defaults>
</compile_context>

<pallas_src>
import jax
import jax.numpy as jnp
from jax.experimental import pallas as pl
from jax.experimental.pallas import tpu as pltpu

CLASSES = ['clarify', 'email', 'link', 'schedule', 'unknown']
NUM_CLASSES = len(CLASSES)   # 5
D_IN = 768
D_H = 384
C_PAD = 128                  # lane-padded class dimension
MAX_TB = 1024                # batch tile cap (VMEM-safe on v5e/v6e/v7x)

_SQRT_2_OVER_PI = 0.7978845608028654


def _gelu(x):
    # tanh-approximate GELU in f32: the tanh goes to the EUP slot instead of a
    # long f32 erf polynomial on the VPU.  ~1e-3 activation diff vs exact erf.
    return 0.5 * x * (1.0 + jnp.tanh(
        jnp.float32(_SQRT_2_OVER_PI) * (x + jnp.float32(0.044715) * (x * x * x))))


def _mlp_kernel(x_ref,                 # bf16 (TB, 768)
                w1_ref, b1_ref,        # bf16 (768, 384), f32 (1, 384)
                wh_ref, bh_ref,        # bf16 (3, 384, 384), f32 (3, 1, 384)
                w5_ref, b5_ref,        # bf16 (384, 128),  f32 (1, 128)
                out_ref):              # bf16 (TB, 128)
    # fc1: bf16 operands, f32 accumulation on the MXU.
    h = _gelu(jnp.dot(x_ref[...], w1_ref[...],
                      preferred_element_type=jnp.float32) + b1_ref[...])
    # dropout1 is an eval-mode identity.

    # fc2..fc4 (stacked weights, statically unrolled). dropout2..4: identity.
    for i in range(3):
        h = _gelu(jnp.dot(h.astype(jnp.bfloat16), wh_ref[i],
                          preferred_element_type=jnp.float32) + bh_ref[i])

    # fc5 (weights zero-padded 5 -> 128 lanes), GELU, then masked softmax.
    logits = _gelu(jnp.dot(h.astype(jnp.bfloat16), w5_ref[...],
                           preferred_element_type=jnp.float32) + b5_ref[...])
    col = jax.lax.broadcasted_iota(jnp.int32, logits.shape, dimension=1)
    logits = jnp.where(col < NUM_CLASSES, logits, jnp.float32(-1e30))

    m = jnp.max(logits, axis=-1, keepdims=True)
    e = jnp.exp(logits - m)
    denom = jnp.sum(e, axis=-1, keepdims=True)
    # Exact divide: keeps each row normalized to f32 accuracy (cheap on a
    # (TB,128) block); bf16 storage only adds ~1e-3 rounding.
    out_ref[...] = (e / denom).astype(out_ref.dtype)


def init_params(key):
    """Deterministic synthetic f32 parameters with the module's shapes.

    Weights stored as (in_features, out_features) so the kernel computes
    x @ W + b, equivalent to PyTorch's x @ W_torch.T + b.
    """
    ks = jax.random.split(key, 10)
    def w(k, fan_in, fan_out):
        return jax.random.normal(k, (fan_in, fan_out), jnp.float32) * 0.02
    def b(k, n):
        return jax.random.normal(k, (n,), jnp.float32) * 0.01
    return (
        w(ks[0], D_IN, D_H), b(ks[1], D_H),                  # fc1
        w(ks[2], D_H, D_H),  b(ks[3], D_H),                  # fc2
        w(ks[4], D_H, D_H),  b(ks[5], D_H),                  # fc3
        w(ks[6], D_H, D_H),  b(ks[7], D_H),                  # fc4
        w(ks[8], D_H, NUM_CLASSES), b(ks[9], NUM_CLASSES),   # fc5
    )


def prepare_params(params):
    """One-time preprocessing: bf16 casts, hidden-layer stacking, fc5 padding."""
    w1, b1, w2, b2, w3, b3, w4, b4, w5, b5 = params
    w1b = w1.astype(jnp.bfloat16)
    b1f = b1.reshape(1, D_H).astype(jnp.float32)
    whb = jnp.stack([w2, w3, w4]).astype(jnp.bfloat16)                 # (3,384,384)
    bhf = jnp.stack([b2, b3, b4]).astype(jnp.float32).reshape(3, 1, D_H)
    w5p = (jnp.zeros((D_H, C_PAD), jnp.float32)
           .at[:, :NUM_CLASSES].set(w5)).astype(jnp.bfloat16)
    b5p = jnp.zeros((1, C_PAD), jnp.float32).at[0, :NUM_CLASSES].set(b5)
    return (w1b, b1f, whb, bhf, w5p, b5p)


def _choose_batch_tile(B):
    """Batch tile: multiple of 8 sublanes, >=2 (even) steps once B > 64 so both
    v7x TensorCores get work, capped at MAX_TB rows."""
    Bp8 = ((B + 7) // 8) * 8
    if Bp8 <= 64:
        return Bp8                       # tiny batch: single step
    n = max(2, pl.cdiv(Bp8, MAX_TB))
    if n % 2:
        n += 1                           # even step count -> balanced over 2 TCs
    tb = ((pl.cdiv(Bp8, n) + 7) // 8) * 8
    return min(tb, MAX_TB)


@jax.jit
def action_classifier_forward(x, prepared):
    """x: (B, 768), ideally bf16 (f32 accepted). Returns (B, 5) f32 probabilities."""
    B = x.shape[0]
    w1b, b1f, whb, bhf, w5p, b5p = prepared

    if x.dtype != jnp.bfloat16:
        # Fallback only: for best perf produce x in bf16 upstream (or inside the
        # same jit as its producer) so this cast fuses instead of round-tripping HBM.
        x = x.astype(jnp.bfloat16)

    TB = _choose_batch_tile(B)
    n_steps = pl.cdiv(B, TB)   # no wrapper-side pad: Pallas masks partial blocks

    in_specs = [
        pl.BlockSpec((TB, D_IN), lambda i: (i, 0)),        # x: tiled over batch
        pl.BlockSpec((D_IN, D_H), lambda i: (0, 0)),       # w1: resident
        pl.BlockSpec((1, D_H), lambda i: (0, 0)),          # b1
        pl.BlockSpec((3, D_H, D_H), lambda i: (0, 0, 0)),  # stacked w2..w4
        pl.BlockSpec((3, 1, D_H), lambda i: (0, 0, 0)),    # stacked b2..b4
        pl.BlockSpec((D_H, C_PAD), lambda i: (0, 0)),      # w5 (padded)
        pl.BlockSpec((1, C_PAD), lambda i: (0, 0)),        # b5 (padded)
    ]

    out_padded = pl.pallas_call(
        _mlp_kernel,
        out_shape=jax.ShapeDtypeStruct((B, C_PAD), jnp.bfloat16),
        grid=(n_steps,),
        in_specs=in_specs,
        out_specs=pl.BlockSpec((TB, C_PAD), lambda i: (i, 0)),
        compiler_params=pltpu.CompilerParams(
            dimension_semantics=("parallel",),   # megacore sharding on v7x
        ),
    )(x, w1b, b1f, whb, bhf, w5p, b5p)

    # Slice off the lane padding and return f32 probs; (B,5) cast is negligible
    # and stays fused inside this jit.
    return out_padded[:, :NUM_CLASSES].astype(jnp.float32)


def _reference_forward(x, params):
    """Pure-JAX f32 reference matching the PyTorch module in eval mode."""
    w1, b1, w2, b2, w3, b3, w4, b4, w5, b5 = params
    g = lambda v: 0.5 * v * (1.0 + jax.lax.erf(v / jnp.sqrt(2.0)))
    h = g(x @ w1 + b1)
    h = g(h @ w2 + b2)
    h = g(h @ w3 + b3)
    h = g(h @ w4 + b4)
    logits = g(h @ w5 + b5)
    return jax.nn.softmax(logits, axis=1)


if __name__ == "__main__":
    key = jax.random.PRNGKey(0)
    k_param, k_x = jax.random.split(key)

    B = 8  # batch of embedding vectors
    x_f32 = jax.random.normal(k_x, (B, D_IN), jnp.float32)
    x_bf16 = x_f32.astype(jnp.bfloat16)   # "produced bf16 upstream"

    params = init_params(k_param)
    prepared = prepare_params(params)     # one-time: bf16 cast / stack / pad

    probs = action_classifier_forward(x_bf16, prepared)
    probs = jax.block_until_ready(probs)

    # sanity: shape, finiteness, normalization, and agreement with the pure-JAX
    # f32 exact-GELU reference (bf16 matmuls/IO + tanh-approx GELU => loosened
    # tolerances).
    assert probs.shape == (B, NUM_CLASSES)
    assert bool(jnp.all(jnp.isfinite(probs)))
    assert jnp.allclose(jnp.sum(probs, axis=1), 1.0, atol=5e-3)
    ref = _reference_forward(x_f32, params)
    assert jnp.allclose(probs, ref, atol=2e-2)

    print("KERNEL_OK")
</pallas_src>

<mosaic_0001>
module attributes {stable_mosaic.version = 11 : i64} {
  func.func @_mlp_kernel(%arg0: i32, %arg1: memref<8x768xbf16, #tpu.memory_space<vmem>>, %arg2: memref<768x384xbf16, #tpu.memory_space<vmem>>, %arg3: memref<1x384xf32, #tpu.memory_space<vmem>>, %arg4: memref<3x384x384xbf16, #tpu.memory_space<vmem>>, %arg5: memref<3x1x384xf32, #tpu.memory_space<vmem>>, %arg6: memref<384x128xbf16, #tpu.memory_space<vmem>>, %arg7: memref<1x128xf32, #tpu.memory_space<vmem>>, %arg8: memref<8x128xbf16, #tpu.memory_space<vmem>>) attributes {dimension_semantics = [#tpu.dimension_semantics<parallel>], iteration_bounds = array<i64: 1>, scalar_prefetch = 0 : i64, scratch_operands = 0 : i64, tpu.core_type = #tpu.core_type<tc>, window_params = [{transform_indices = @transform_0, window_bounds = array<i64: 8, 768>}, {pipeline_mode = #tpu.pipeline_mode<synchronous>, transform_indices = @transform_1, window_bounds = array<i64: 768, 384>}, {pipeline_mode = #tpu.pipeline_mode<synchronous>, transform_indices = @transform_2, window_bounds = array<i64: 1, 384>}, {pipeline_mode = #tpu.pipeline_mode<synchronous>, transform_indices = @transform_3, window_bounds = array<i64: 3, 384, 384>}, {pipeline_mode = #tpu.pipeline_mode<synchronous>, transform_indices = @transform_4, window_bounds = array<i64: 3, 1, 384>}, {pipeline_mode = #tpu.pipeline_mode<synchronous>, transform_indices = @transform_5, window_bounds = array<i64: 384, 128>}, {pipeline_mode = #tpu.pipeline_mode<synchronous>, transform_indices = @transform_6, window_bounds = array<i64: 1, 128>}, {transform_indices = @transform_7, window_bounds = array<i64: 8, 128>}]} {
    %c0 = arith.constant 0 : index
    %c0_0 = arith.constant 0 : index
    %0 = vector.load %arg1[%c0, %c0_0] : memref<8x768xbf16, #tpu.memory_space<vmem>>, vector<8x768xbf16>
    %c0_1 = arith.constant 0 : index
    %c0_2 = arith.constant 0 : index
    %1 = vector.load %arg2[%c0_1, %c0_2] : memref<768x384xbf16, #tpu.memory_space<vmem>>, vector<768x384xbf16>
    %cst = arith.constant dense<0.000000e+00> : vector<8x384xf32>
    %2 = tpu.matmul %0, %1, %cst {dimension_numbers = #tpu.dot_dimension_numbers<[1], [0], [0], [1], [0, 0, 1, 1], [], []>} : vector<8x768xbf16>, vector<768x384xbf16>, vector<8x384xf32> -> vector<8x384xf32>
    %c0_3 = arith.constant 0 : index
    %c0_4 = arith.constant 0 : index
    %3 = vector.load %arg3[%c0_3, %c0_4] : memref<1x384xf32, #tpu.memory_space<vmem>>, vector<1x384xf32>
    %4 = vector.broadcast %3 : vector<1x384xf32> to vector<8x384xf32>
    %5 = arith.addf %2, %4 : vector<8x384xf32>
    %cst_5 = arith.constant 5.000000e-01 : f32
    %6 = vector.broadcast %cst_5 : f32 to vector<8x384xf32>
    %7 = arith.mulf %6, %5 : vector<8x384xf32>
    %8 = arith.mulf %5, %5 : vector<8x384xf32>
    %9 = arith.mulf %8, %5 : vector<8x384xf32>
    %cst_6 = arith.constant 4.471500e-02 : f32
    %10 = vector.broadcast %cst_6 : f32 to vector<8x384xf32>
    %11 = arith.mulf %10, %9 : vector<8x384xf32>
    %12 = arith.addf %5, %11 : vector<8x384xf32>
    %cst_7 = arith.constant 0.797884583 : f32
    %13 = vector.broadcast %cst_7 : f32 to vector<8x384xf32>
    %14 = arith.mulf %13, %12 : vector<8x384xf32>
    %15 = math.tanh %14 : vector<8x384xf32>
    %cst_8 = arith.constant 1.000000e+00 : f32
    %16 = vector.broadcast %cst_8 : f32 to vector<8x384xf32>
    %17 = arith.addf %16, %15 : vector<8x384xf32>
    %18 = arith.mulf %7, %17 : vector<8x384xf32>
    %19 = arith.truncf %18 : vector<8x384xf32> to vector<8x384xbf16>
    %c0_9 = arith.constant 0 : index
    %c0_10 = arith.constant 0 : index
    %c0_11 = arith.constant 0 : index
    %20 = vector.load %arg4[%c0_9, %c0_10, %c0_11] : memref<3x384x384xbf16, #tpu.memory_space<vmem>>, vector<1x384x384xbf16>
    %21 = vector.shape_cast %20 : vector<1x384x384xbf16> to vector<384x384xbf16>
    %cst_12 = arith.constant dense<0.000000e+00> : vector<8x384xf32>
    %22 = tpu.matmul %19, %21, %cst_12 {dimension_numbers = #tpu.dot_dimension_numbers<[1], [0], [0], [1], [0, 0, 1, 1], [], []>} : vector<8x384xbf16>, vector<384x384xbf16>, vector<8x384xf32> -> vector<8x384xf32>
    %c0_13 = arith.constant 0 : index
    %c0_14 = arith.constant 0 : index
    %c0_15 = arith.constant 0 : index
    %23 = vector.load %arg5[%c0_13, %c0_14, %c0_15] : memref<3x1x384xf32, #tpu.memory_space<vmem>>, vector<1x1x384xf32>
    %24 = vector.shape_cast %23 : vector<1x1x384xf32> to vector<1x384xf32>
    %25 = vector.broadcast %24 : vector<1x384xf32> to vector<8x384xf32>
    %26 = arith.addf %22, %25 : vector<8x384xf32>
    %cst_16 = arith.constant 5.000000e-01 : f32
    %27 = vector.broadcast %cst_16 : f32 to vector<8x384xf32>
    %28 = arith.mulf %27, %26 : vector<8x384xf32>
    %29 = arith.mulf %26, %26 : vector<8x384xf32>
    %30 = arith.mulf %29, %26 : vector<8x384xf32>
    %cst_17 = arith.constant 4.471500e-02 : f32
    %31 = vector.broadcast %cst_17 : f32 to vector<8x384xf32>
    %32 = arith.mulf %31, %30 : vector<8x384xf32>
    %33 = arith.addf %26, %32 : vector<8x384xf32>
    %cst_18 = arith.constant 0.797884583 : f32
    %34 = vector.broadcast %cst_18 : f32 to vector<8x384xf32>
    %35 = arith.mulf %34, %33 : vector<8x384xf32>
    %36 = math.tanh %35 : vector<8x384xf32>
    %cst_19 = arith.constant 1.000000e+00 : f32
    %37 = vector.broadcast %cst_19 : f32 to vector<8x384xf32>
    %38 = arith.addf %37, %36 : vector<8x384xf32>
    %39 = arith.mulf %28, %38 : vector<8x384xf32>
    %40 = arith.truncf %39 : vector<8x384xf32> to vector<8x384xbf16>
    %c1 = arith.constant 1 : index
    %c0_20 = arith.constant 0 : index
    %c0_21 = arith.constant 0 : index
    %41 = vector.load %arg4[%c1, %c0_20, %c0_21] : memref<3x384x384xbf16, #tpu.memory_space<vmem>>, vector<1x384x384xbf16>
    %42 = vector.shape_cast %41 : vector<1x384x384xbf16> to vector<384x384xbf16>
    %cst_22 = arith.constant dense<0.000000e+00> : vector<8x384xf32>
    %43 = tpu.matmul %40, %42, %cst_22 {dimension_numbers = #tpu.dot_dimension_numbers<[1], [0], [0], [1], [0, 0, 1, 1], [], []>} : vector<8x384xbf16>, vector<384x384xbf16>, vector<8x384xf32> -> vector<8x384xf32>
    %c1_23 = arith.constant 1 : index
    %c0_24 = arith.constant 0 : index
    %c0_25 = arith.constant 0 : index
    %44 = vector.load %arg5[%c1_23, %c0_24, %c0_25] : memref<3x1x384xf32, #tpu.memory_space<vmem>>, vector<1x1x384xf32>
    %45 = vector.shape_cast %44 : vector<1x1x384xf32> to vector<1x384xf32>
    %46 = vector.broadcast %45 : vector<1x384xf32> to vector<8x384xf32>
    %47 = arith.addf %43, %46 : vector<8x384xf32>
    %cst_26 = arith.constant 5.000000e-01 : f32
    %48 = vector.broadcast %cst_26 : f32 to vector<8x384xf32>
    %49 = arith.mulf %48, %47 : vector<8x384xf32>
    %50 = arith.mulf %47, %47 : vector<8x384xf32>
    %51 = arith.mulf %50, %47 : vector<8x384xf32>
    %cst_27 = arith.constant 4.471500e-02 : f32
    %52 = vector.broadcast %cst_27 : f32 to vector<8x384xf32>
    %53 = arith.mulf %52, %51 : vector<8x384xf32>
    %54 = arith.addf %47, %53 : vector<8x384xf32>
    %cst_28 = arith.constant 0.797884583 : f32
    %55 = vector.broadcast %cst_28 : f32 to vector<8x384xf32>
    %56 = arith.mulf %55, %54 : vector<8x384xf32>
    %57 = math.tanh %56 : vector<8x384xf32>
    %cst_29 = arith.constant 1.000000e+00 : f32
    %58 = vector.broadcast %cst_29 : f32 to vector<8x384xf32>
    %59 = arith.addf %58, %57 : vector<8x384xf32>
    %60 = arith.mulf %49, %59 : vector<8x384xf32>
    %61 = arith.truncf %60 : vector<8x384xf32> to vector<8x384xbf16>
    %c2 = arith.constant 2 : index
    %c0_30 = arith.constant 0 : index
    %c0_31 = arith.constant 0 : index
    %62 = vector.load %arg4[%c2, %c0_30, %c0_31] : memref<3x384x384xbf16, #tpu.memory_space<vmem>>, vector<1x384x384xbf16>
    %63 = vector.shape_cast %62 : vector<1x384x384xbf16> to vector<384x384xbf16>
    %cst_32 = arith.constant dense<0.000000e+00> : vector<8x384xf32>
    %64 = tpu.matmul %61, %63, %cst_32 {dimension_numbers = #tpu.dot_dimension_numbers<[1], [0], [0], [1], [0, 0, 1, 1], [], []>} : vector<8x384xbf16>, vector<384x384xbf16>, vector<8x384xf32> -> vector<8x384xf32>
    %c2_33 = arith.constant 2 : index
    %c0_34 = arith.constant 0 : index
    %c0_35 = arith.constant 0 : index
    %65 = vector.load %arg5[%c2_33, %c0_34, %c0_35] : memref<3x1x384xf32, #tpu.memory_space<vmem>>, vector<1x1x384xf32>
    %66 = vector.shape_cast %65 : vector<1x1x384xf32> to vector<1x384xf32>
    %67 = vector.broadcast %66 : vector<1x384xf32> to vector<8x384xf32>
    %68 = arith.addf %64, %67 : vector<8x384xf32>
    %cst_36 = arith.constant 5.000000e-01 : f32
    %69 = vector.broadcast %cst_36 : f32 to vector<8x384xf32>
    %70 = arith.mulf %69, %68 : vector<8x384xf32>
    %71 = arith.mulf %68, %68 : vector<8x384xf32>
    %72 = arith.mulf %71, %68 : vector<8x384xf32>
    %cst_37 = arith.constant 4.471500e-02 : f32
    %73 = vector.broadcast %cst_37 : f32 to vector<8x384xf32>
    %74 = arith.mulf %73, %72 : vector<8x384xf32>
    %75 = arith.addf %68, %74 : vector<8x384xf32>
    %cst_38 = arith.constant 0.797884583 : f32
    %76 = vector.broadcast %cst_38 : f32 to vector<8x384xf32>
    %77 = arith.mulf %76, %75 : vector<8x384xf32>
    %78 = math.tanh %77 : vector<8x384xf32>
    %cst_39 = arith.constant 1.000000e+00 : f32
    %79 = vector.broadcast %cst_39 : f32 to vector<8x384xf32>
    %80 = arith.addf %79, %78 : vector<8x384xf32>
    %81 = arith.mulf %70, %80 : vector<8x384xf32>
    %82 = arith.truncf %81 : vector<8x384xf32> to vector<8x384xbf16>
    %c0_40 = arith.constant 0 : index
    %c0_41 = arith.constant 0 : index
    %83 = vector.load %arg6[%c0_40, %c0_41] : memref<384x128xbf16, #tpu.memory_space<vmem>>, vector<384x128xbf16>
    %cst_42 = arith.constant dense<0.000000e+00> : vector<8x128xf32>
    %84 = tpu.matmul %82, %83, %cst_42 {dimension_numbers = #tpu.dot_dimension_numbers<[1], [0], [0], [1], [0, 0, 1, 1], [], []>} : vector<8x384xbf16>, vector<384x128xbf16>, vector<8x128xf32> -> vector<8x128xf32>
    %c0_43 = arith.constant 0 : index
    %c0_44 = arith.constant 0 : index
    %85 = vector.load %arg7[%c0_43, %c0_44] : memref<1x128xf32, #tpu.memory_space<vmem>>, vector<1x128xf32>
    %86 = vector.broadcast %85 : vector<1x128xf32> to vector<8x128xf32>
    %87 = arith.addf %84, %86 : vector<8x128xf32>
    %cst_45 = arith.constant 5.000000e-01 : f32
    %88 = vector.broadcast %cst_45 : f32 to vector<8x128xf32>
    %89 = arith.mulf %88, %87 : vector<8x128xf32>
    %90 = arith.mulf %87, %87 : vector<8x128xf32>
    %91 = arith.mulf %90, %87 : vector<8x128xf32>
    %cst_46 = arith.constant 4.471500e-02 : f32
    %92 = vector.broadcast %cst_46 : f32 to vector<8x128xf32>
    %93 = arith.mulf %92, %91 : vector<8x128xf32>
    %94 = arith.addf %87, %93 : vector<8x128xf32>
    %cst_47 = arith.constant 0.797884583 : f32
    %95 = vector.broadcast %cst_47 : f32 to vector<8x128xf32>
    %96 = arith.mulf %95, %94 : vector<8x128xf32>
    %97 = math.tanh %96 : vector<8x128xf32>
    %cst_48 = arith.constant 1.000000e+00 : f32
    %98 = vector.broadcast %cst_48 : f32 to vector<8x128xf32>
    %99 = arith.addf %98, %97 : vector<8x128xf32>
    %100 = arith.mulf %89, %99 : vector<8x128xf32>
    %101 = tpu.iota {dimensions = array<i32: 1>} : vector<8x128xi32>
    %c5_i32 = arith.constant 5 : i32
    %102 = vector.broadcast %c5_i32 : i32 to vector<8x128xi32>
    %103 = arith.cmpi slt, %101, %102 : vector<8x128xi32>
    %cst_49 = arith.constant -1.000000e+30 : f32
    %104 = vector.broadcast %cst_49 : f32 to vector<8x128xf32>
    %105 = arith.select %103, %100, %104 : vector<8x128xi1>, vector<8x128xf32>
    %cst_50 = arith.constant dense<0xFF800000> : vector<8xf32>
    %106 = vector.multi_reduction <maximumf>, %105, %cst_50 [1] : vector<8x128xf32> to vector<8xf32>
    %107 = vector.shape_cast %106 : vector<8xf32> to vector<8x1xf32>
    %108 = vector.broadcast %107 : vector<8x1xf32> to vector<8x128xf32>
    %109 = arith.subf %105, %108 : vector<8x128xf32>
    %110 = math.exp %109 : vector<8x128xf32>
    %cst_51 = arith.constant dense<0.000000e+00> : vector<8xf32>
    %111 = vector.multi_reduction <add>, %110, %cst_51 [1] : vector<8x128xf32> to vector<8xf32>
    %112 = vector.shape_cast %111 : vector<8xf32> to vector<8x1xf32>
    %113 = vector.broadcast %112 : vector<8x1xf32> to vector<8x128xf32>
    %114 = arith.divf %110, %113 : vector<8x128xf32>
    %115 = arith.truncf %114 : vector<8x128xf32> to vector<8x128xbf16>
    %c0_52 = arith.constant 0 : index
    %c0_53 = arith.constant 0 : index
    %116 = vector.load %arg8[%c0_52, %c0_53] : memref<8x128xbf16, #tpu.memory_space<vmem>>, vector<8x128xbf16>
    tpu.vector_store %arg8[%c0_52, %c0_53], %115 {strides = array<i32>} : memref<8x128xbf16, #tpu.memory_space<vmem>>, vector<8x128xbf16>,
    return
  }
  func.func @transform_0(%arg0: i32) -> (i32, i32) {
    %c0_i32 = arith.constant 0 : i32
    %c0_i32_0 = arith.constant 0 : i32
    return %arg0, %c0_i32 : i32, i32
  }
  func.func @transform_1(%arg0: i32) -> (i32, i32) {
    %c0_i32 = arith.constant 0 : i32
    %c0_i32_0 = arith.constant 0 : i32
    %c0_i32_1 = arith.constant 0 : i32
    return %c0_i32, %c0_i32_0 : i32, i32
  }
  func.func @transform_2(%arg0: i32) -> (i32, i32) {
    %c0_i32 = arith.constant 0 : i32
    %c0_i32_0 = arith.constant 0 : i32
    %c0_i32_1 = arith.constant 0 : i32
    return %c0_i32, %c0_i32_0 : i32, i32
  }
  func.func @transform_3(%arg0: i32) -> (i32, i32, i32) {
    %c0_i32 = arith.constant 0 : i32
    %c0_i32_0 = arith.constant 0 : i32
    %c0_i32_1 = arith.constant 0 : i32
    %c0_i32_2 = arith.constant 0 : i32
    return %c0_i32, %c0_i32_0, %c0_i32_1 : i32, i32, i32
  }
  func.func @transform_4(%arg0: i32) -> (i32, i32, i32) {
    %c0_i32 = arith.constant 0 : i32
    %c0_i32_0 = arith.constant 0 : i32
    %c0_i32_1 = arith.constant 0 : i32
    %c0_i32_2 = arith.constant 0 : i32
    return %c0_i32, %c0_i32_0, %c0_i32_1 : i32, i32, i32
  }
  func.func @transform_5(%arg0: i32) -> (i32, i32) {
    %c0_i32 = arith.constant 0 : i32
    %c0_i32_0 = arith.constant 0 : i32
    %c0_i32_1 = arith.constant 0 : i32
    return %c0_i32, %c0_i32_0 : i32, i32
  }
  func.func @transform_6(%arg0: i32) -> (i32, i32) {
    %c0_i32 = arith.constant 0 : i32
    %c0_i32_0 = arith.constant 0 : i32
    %c0_i32_1 = arith.constant 0 : i32
    return %c0_i32, %c0_i32_0 : i32, i32
  }
  func.func @transform_7(%arg0: i32) -> (i32, i32) {
    %c0_i32 = arith.constant 0 : i32
    %c0_i32_0 = arith.constant 0 : i32
    return %arg0, %c0_i32 : i32, i32
  }
}

</mosaic_0001>

<llo_original>
// kernel: action_classifier_forward.1
$region0: #{action_classifier_forward.1}
  #allocation0 [shape = 'u32[]', space=smem, size = 0x4, offset = 0x4, fixed_abs, tag = 'smem constant byte address 0x4 - core index']
  #allocation1 [shape = 'u32[144,128]{1,0:T(1,128)}', space=vmem, size = 0x12000, scoped, tag = 'internal scratch']
  %s0 = inlined_call_operand.hbm [shape: bf16[8,768], index: 0, kind: input, shape index: {}]
  %s1 = inlined_call_operand.hbm [shape: bf16[768,384], index: 1, kind: input, shape index: {}]
  %s2 = inlined_call_operand.vmem [shape: f32[1,384], index: 2, kind: input, shape index: {}]
  %s3 = inlined_call_operand.hbm [shape: bf16[3,384,384], index: 3, kind: input, shape index: {}]
  %s4 = inlined_call_operand.vmem [shape: f32[3,1,384], index: 4, kind: input, shape index: {}]
  %s5 = inlined_call_operand.hbm [shape: bf16[384,128], index: 5, kind: input, shape index: {}]
  %s6 = inlined_call_operand.vmem [shape: f32[1,128], index: 6, kind: input, shape index: {}]
  %s7 = inlined_call_operand.vmem [shape: bf16[8,128], index: 7, kind: output, shape index: {}]
  %s8 = sld [smem:[#allocation0]]
  $region54: #{action_classifier_forward.1} parent=0
    _
  %s10 = ssub.s32 1, %s8
  %s11 = scalar_select 0, %s10, %s8
  $region1: #{action_classifier_forward.1} parent=0
    #allocation2 [shape = 'u8[12288]{0}', space=vmem, size = 0x3000, scoped, tag = 'input window, operand 0, single buffered']
    #allocation3 [shape = 's32[1]{0}', space=sflag, size = 0x4, scoped, tag = 'scoped memory for action_classifier_forward.1']
    #allocation4 [shape = 'u8[589824]{0}', space=vmem, size = 0x90000, scoped, tag = 'input window, operand 1, single buffered']
    #allocation5 [shape = 's32[1]{0}', space=sflag, size = 0x4, scoped, tag = 'scoped memory for action_classifier_forward.1']
    #allocation6 [shape = 'u8[884736]{0}', space=vmem, size = 0xd8000, scoped, tag = 'input window, operand 3, single buffered']
    #allocation7 [shape = 'u8[98304]{0}', space=vmem, size = 0x18000, scoped, tag = 'input window, operand 5, single buffered']
    #allocation8 [shape = 's32[1]{0}', space=sflag, size = 0x4, scoped, tag = 'scoped memory for action_classifier_forward.1']
    %12 = vsyncpa [#allocation3], 0
    %13 = vsyncpa [#allocation5], 0
    %14 = vsyncpa [#allocation8], 0
    // Predicated region
    $region2: #{action_classifier_forward.1} parent=1 // pred_check
      _
    $region3: #{action_classifier_forward.1} parent=1 // pred_check_branch
      %16 = sbr.rel (0) target = $region5
    $region4: #{action_classifier_forward.1} parent=1 // pred_region
      %s18 = ssub.s32 384, 384
      %19 = vsyncadd [#allocation3], %s18
      %s21 = sshll.u32 [#allocation2], 4
      %s22 = int_to_ptr.vmem [resolvable:$true] %s21
      %24 = dma.hbm_to_vmem [thread:$0]  %s0, 384, %s22, [#allocation3]
    $region5: #{action_classifier_forward.1} parent=1 // pred_fallthru
      _
    // Predicated region
    $region6: #{action_classifier_forward.1} parent=1 // pred_check
      _
    $region7: #{action_classifier_forward.1} parent=1 // pred_check_branch
      %26 = sbr.rel (0) target = $region9
    $region8: #{action_classifier_forward.1} parent=1 // pred_region
      %s28 = ssub.s32 18432, 18432
      %29 = vsyncadd [#allocation5], %s28
      %s30 = sshll.u32 [#allocation4], 4
      %s31 = int_to_ptr.vmem [resolvable:$true] %s30
      %36 = dma.hbm_to_vmem [thread:$0]  %s1, 18432, %s31, [#allocation5], 192, 192, 12
    $region9: #{action_classifier_forward.1} parent=1 // pred_fallthru
      _
    // Predicated region
    $region10: #{action_classifier_forward.1} parent=1 // pred_check
      _
    $region11: #{action_classifier_forward.1} parent=1 // pred_check_branch
      %38 = sbr.rel (0) target = $region13
    $region12: #{action_classifier_forward.1} parent=1 // pred_region
      _
    $region13: #{action_classifier_forward.1} parent=1 // pred_fallthru
      _
    // Predicated region
    $region14: #{action_classifier_forward.1} parent=1 // pred_check
      _
    $region15: #{action_classifier_forward.1} parent=1 // pred_check_branch
      %40 = sbr.rel (0) target = $region17
    $region16: #{action_classifier_forward.1} parent=1 // pred_region
      %s42 = ssub.s32 27648, 27648
      %43 = vsyncadd [#allocation5], %s42
      %s44 = sshll.u32 [#allocation6], 4
      %s45 = int_to_ptr.vmem [resolvable:$true] %s44
      %50 = dma.hbm_to_vmem [thread:$0]  %s3, 27648, %s45, [#allocation5], 192, 192, 12
    $region17: #{action_classifier_forward.1} parent=1 // pred_fallthru
      _
    // Predicated region
    $region18: #{action_classifier_forward.1} parent=1 // pred_check
      _
    $region19: #{action_classifier_forward.1} parent=1 // pred_check_branch
      %52 = sbr.rel (0) target = $region21
    $region20: #{action_classifier_forward.1} parent=1 // pred_region
      _
    $region21: #{action_classifier_forward.1} parent=1 // pred_fallthru
      _
    // Predicated region
    $region22: #{action_classifier_forward.1} parent=1 // pred_check
      _
    $region23: #{action_classifier_forward.1} parent=1 // pred_check_branch
      %54 = sbr.rel (0) target = $region25
    $region24: #{action_classifier_forward.1} parent=1 // pred_region
      %s56 = ssub.s32 3072, 3072
      %57 = vsyncadd [#allocation8], %s56
      %s58 = sshll.u32 [#allocation7], 4
      %s59 = int_to_ptr.vmem [resolvable:$true] %s58
      %64 = dma.hbm_to_vmem [thread:$0]  %s5, 3072, %s59, [#allocation8], 64, 64, 4
    $region25: #{action_classifier_forward.1} parent=1 // pred_fallthru
      _
    // Predicated region
    $region26: #{action_classifier_forward.1} parent=1 // pred_check
      _
    $region27: #{action_classifier_forward.1} parent=1 // pred_check_branch
      %66 = sbr.rel (0) target = $region29
    $region28: #{action_classifier_forward.1} parent=1 // pred_region
      _
    $region29: #{action_classifier_forward.1} parent=1 // pred_fallthru
      _
    // Predicated region
    $region30: #{action_classifier_forward.1} parent=1 // pred_check
      _
    $region31: #{action_classifier_forward.1} parent=1 // pred_check_branch
      %68 = sbr.rel (0) target = $region33
    $region32: #{action_classifier_forward.1} parent=1 // pred_region
      %69 = dma.done [#allocation3], 384
    $region33: #{action_classifier_forward.1} parent=1 // pred_fallthru
      _
    // Predicated region
    $region34: #{action_classifier_forward.1} parent=1 // pred_check
      _
    $region35: #{action_classifier_forward.1} parent=1 // pred_check_branch
      %71 = sbr.rel (0) target = $region37
    $region36: #{action_classifier_forward.1} parent=1 // pred_region
      %72 = dma.done [#allocation5], 18432
    $region37: #{action_classifier_forward.1} parent=1 // pred_fallthru
      _
    // Predicated region
    $region38: #{action_classifier_forward.1} parent=1 // pred_check
      _
    $region39: #{action_classifier_forward.1} parent=1 // pred_check_branch
      %74 = sbr.rel (0) target = $region41
    $region40: #{action_classifier_forward.1} parent=1 // pred_region
      %75 = dma.done [#allocation5], 27648
    $region41: #{action_classifier_forward.1} parent=1 // pred_fallthru
      _
    // Predicated region
    $region42: #{action_classifier_forward.1} parent=1 // pred_check
      _
    $region43: #{action_classifier_forward.1} parent=1 // pred_check_branch
      %77 = sbr.rel (0) target = $region45
    $region44: #{action_classifier_forward.1} parent=1 // pred_region
      %78 = dma.done [#allocation8], 3072
    $region45: #{action_classifier_forward.1} parent=1 // pred_fallthru
      _
    %v80 = vld [vmem:[#allocation2] sm:$0xff]
    %v81 = vld [vmem:[#allocation2 + $0x8] sm:$0xff]
    %v82 = vld [vmem:[#allocation2 + $0x10] sm:$0xff]
    %v83 = vld [vmem:[#allocation4] sm:$0xff]
    %v84 = vld [vmem:[#allocation4 + $0x8] sm:$0xf]
    %v85 = vld [vmem:[#allocation4 + $0xc] sm:$0xff]
    %v86 = vld [vmem:[#allocation4 + $0x14] sm:$0xf]
    %v87 = vld [vmem:[#allocation4 + $0x18] sm:$0xff]
    %v88 = vld [vmem:[#allocation4 + $0x20] sm:$0xf]
    %v89 = vld [vmem:[#allocation4 + $0x24] sm:$0xff]
    %v90 = vld [vmem:[#allocation4 + $0x2c] sm:$0xf]
    %v91 = vld [vmem:[#allocation4 + $0x30] sm:$0xff]
    %v92 = vld [vmem:[#allocation4 + $0x38] sm:$0xf]
    %v93 = vld [vmem:[#allocation4 + $0x3c] sm:$0xff]
    %v94 = vld [vmem:[#allocation4 + $0x44] sm:$0xf]
    %v95 = vld [vmem:[#allocation4 + $0x48] sm:$0xff]
    %v96 = vld [vmem:[#allocation4 + $0x50] sm:$0xf]
    %v97 = vld [vmem:[#allocation4 + $0x54] sm:$0xff]
    %v98 = vld [vmem:[#allocation4 + $0x5c] sm:$0xf]
    %v99 = vld [vmem:[#allocation4 + $0x60] sm:$0xff]
    %v100 = vld [vmem:[#allocation4 + $0x68] sm:$0xf]
    %v101 = vld [vmem:[#allocation4 + $0x6c] sm:$0xff]
    %v102 = vld [vmem:[#allocation4 + $0x74] sm:$0xf]
    %v103 = vld [vmem:[#allocation4 + $0x78] sm:$0xff]
    %v104 = vld [vmem:[#allocation4 + $0x80] sm:$0xf]
    %v105 = vld [vmem:[#allocation4 + $0x84] sm:$0xff]
    %v106 = vld [vmem:[#allocation4 + $0x8c] sm:$0xf]
    %v107 = vld [vmem:[#allocation4 + $0x90] sm:$0xff]
    %v108 = vld [vmem:[#allocation4 + $0x98] sm:$0xf]
    %v109 = vld [vmem:[#allocation4 + $0x9c] sm:$0xff]
    %v110 = vld [vmem:[#allocation4 + $0xa4] sm:$0xf]
    %v111 = vld [vmem:[#allocation4 + $0xa8] sm:$0xff]
    %v112 = vld [vmem:[#allocation4 + $0xb0] sm:$0xf]
    %v113 = vld [vmem:[#allocation4 + $0xb4] sm:$0xff]
    %v114 = vld [vmem:[#allocation4 + $0xbc] sm:$0xf]
    %v115 = vld [vmem:[#allocation4 + $0xc0] sm:$0xff]
    %v116 = vld [vmem:[#allocation4 + $0xc8] sm:$0xf]
    %v117 = vld [vmem:[#allocation4 + $0xcc] sm:$0xff]
    %v118 = vld [vmem:[#allocation4 + $0xd4] sm:$0xf]
    %v119 = vld [vmem:[#allocation4 + $0xd8] sm:$0xff]
    %v120 = vld [vmem:[#allocation4 + $0xe0] sm:$0xf]
    %v121 = vld [vmem:[#allocation4 + $0xe4] sm:$0xff]
    %v122 = vld [vmem:[#allocation4 + $0xec] sm:$0xf]
    %v123 = vld [vmem:[#allocation4 + $0xf0] sm:$0xff]
    %v124 = vld [vmem:[#allocation4 + $0xf8] sm:$0xf]
    %v125 = vld [vmem:[#allocation4 + $0xfc] sm:$0xff]
    %v126 = vld [vmem:[#allocation4 + $0x104] sm:$0xf]
    %v127 = vld [vmem:[#allocation4 + $0x108] sm:$0xff]
    %v128 = vld [vmem:[#allocation4 + $0x110] sm:$0xf]
    %v129 = vld [vmem:[#allocation4 + $0x114] sm:$0xff]
    %v130 = vld [vmem:[#allocation4 + $0x11c] sm:$0xf]
    %v131 = vld [vmem:[#allocation4 + $0x120] sm:$0xff]
    %v132 = vld [vmem:[#allocation4 + $0x128] sm:$0xf]
    %v133 = vld [vmem:[#allocation4 + $0x12c] sm:$0xff]
    %v134 = vld [vmem:[#allocation4 + $0x134] sm:$0xf]
    %v135 = vld [vmem:[#allocation4 + $0x138] sm:$0xff]
    %v136 = vld [vmem:[#allocation4 + $0x140] sm:$0xf]
    %v137 = vld [vmem:[#allocation4 + $0x144] sm:$0xff]
    %v138 = vld [vmem:[#allocation4 + $0x14c] sm:$0xf]
    %v139 = vld [vmem:[#allocation4 + $0x150] sm:$0xff]
    %v140 = vld [vmem:[#allocation4 + $0x158] sm:$0xf]
    %v141 = vld [vmem:[#allocation4 + $0x15c] sm:$0xff]
    %v142 = vld [vmem:[#allocation4 + $0x164] sm:$0xf]
    %v143 = vld [vmem:[#allocation4 + $0x168] sm:$0xff]
    %v144 = vld [vmem:[#allocation4 + $0x170] sm:$0xf]
    %v145 = vld [vmem:[#allocation4 + $0x174] sm:$0xff]
    %v146 = vld [vmem:[#allocation4 + $0x17c] sm:$0xf]
    %v147 = vld [vmem:[#allocation4 + $0x180] sm:$0xff]
    %v148 = vld [vmem:[#allocation4 + $0x188] sm:$0xf]
    %v149 = vld [vmem:[#allocation4 + $0x18c] sm:$0xff]
    %v150 = vld [vmem:[#allocation4 + $0x194] sm:$0xf]
    %v151 = vld [vmem:[#allocation4 + $0x198] sm:$0xff]
    %v152 = vld [vmem:[#allocation4 + $0x1a0] sm:$0xf]
    %v153 = vld [vmem:[#allocation4 + $0x1a4] sm:$0xff]
    %v154 = vld [vmem:[#allocation4 + $0x1ac] sm:$0xf]
    %v155 = vld [vmem:[#allocation4 + $0x1b0] sm:$0xff]
    %v156 = vld [vmem:[#allocation4 + $0x1b8] sm:$0xf]
    %v157 = vld [vmem:[#allocation4 + $0x1bc] sm:$0xff]
    %v158 = vld [vmem:[#allocation4 + $0x1c4] sm:$0xf]
    %v159 = vld [vmem:[#allocation4 + $0x1c8] sm:$0xff]
    %v160 = vld [vmem:[#allocation4 + $0x1d0] sm:$0xf]
    %v161 = vld [vmem:[#allocation4 + $0x1d4] sm:$0xff]
    %v162 = vld [vmem:[#allocation4 + $0x1dc] sm:$0xf]
    %v163 = vld [vmem:[#allocation4 + $0x1e0] sm:$0xff]
    %v164 = vld [vmem:[#allocation4 + $0x1e8] sm:$0xf]
    %v165 = vld [vmem:[#allocation4 + $0x1ec] sm:$0xff]
    %v166 = vld [vmem:[#allocation4 + $0x1f4] sm:$0xf]
    %v167 = vld [vmem:[#allocation4 + $0x1f8] sm:$0xff]
    %v168 = vld [vmem:[#allocation4 + $0x200] sm:$0xf]
    %v169 = vld [vmem:[#allocation4 + $0x204] sm:$0xff]
    %v170 = vld [vmem:[#allocation4 + $0x20c] sm:$0xf]
    %v171 = vld [vmem:[#allocation4 + $0x210] sm:$0xff]
    %v172 = vld [vmem:[#allocation4 + $0x218] sm:$0xf]
    %v173 = vld [vmem:[#allocation4 + $0x21c] sm:$0xff]
    %v174 = vld [vmem:[#allocation4 + $0x224] sm:$0xf]
    %v175 = vld [vmem:[#allocation4 + $0x228] sm:$0xff]
    %v176 = vld [vmem:[#allocation4 + $0x230] sm:$0xf]
    %v177 = vld [vmem:[#allocation4 + $0x234] sm:$0xff]
    %v178 = vld [vmem:[#allocation4 + $0x23c] sm:$0xf]
    %v179 = vld [vmem:[#allocation4 + $0x240] sm:$0xff]
    %v180 = vld [vmem:[#allocation4 + $0x248] sm:$0xf]
    %v181 = vld [vmem:[#allocation4 + $0x24c] sm:$0xff]
    %v182 = vld [vmem:[#allocation4 + $0x254] sm:$0xf]
    %v183 = vld [vmem:[#allocation4 + $0x258] sm:$0xff]
    %v184 = vld [vmem:[#allocation4 + $0x260] sm:$0xf]
    %v185 = vld [vmem:[#allocation4 + $0x264] sm:$0xff]
    %v186 = vld [vmem:[#allocation4 + $0x26c] sm:$0xf]
    %v187 = vld [vmem:[#allocation4 + $0x270] sm:$0xff]
    %v188 = vld [vmem:[#allocation4 + $0x278] sm:$0xf]
    %v189 = vld [vmem:[#allocation4 + $0x27c] sm:$0xff]
    %v190 = vld [vmem:[#allocation4 + $0x284] sm:$0xf]
    %v191 = vld [vmem:[#allocation4 + $0x288] sm:$0xff]
    %v192 = vld [vmem:[#allocation4 + $0x290] sm:$0xf]
    %v193 = vld [vmem:[#allocation4 + $0x294] sm:$0xff]
    %v194 = vld [vmem:[#allocation4 + $0x29c] sm:$0xf]
    %v195 = vld [vmem:[#allocation4 + $0x2a0] sm:$0xff]
    %v196 = vld [vmem:[#allocation4 + $0x2a8] sm:$0xf]
    %v197 = vld [vmem:[#allocation4 + $0x2ac] sm:$0xff]
    %v198 = vld [vmem:[#allocation4 + $0x2b4] sm:$0xf]
    %v199 = vld [vmem:[#allocation4 + $0x2b8] sm:$0xff]
    %v200 = vld [vmem:[#allocation4 + $0x2c0] sm:$0xf]
    %v201 = vld [vmem:[#allocation4 + $0x2c4] sm:$0xff]
    %v202 = vld [vmem:[#allocation4 + $0x2cc] sm:$0xf]
    %v203 = vld [vmem:[#allocation4 + $0x2d0] sm:$0xff]
    %v204 = vld [vmem:[#allocation4 + $0x2d8] sm:$0xf]
    %v205 = vld [vmem:[#allocation4 + $0x2dc] sm:$0xff]
    %v206 = vld [vmem:[#allocation4 + $0x2e4] sm:$0xf]
    %v207 = vld [vmem:[#allocation4 + $0x2e8] sm:$0xff]
    %v208 = vld [vmem:[#allocation4 + $0x2f0] sm:$0xf]
    %v209 = vld [vmem:[#allocation4 + $0x2f4] sm:$0xff]
    %v210 = vld [vmem:[#allocation4 + $0x2fc] sm:$0xf]
    %v211 = vld [vmem:[#allocation4 + $0x300] sm:$0xff]
    %v212 = vld [vmem:[#allocation4 + $0x308] sm:$0xf]
    %v213 = vld [vmem:[#allocation4 + $0x30c] sm:$0xff]
    %v214 = vld [vmem:[#allocation4 + $0x314] sm:$0xf]
    %v215 = vld [vmem:[#allocation4 + $0x318] sm:$0xff]
    %v216 = vld [vmem:[#allocation4 + $0x320] sm:$0xf]
    %v217 = vld [vmem:[#allocation4 + $0x324] sm:$0xff]
    %v218 = vld [vmem:[#allocation4 + $0x32c] sm:$0xf]
    %v219 = vld [vmem:[#allocation4 + $0x330] sm:$0xff]
    %v220 = vld [vmem:[#allocation4 + $0x338] sm:$0xf]
    %v221 = vld [vmem:[#allocation4 + $0x33c] sm:$0xff]
    %v222 = vld [vmem:[#allocation4 + $0x344] sm:$0xf]
    %v223 = vld [vmem:[#allocation4 + $0x348] sm:$0xff]
    %v224 = vld [vmem:[#allocation4 + $0x350] sm:$0xf]
    %v225 = vld [vmem:[#allocation4 + $0x354] sm:$0xff]
    %v226 = vld [vmem:[#allocation4 + $0x35c] sm:$0xf]
    %v227 = vld [vmem:[#allocation4 + $0x360] sm:$0xff]
    %v228 = vld [vmem:[#allocation4 + $0x368] sm:$0xf]
    %v229 = vld [vmem:[#allocation4 + $0x36c] sm:$0xff]
    %v230 = vld [vmem:[#allocation4 + $0x374] sm:$0xf]
    %v231 = vld [vmem:[#allocation4 + $0x378] sm:$0xff]
    %v232 = vld [vmem:[#allocation4 + $0x380] sm:$0xf]
    %v233 = vld [vmem:[#allocation4 + $0x384] sm:$0xff]
    %v234 = vld [vmem:[#allocation4 + $0x38c] sm:$0xf]
    %v235 = vld [vmem:[#allocation4 + $0x390] sm:$0xff]
    %v236 = vld [vmem:[#allocation4 + $0x398] sm:$0xf]
    %v237 = vld [vmem:[#allocation4 + $0x39c] sm:$0xff]
    %v238 = vld [vmem:[#allocation4 + $0x3a4] sm:$0xf]
    %v239 = vld [vmem:[#allocation4 + $0x3a8] sm:$0xff]
    %v240 = vld [vmem:[#allocation4 + $0x3b0] sm:$0xf]
    %v241 = vld [vmem:[#allocation4 + $0x3b4] sm:$0xff]
    %v242 = vld [vmem:[#allocation4 + $0x3bc] sm:$0xf]
    %v243 = vld [vmem:[#allocation4 + $0x3c0] sm:$0xff]
    %v244 = vld [vmem:[#allocation4 + $0x3c8] sm:$0xf]
    %v245 = vld [vmem:[#allocation4 + $0x3cc] sm:$0xff]
    %v246 = vld [vmem:[#allocation4 + $0x3d4] sm:$0xf]
    %v247 = vld [vmem:[#allocation4 + $0x3d8] sm:$0xff]
    %v248 = vld [vmem:[#allocation4 + $0x3e0] sm:$0xf]
    %v249 = vld [vmem:[#allocation4 + $0x3e4] sm:$0xff]
    %v250 = vld [vmem:[#allocation4 + $0x3ec] sm:$0xf]
    %v251 = vld [vmem:[#allocation4 + $0x3f0] sm:$0xff]
    %v252 = vld [vmem:[#allocation4 + $0x3f8] sm:$0xf]
    %v253 = vld [vmem:[#allocation4 + $0x3fc] sm:$0xff]
    %v254 = vld [vmem:[#allocation4 + $0x404] sm:$0xf]
    %v255 = vld [vmem:[#allocation4 + $0x408] sm:$0xff]
    %v256 = vld [vmem:[#allocation4 + $0x410] sm:$0xf]
    %v257 = vld [vmem:[#allocation4 + $0x414] sm:$0xff]
    %v258 = vld [vmem:[#allocation4 + $0x41c] sm:$0xf]
    %v259 = vld [vmem:[#allocation4 + $0x420] sm:$0xff]
    %v260 = vld [vmem:[#allocation4 + $0x428] sm:$0xf]
    %v261 = vld [vmem:[#allocation4 + $0x42c] sm:$0xff]
    %v262 = vld [vmem:[#allocation4 + $0x434] sm:$0xf]
    %v263 = vld [vmem:[#allocation4 + $0x438] sm:$0xff]
    %v264 = vld [vmem:[#allocation4 + $0x440] sm:$0xf]
    %v265 = vld [vmem:[#allocation4 + $0x444] sm:$0xff]
    %v266 = vld [vmem:[#allocation4 + $0x44c] sm:$0xf]
    %v267 = vld [vmem:[#allocation4 + $0x450] sm:$0xff]
    %v268 = vld [vmem:[#allocation4 + $0x458] sm:$0xf]
    %v269 = vld [vmem:[#allocation4 + $0x45c] sm:$0xff]
    %v270 = vld [vmem:[#allocation4 + $0x464] sm:$0xf]
    %v271 = vld [vmem:[#allocation4 + $0x468] sm:$0xff]
    %v272 = vld [vmem:[#allocation4 + $0x470] sm:$0xf]
    %v273 = vld [vmem:[#allocation4 + $0x474] sm:$0xff]
    %v274 = vld [vmem:[#allocation4 + $0x47c] sm:$0xf]
    %v275 = vld [vmem:[%s2] sm:$0x7]
    %v277 = vlaneseq
    %v278 = vshrl.u32 %v277, 7
    %v279 = vsub.s32 0, %v278
    %v280 = vrot.slane %v275, %v279
    %v281 = vlaneseq
    %v282 = vshrl.u32 %v281, 7
    %v283 = vsub.s32 1, %v282
    %v284 = vrot.slane %v275, %v283
    %v285 = vlaneseq
    %v286 = vshrl.u32 %v285, 7
    %v287 = vsub.s32 2, %v286
    %v288 = vrot.slane %v275, %v287
    %v295 = vunpack.c.l.b16 %v80
    %v296 = vunpack.c.h.b16 %v80
    %v297 = vunpack.c.l.b16 %v81
    %v298 = vunpack.c.h.b16 %v81
    %v299 = vunpack.c.l.b16 %v82
    %v300 = vunpack.c.h.b16 %v82
    %v301 = vpack.c.b16 %v295, %v295
    %v302 = vpack.c.b16 %v296, %v296
    %v303 = vpack.c.b16 %v297, %v297
    %v304 = vpack.c.b16 %v298, %v298
    %v305 = vpack.c.b16 %v299, %v299
    %v306 = vpack.c.b16 %v300, %v300
    %v505 = vunpack.c.l.b16 %v83
    %v506 = vunpack.c.h.b16 %v83
    %v507 = vunpack.c.l.b16 %v84
    %v508 = vunpack.c.l.b16 %v85
    %v509 = vunpack.c.h.b16 %v85
    %v510 = vunpack.c.l.b16 %v86
    %v511 = vunpack.c.l.b16 %v87
    %v512 = vunpack.c.h.b16 %v87
    %v513 = vunpack.c.l.b16 %v88
    %v514 = vunpack.c.l.b16 %v89
    %v515 = vunpack.c.h.b16 %v89
    %v516 = vunpack.c.l.b16 %v90
    %v517 = vunpack.c.l.b16 %v91
    %v518 = vunpack.c.h.b16 %v91
    %v519 = vunpack.c.l.b16 %v92
    %v520 = vunpack.c.l.b16 %v93
    %v521 = vunpack.c.h.b16 %v93
    %v522 = vunpack.c.l.b16 %v94
    %v523 = vunpack.c.l.b16 %v95
    %v524 = vunpack.c.h.b16 %v95
    %v525 = vunpack.c.l.b16 %v96
    %v526 = vunpack.c.l.b16 %v97
    %v527 = vunpack.c.h.b16 %v97
    %v528 = vunpack.c.l.b16 %v98
    %v529 = vunpack.c.l.b16 %v99
    %v530 = vunpack.c.h.b16 %v99
    %v531 = vunpack.c.l.b16 %v100
    %v532 = vunpack.c.l.b16 %v101
    %v533 = vunpack.c.h.b16 %v101
    %v534 = vunpack.c.l.b16 %v102
    %v535 = vunpack.c.l.b16 %v103
    %v536 = vunpack.c.h.b16 %v103
    %v537 = vunpack.c.l.b16 %v104
    %v538 = vunpack.c.l.b16 %v105
    %v539 = vunpack.c.h.b16 %v105
    %v540 = vunpack.c.l.b16 %v106
    %v541 = vunpack.c.l.b16 %v107
    %v542 = vunpack.c.h.b16 %v107
    %v543 = vunpack.c.l.b16 %v108
    %v544 = vunpack.c.l.b16 %v109
    %v545 = vunpack.c.h.b16 %v109
    %v546 = vunpack.c.l.b16 %v110
    %v547 = vunpack.c.l.b16 %v111
    %v548 = vunpack.c.h.b16 %v111
    %v549 = vunpack.c.l.b16 %v112
    %v550 = vunpack.c.l.b16 %v113
    %v551 = vunpack.c.h.b16 %v113
    %v552 = vunpack.c.l.b16 %v114
    %v553 = vunpack.c.l.b16 %v115
    %v554 = vunpack.c.h.b16 %v115
    %v555 = vunpack.c.l.b16 %v116
    %v556 = vunpack.c.l.b16 %v117
    %v557 = vunpack.c.h.b16 %v117
    %v558 = vunpack.c.l.b16 %v118
    %v559 = vunpack.c.l.b16 %v119
    %v560 = vunpack.c.h.b16 %v119
    %v561 = vunpack.c.l.b16 %v120
    %v562 = vunpack.c.l.b16 %v121
    %v563 = vunpack.c.h.b16 %v121
    %v564 = vunpack.c.l.b16 %v122
    %v565 = vunpack.c.l.b16 %v123
    %v566 = vunpack.c.h.b16 %v123
    %v567 = vunpack.c.l.b16 %v124
    %v568 = vunpack.c.l.b16 %v125
    %v569 = vunpack.c.h.b16 %v125
    %v570 = vunpack.c.l.b16 %v126
    %v571 = vunpack.c.l.b16 %v127
    %v572 = vunpack.c.h.b16 %v127
    %v573 = vunpack.c.l.b16 %v128
    %v574 = vunpack.c.l.b16 %v129
    %v575 = vunpack.c.h.b16 %v129
    %v576 = vunpack.c.l.b16 %v130
    %v577 = vunpack.c.l.b16 %v131
    %v578 = vunpack.c.h.b16 %v131
    %v579 = vunpack.c.l.b16 %v132
    %v580 = vunpack.c.l.b16 %v133
    %v581 = vunpack.c.h.b16 %v133
    %v582 = vunpack.c.l.b16 %v134
    %v583 = vunpack.c.l.b16 %v135
    %v584 = vunpack.c.h.b16 %v135
    %v585 = vunpack.c.l.b16 %v136
    %v586 = vunpack.c.l.b16 %v137
    %v587 = vunpack.c.h.b16 %v137
    %v588 = vunpack.c.l.b16 %v138
    %v589 = vunpack.c.l.b16 %v139
    %v590 = vunpack.c.h.b16 %v139
    %v591 = vunpack.c.l.b16 %v140
    %v592 = vunpack.c.l.b16 %v141
    %v593 = vunpack.c.h.b16 %v141
    %v594 = vunpack.c.l.b16 %v142
    %v595 = vunpack.c.l.b16 %v143
    %v596 = vunpack.c.h.b16 %v143
    %v597 = vunpack.c.l.b16 %v144
    %v598 = vunpack.c.l.b16 %v145
    %v599 = vunpack.c.h.b16 %v145
    %v600 = vunpack.c.l.b16 %v146
    %v601 = vunpack.c.l.b16 %v147
    %v602 = vunpack.c.h.b16 %v147
    %v603 = vunpack.c.l.b16 %v148
    %v604 = vunpack.c.l.b16 %v149
    %v605 = vunpack.c.h.b16 %v149
    %v606 = vunpack.c.l.b16 %v150
    %v607 = vunpack.c.l.b16 %v151
    %v608 = vunpack.c.h.b16 %v151
    %v609 = vunpack.c.l.b16 %v152
    %v610 = vunpack.c.l.b16 %v153
    %v611 = vunpack.c.h.b16 %v153
    %v612 = vunpack.c.l.b16 %v154
    %v613 = vunpack.c.l.b16 %v155
    %v614 = vunpack.c.h.b16 %v155
    %v615 = vunpack.c.l.b16 %v156
    %v616 = vunpack.c.l.b16 %v157
    %v617 = vunpack.c.h.b16 %v157
    %v618 = vunpack.c.l.b16 %v158
    %v619 = vunpack.c.l.b16 %v159
    %v620 = vunpack.c.h.b16 %v159
    %v621 = vunpack.c.l.b16 %v160
    %v622 = vunpack.c.l.b16 %v161
    %v623 = vunpack.c.h.b16 %v161
    %v624 = vunpack.c.l.b16 %v162
    %v625 = vunpack.c.l.b16 %v163
    %v626 = vunpack.c.h.b16 %v163
    %v627 = vunpack.c.l.b16 %v164
    %v628 = vunpack.c.l.b16 %v165
    %v629 = vunpack.c.h.b16 %v165
    %v630 = vunpack.c.l.b16 %v166
    %v631 = vunpack.c.l.b16 %v167
    %v632 = vunpack.c.h.b16 %v167
    %v633 = vunpack.c.l.b16 %v168
    %v634 = vunpack.c.l.b16 %v169
    %v635 = vunpack.c.h.b16 %v169
    %v636 = vunpack.c.l.b16 %v170
    %v637 = vunpack.c.l.b16 %v171
    %v638 = vunpack.c.h.b16 %v171
    %v639 = vunpack.c.l.b16 %v172
    %v640 = vunpack.c.l.b16 %v173
    %v641 = vunpack.c.h.b16 %v173
    %v642 = vunpack.c.l.b16 %v174
    %v643 = vunpack.c.l.b16 %v175
    %v644 = vunpack.c.h.b16 %v175
    %v645 = vunpack.c.l.b16 %v176
    %v646 = vunpack.c.l.b16 %v177
    %v647 = vunpack.c.h.b16 %v177
    %v648 = vunpack.c.l.b16 %v178
    %v649 = vunpack.c.l.b16 %v179
    %v650 = vunpack.c.h.b16 %v179
    %v651 = vunpack.c.l.b16 %v180
    %v652 = vunpack.c.l.b16 %v181
    %v653 = vunpack.c.h.b16 %v181
    %v654 = vunpack.c.l.b16 %v182
    %v655 = vunpack.c.l.b16 %v183
    %v656 = vunpack.c.h.b16 %v183
    %v657 = vunpack.c.l.b16 %v184
    %v658 = vunpack.c.l.b16 %v185
    %v659 = vunpack.c.h.b16 %v185
    %v660 = vunpack.c.l.b16 %v186
    %v661 = vunpack.c.l.b16 %v187
    %v662 = vunpack.c.h.b16 %v187
    %v663 = vunpack.c.l.b16 %v188
    %v664 = vunpack.c.l.b16 %v189
    %v665 = vunpack.c.h.b16 %v189
    %v666 = vunpack.c.l.b16 %v190
    %v667 = vunpack.c.l.b16 %v191
    %v668 = vunpack.c.h.b16 %v191
    %v669 = vunpack.c.l.b16 %v192
    %v670 = vunpack.c.l.b16 %v193
    %v671 = vunpack.c.h.b16 %v193
    %v672 = vunpack.c.l.b16 %v194
    %v673 = vunpack.c.l.b16 %v195
    %v674 = vunpack.c.h.b16 %v195
    %v675 = vunpack.c.l.b16 %v196
    %v676 = vunpack.c.l.b16 %v197
    %v677 = vunpack.c.h.b16 %v197
    %v678 = vunpack.c.l.b16 %v198
    %v679 = vunpack.c.l.b16 %v199
    %v680 = vunpack.c.h.b16 %v199
    %v681 = vunpack.c.l.b16 %v200
    %v682 = vunpack.c.l.b16 %v201
    %v683 = vunpack.c.h.b16 %v201
    %v684 = vunpack.c.l.b16 %v202
    %v685 = vunpack.c.l.b16 %v203
    %v686 = vunpack.c.h.b16 %v203
    %v687 = vunpack.c.l.b16 %v204
    %v688 = vunpack.c.l.b16 %v205
    %v689 = vunpack.c.h.b16 %v205
    %v690 = vunpack.c.l.b16 %v206
    %v691 = vunpack.c.l.b16 %v207
    %v692 = vunpack.c.h.b16 %v207
    %v693 = vunpack.c.l.b16 %v208
    %v694 = vunpack.c.l.b16 %v209
    %v695 = vunpack.c.h.b16 %v209
    %v696 = vunpack.c.l.b16 %v210
    %v697 = vunpack.c.l.b16 %v211
    %v698 = vunpack.c.h.b16 %v211
    %v699 = vunpack.c.l.b16 %v212
    %v700 = vunpack.c.l.b16 %v213
    %v701 = vunpack.c.h.b16 %v213
    %v702 = vunpack.c.l.b16 %v214
    %v703 = vunpack.c.l.b16 %v215
    %v704 = vunpack.c.h.b16 %v215
    %v705 = vunpack.c.l.b16 %v216
    %v706 = vunpack.c.l.b16 %v217
    %v707 = vunpack.c.h.b16 %v217
    %v708 = vunpack.c.l.b16 %v218
    %v709 = vunpack.c.l.b16 %v219
    %v710 = vunpack.c.h.b16 %v219
    %v711 = vunpack.c.l.b16 %v220
    %v712 = vunpack.c.l.b16 %v221
    %v713 = vunpack.c.h.b16 %v221
    %v714 = vunpack.c.l.b16 %v222
    %v715 = vunpack.c.l.b16 %v223
    %v716 = vunpack.c.h.b16 %v223
    %v717 = vunpack.c.l.b16 %v224
    %v718 = vunpack.c.l.b16 %v225
    %v719 = vunpack.c.h.b16 %v225
    %v720 = vunpack.c.l.b16 %v226
    %v721 = vunpack.c.l.b16 %v227
    %v722 = vunpack.c.h.b16 %v227
    %v723 = vunpack.c.l.b16 %v228
    %v724 = vunpack.c.l.b16 %v229
    %v725 = vunpack.c.h.b16 %v229
    %v726 = vunpack.c.l.b16 %v230
    %v727 = vunpack.c.l.b16 %v231
    %v728 = vunpack.c.h.b16 %v231
    %v729 = vunpack.c.l.b16 %v232
    %v730 = vunpack.c.l.b16 %v233
    %v731 = vunpack.c.h.b16 %v233
    %v732 = vunpack.c.l.b16 %v234
    %v733 = vunpack.c.l.b16 %v235
    %v734 = vunpack.c.h.b16 %v235
    %v735 = vunpack.c.l.b16 %v236
    %v736 = vunpack.c.l.b16 %v237
    %v737 = vunpack.c.h.b16 %v237
    %v738 = vunpack.c.l.b16 %v238
    %v739 = vunpack.c.l.b16 %v239
    %v740 = vunpack.c.h.b16 %v239
    %v741 = vunpack.c.l.b16 %v240
    %v742 = vunpack.c.l.b16 %v241
    %v743 = vunpack.c.h.b16 %v241
    %v744 = vunpack.c.l.b16 %v242
    %v745 = vunpack.c.l.b16 %v243
    %v746 = vunpack.c.h.b16 %v243
    %v747 = vunpack.c.l.b16 %v244
    %v748 = vunpack.c.l.b16 %v245
    %v749 = vunpack.c.h.b16 %v245
    %v750 = vunpack.c.l.b16 %v246
    %v751 = vunpack.c.l.b16 %v247
    %v752 = vunpack.c.h.b16 %v247
    %v753 = vunpack.c.l.b16 %v248
    %v754 = vunpack.c.l.b16 %v249
    %v755 = vunpack.c.h.b16 %v249
    %v756 = vunpack.c.l.b16 %v250
    %v757 = vunpack.c.l.b16 %v251
    %v758 = vunpack.c.h.b16 %v251
    %v759 = vunpack.c.l.b16 %v252
    %v760 = vunpack.c.l.b16 %v253
    %v761 = vunpack.c.h.b16 %v253
    %v762 = vunpack.c.l.b16 %v254
    %v763 = vunpack.c.l.b16 %v255
    %v764 = vunpack.c.h.b16 %v255
    %v765 = vunpack.c.l.b16 %v256
    %v766 = vunpack.c.l.b16 %v257
    %v767 = vunpack.c.h.b16 %v257
    %v768 = vunpack.c.l.b16 %v258
    %v769 = vunpack.c.l.b16 %v259
    %v770 = vunpack.c.h.b16 %v259
    %v771 = vunpack.c.l.b16 %v260
    %v772 = vunpack.c.l.b16 %v261
    %v773 = vunpack.c.h.b16 %v261
    %v774 = vunpack.c.l.b16 %v262
    %v775 = vunpack.c.l.b16 %v263
    %v776 = vunpack.c.h.b16 %v263
    %v777 = vunpack.c.l.b16 %v264
    %v778 = vunpack.c.l.b16 %v265
    %v779 = vunpack.c.h.b16 %v265
    %v780 = vunpack.c.l.b16 %v266
    %v781 = vunpack.c.l.b16 %v267
    %v782 = vunpack.c.h.b16 %v267
    %v783 = vunpack.c.l.b16 %v268
    %v784 = vunpack.c.l.b16 %v269
    %v785 = vunpack.c.h.b16 %v269
    %v786 = vunpack.c.l.b16 %v270
    %v787 = vunpack.c.l.b16 %v271
    %v788 = vunpack.c.h.b16 %v271
    %v789 = vunpack.c.l.b16 %v272
    %v790 = vunpack.c.l.b16 %v273
    %v791 = vunpack.c.h.b16 %v273
    %v792 = vunpack.c.l.b16 %v274
    %v793 = vpack.c.b16 %v508, %v505
    %v794 = vpack.c.b16 %v509, %v506
    %v795 = vpack.c.b16 %v510, %v507
    %v796 = vpack.c.b16 %v514, %v511
    %v797 = vpack.c.b16 %v515, %v512
    %v798 = vpack.c.b16 %v516, %v513
    %v799 = vpack.c.b16 %v520, %v517
    %v800 = vpack.c.b16 %v521, %v518
    %v801 = vpack.c.b16 %v522, %v519
    %v802 = vpack.c.b16 %v526, %v523
    %v803 = vpack.c.b16 %v527, %v524
    %v804 = vpack.c.b16 %v528, %v525
    %v805 = vpack.c.b16 %v532, %v529
    %v806 = vpack.c.b16 %v533, %v530
    %v807 = vpack.c.b16 %v534, %v531
    %v808 = vpack.c.b16 %v538, %v535
    %v809 = vpack.c.b16 %v539, %v536
    %v810 = vpack.c.b16 %v540, %v537
    %v811 = vpack.c.b16 %v544, %v541
    %v812 = vpack.c.b16 %v545, %v542
    %v813 = vpack.c.b16 %v546, %v543
    %v814 = vpack.c.b16 %v550, %v547
    %v815 = vpack.c.b16 %v551, %v548
    %v816 = vpack.c.b16 %v552, %v549
    %v817 = vpack.c.b16 %v556, %v553
    %v818 = vpack.c.b16 %v557, %v554
    %v819 = vpack.c.b16 %v558, %v555
    %v820 = vpack.c.b16 %v562, %v559
    %v821 = vpack.c.b16 %v563, %v560
    %v822 = vpack.c.b16 %v564, %v561
    %v823 = vpack.c.b16 %v568, %v565
    %v824 = vpack.c.b16 %v569, %v566
    %v825 = vpack.c.b16 %v570, %v567
    %v826 = vpack.c.b16 %v574, %v571
    %v827 = vpack.c.b16 %v575, %v572
    %v828 = vpack.c.b16 %v576, %v573
    %v829 = vpack.c.b16 %v580, %v577
    %v830 = vpack.c.b16 %v581, %v578
    %v831 = vpack.c.b16 %v582, %v579
    %v832 = vpack.c.b16 %v586, %v583
    %v833 = vpack.c.b16 %v587, %v584
    %v834 = vpack.c.b16 %v588, %v585
    %v835 = vpack.c.b16 %v592, %v589
    %v836 = vpack.c.b16 %v593, %v590
    %v837 = vpack.c.b16 %v594, %v591
    %v838 = vpack.c.b16 %v598, %v595
    %v839 = vpack.c.b16 %v599, %v596
    %v840 = vpack.c.b16 %v600, %v597
    %v841 = vpack.c.b16 %v604, %v601
    %v842 = vpack.c.b16 %v605, %v602
    %v843 = vpack.c.b16 %v606, %v603
    %v844 = vpack.c.b16 %v610, %v607
    %v845 = vpack.c.b16 %v611, %v608
    %v846 = vpack.c.b16 %v612, %v609
    %v847 = vpack.c.b16 %v616, %v613
    %v848 = vpack.c.b16 %v617, %v614
    %v849 = vpack.c.b16 %v618, %v615
    %v850 = vpack.c.b16 %v622, %v619
    %v851 = vpack.c.b16 %v623, %v620
    %v852 = vpack.c.b16 %v624, %v621
    %v853 = vpack.c.b16 %v628, %v625
    %v854 = vpack.c.b16 %v629, %v626
    %v855 = vpack.c.b16 %v630, %v627
    %v856 = vpack.c.b16 %v634, %v631
    %v857 = vpack.c.b16 %v635, %v632
    %v858 = vpack.c.b16 %v636, %v633
    %v859 = vpack.c.b16 %v640, %v637
    %v860 = vpack.c.b16 %v641, %v638
    %v861 = vpack.c.b16 %v642, %v639
    %v862 = vpack.c.b16 %v646, %v643
    %v863 = vpack.c.b16 %v647, %v644
    %v864 = vpack.c.b16 %v648, %v645
    %v865 = vpack.c.b16 %v652, %v649
    %v866 = vpack.c.b16 %v653, %v650
    %v867 = vpack.c.b16 %v654, %v651
    %v868 = vpack.c.b16 %v658, %v655
    %v869 = vpack.c.b16 %v659, %v656
    %v870 = vpack.c.b16 %v660, %v657
    %v871 = vpack.c.b16 %v664, %v661
    %v872 = vpack.c.b16 %v665, %v662
    %v873 = vpack.c.b16 %v666, %v663
    %v874 = vpack.c.b16 %v670, %v667
    %v875 = vpack.c.b16 %v671, %v668
    %v876 = vpack.c.b16 %v672, %v669
    %v877 = vpack.c.b16 %v676, %v673
    %v878 = vpack.c.b16 %v677, %v674
    %v879 = vpack.c.b16 %v678, %v675
    %v880 = vpack.c.b16 %v682, %v679
    %v881 = vpack.c.b16 %v683, %v680
    %v882 = vpack.c.b16 %v684, %v681
    %v883 = vpack.c.b16 %v688, %v685
    %v884 = vpack.c.b16 %v689, %v686
    %v885 = vpack.c.b16 %v690, %v687
    %v886 = vpack.c.b16 %v694, %v691
    %v887 = vpack.c.b16 %v695, %v692
    %v888 = vpack.c.b16 %v696, %v693
    %v889 = vpack.c.b16 %v700, %v697
    %v890 = vpack.c.b16 %v701, %v698
    %v891 = vpack.c.b16 %v702, %v699
    %v892 = vpack.c.b16 %v706, %v703
    %v893 = vpack.c.b16 %v707, %v704
    %v894 = vpack.c.b16 %v708, %v705
    %v895 = vpack.c.b16 %v712, %v709
    %v896 = vpack.c.b16 %v713, %v710
    %v897 = vpack.c.b16 %v714, %v711
    %v898 = vpack.c.b16 %v718, %v715
    %v899 = vpack.c.b16 %v719, %v716
    %v900 = vpack.c.b16 %v720, %v717
    %v901 = vpack.c.b16 %v724, %v721
    %v902 = vpack.c.b16 %v725, %v722
    %v903 = vpack.c.b16 %v726, %v723
    %v904 = vpack.c.b16 %v730, %v727
    %v905 = vpack.c.b16 %v731, %v728
    %v906 = vpack.c.b16 %v732, %v729
    %v907 = vpack.c.b16 %v736, %v733
    %v908 = vpack.c.b16 %v737, %v734
    %v909 = vpack.c.b16 %v738, %v735
    %v910 = vpack.c.b16 %v742, %v739
    %v911 = vpack.c.b16 %v743, %v740
    %v912 = vpack.c.b16 %v744, %v741
    %v913 = vpack.c.b16 %v748, %v745
    %v914 = vpack.c.b16 %v749, %v746
    %v915 = vpack.c.b16 %v750, %v747
    %v916 = vpack.c.b16 %v754, %v751
    %v917 = vpack.c.b16 %v755, %v752
    %v918 = vpack.c.b16 %v756, %v753
    %v919 = vpack.c.b16 %v760, %v757
    %v920 = vpack.c.b16 %v761, %v758
    %v921 = vpack.c.b16 %v762, %v759
    %v922 = vpack.c.b16 %v766, %v763
    %v923 = vpack.c.b16 %v767, %v764
    %v924 = vpack.c.b16 %v768, %v765
    %v925 = vpack.c.b16 %v772, %v769
    %v926 = vpack.c.b16 %v773, %v770
    %v927 = vpack.c.b16 %v774, %v771
    %v928 = vpack.c.b16 %v778, %v775
    %v929 = vpack.c.b16 %v779, %v776
    %v930 = vpack.c.b16 %v780, %v777
    %v931 = vpack.c.b16 %v784, %v781
    %v932 = vpack.c.b16 %v785, %v782
    %v933 = vpack.c.b16 %v786, %v783
    %v934 = vpack.c.b16 %v790, %v787
    %v935 = vpack.c.b16 %v791, %v788
    %v936 = vpack.c.b16 %v792, %v789
    %1081 = vmatprep.subr.bf16.mxu0 %v794
    %1082 = vmatpush1.bf16.msra.mxu0 %v793
    %1083 = vmatprep.subr.bf16.mxu0 %v797
    %1084 = vmatpush1.bf16.msra.mxu0 %v796
    %1085 = vmatprep.subr.bf16.mxu0 %v800
    %1086 = vmatpush1.bf16.msra.mxu0 %v799
    %1087 = vmatprep.subr.bf16.mxu0 %v803
    %1088 = vmatpush1.bf16.msra.mxu0 %v802
    %1089 = vmatprep.subr.bf16.mxu0 %v806
    %1090 = vmatpush1.bf16.msra.mxu0 %v805
    %1091 = vmatprep.subr.bf16.mxu0 %v809
    %1092 = vmatpush1.bf16.msra.mxu0 %v808
    %1093 = vmatprep.subr.bf16.mxu0 %v812
    %1094 = vmatpush1.bf16.msra.mxu0 %v811
    %1095 = vmatprep.subr.bf16.mxu0 %v815
    %1096 = vmatpush1.bf16.msra.mxu0 %v814
    %1097 = vmatprep.subr.bf16.mxu0 %v818
    %1098 = vmatpush1.bf16.msra.mxu0 %v817
    %1099 = vmatprep.subr.bf16.mxu0 %v821
    %1100 = vmatpush1.bf16.msra.mxu0 %v820
    %1101 = vmatprep.subr.bf16.mxu0 %v824
    %1102 = vmatpush1.bf16.msra.mxu0 %v823
    %1103 = vmatprep.subr.bf16.mxu0 %v827
    %1104 = vmatpush1.bf16.msra.mxu0 %v826
    %1105 = vmatprep.subr.bf16.mxu0 %v830
    %1106 = vmatpush1.bf16.msra.mxu0 %v829
    %1107 = vmatprep.subr.bf16.mxu0 %v833
    %1108 = vmatpush1.bf16.msra.mxu0 %v832
    %1109 = vmatprep.subr.bf16.mxu0 %v836
    %1110 = vmatpush1.bf16.msra.mxu0 %v835
    %1111 = vmatprep.subr.bf16.mxu0 %v839
    %1112 = vmatpush1.bf16.msra.mxu0 %v838
    %1113 = vmatprep.mubr.bf16.mxu0 %v302
    %1114 = vmatmul.mubr.bf16.gmra.mrb[0].mxu0 %v301
    %v1115 = vpop.f32.mrb[0].mxu0
    %v1116 = vadd.f32 %v280, %v1115
    %v1117 = vpop.f32.mrb[0].mxu0
    %v1118 = vadd.f32 %v284, %v1117
    %v1119 = vpop.f32.mrb[0].mxu0
    %v1120 = vpop.f32.mrb[0].mxu0
    %1121 = vdwg.mxu0
    %1122 = vmatprep.subr.bf16.mxu0 %v842
    %1123 = vmatpush1.bf16.msra.mxu0 %v841
    %1124 = vmatprep.subr.bf16.mxu0 %v845
    %1125 = vmatpush1.bf16.msra.mxu0 %v844
    %1126 = vmatprep.subr.bf16.mxu0 %v848
    %1127 = vmatpush1.bf16.msra.mxu0 %v847
    %1128 = vmatprep.subr.bf16.mxu0 %v851
    %1129 = vmatpush1.bf16.msra.mxu0 %v850
    %1130 = vmatprep.subr.bf16.mxu0 %v854
    %1131 = vmatpush1.bf16.msra.mxu0 %v853
    %1132 = vmatprep.subr.bf16.mxu0 %v857
    %1133 = vmatpush1.bf16.msra.mxu0 %v856
    %1134 = vmatprep.subr.bf16.mxu0 %v860
    %1135 = vmatpush1.bf16.msra.mxu0 %v859
    %1136 = vmatprep.subr.bf16.mxu0 %v863
    %1137 = vmatpush1.bf16.msra.mxu0 %v862
    %1138 = vmatprep.subr.bf16.mxu0 %v866
    %1139 = vmatpush1.bf16.msra.mxu0 %v865
    %1140 = vmatprep.subr.bf16.mxu0 %v869
    %1141 = vmatpush1.bf16.msra.mxu0 %v868
    %1142 = vmatprep.subr.bf16.mxu0 %v872
    %1143 = vmatpush1.bf16.msra.mxu0 %v871
    %1144 = vmatprep.subr.bf16.mxu0 %v875
    %1145 = vmatpush1.bf16.msra.mxu0 %v874
    %1146 = vmatprep.subr.bf16.mxu0 %v878
    %1147 = vmatpush1.bf16.msra.mxu0 %v877
    %1148 = vmatprep.subr.bf16.mxu0 %v881
    %1149 = vmatpush1.bf16.msra.mxu0 %v880
    %1150 = vmatprep.subr.bf16.mxu0 %v884
    %1151 = vmatpush1.bf16.msra.mxu0 %v883
    %1152 = vmatprep.subr.bf16.mxu0 %v887
    %1153 = vmatpush1.bf16.msra.mxu0 %v886
    %1154 = vmatprep.mubr.bf16.mxu0 %v304
    %1155 = vmatmul.mubr.bf16.gmra.mrb[0].mxu0 %v303
    %v1156 = vpop.f32.mrb[0].mxu0
    %v1157 = vadd.f32 %v1116, %v1156
    %v1158 = vpop.f32.mrb[0].mxu0
    %v1159 = vadd.f32 %v1118, %v1158
    %v1160 = vpop.f32.mrb[0].mxu0
    %v1161 = vpop.f32.mrb[0].mxu0
    %1162 = vdwg.mxu0
    %1163 = vmatprep.subr.bf16.mxu0 %v890
    %1164 = vmatpush1.bf16.msra.mxu0 %v889
    %1165 = vmatprep.subr.bf16.mxu0 %v893
    %1166 = vmatpush1.bf16.msra.mxu0 %v892
    %1167 = vmatprep.subr.bf16.mxu0 %v896
    %1168 = vmatpush1.bf16.msra.mxu0 %v895
    %1169 = vmatprep.subr.bf16.mxu0 %v899
    %1170 = vmatpush1.bf16.msra.mxu0 %v898
    %1171 = vmatprep.subr.bf16.mxu0 %v902
    %1172 = vmatpush1.bf16.msra.mxu0 %v901
    %1173 = vmatprep.subr.bf16.mxu0 %v905
    %1174 = vmatpush1.bf16.msra.mxu0 %v904
    %1175 = vmatprep.subr.bf16.mxu0 %v908
    %1176 = vmatpush1.bf16.msra.mxu0 %v907
    %1177 = vmatprep.subr.bf16.mxu0 %v911
    %1178 = vmatpush1.bf16.msra.mxu0 %v910
    %1179 = vmatprep.subr.bf16.mxu0 %v914
    %1180 = vmatpush1.bf16.msra.mxu0 %v913
    %1181 = vmatprep.subr.bf16.mxu0 %v917
    %1182 = vmatpush1.bf16.msra.mxu0 %v916
    %1183 = vmatprep.subr.bf16.mxu0 %v920
    %1184 = vmatpush1.bf16.msra.mxu0 %v919
    %1185 = vmatprep.subr.bf16.mxu0 %v923
    %1186 = vmatpush1.bf16.msra.mxu0 %v922
    %1187 = vmatprep.subr.bf16.mxu0 %v926
    %1188 = vmatpush1.bf16.msra.mxu0 %v925
    %1189 = vmatprep.subr.bf16.mxu0 %v929
    %1190 = vmatpush1.bf16.msra.mxu0 %v928
    %1191 = vmatprep.subr.bf16.mxu0 %v932
    %1192 = vmatpush1.bf16.msra.mxu0 %v931
    %1193 = vmatprep.subr.bf16.mxu0 %v935
    %1194 = vmatpush1.bf16.msra.mxu0 %v934
    %1195 = vmatprep.mubr.bf16.mxu0 %v306
    %1196 = vmatmul.mubr.bf16.gmra.mrb[0].mxu0 %v305
    %v1197 = vpop.f32.mrb[0].mxu0
    %v1198 = vadd.f32 %v1157, %v1197
    %v1199 = vpop.f32.mrb[0].mxu0
    %v1200 = vadd.f32 %v1159, %v1199
    %v1201 = vpop.f32.mrb[0].mxu0
    %v1202 = vpop.f32.mrb[0].mxu0
    %1203 = vdwg.mxu0
    %1204 = vmatprep.subr.bf16.mxu0 0
    %1205 = vmatpush1.bf16.msra.mxu0 %v795
    %1206 = vmatprep.subr.bf16.mxu0 0
    %1207 = vmatpush1.bf16.msra.mxu0 %v798
    %1208 = vmatprep.subr.bf16.mxu0 0
    %1209 = vmatpush1.bf16.msra.mxu0 %v801
    %1210 = vmatprep.subr.bf16.mxu0 0
    %1211 = vmatpush1.bf16.msra.mxu0 %v804
    %1212 = vmatprep.subr.bf16.mxu0 0
    %1213 = vmatpush1.bf16.msra.mxu0 %v807
    %1214 = vmatprep.subr.bf16.mxu0 0
    %1215 = vmatpush1.bf16.msra.mxu0 %v810
    %1216 = vmatprep.subr.bf16.mxu0 0
    %1217 = vmatpush1.bf16.msra.mxu0 %v813
    %1218 = vmatprep.subr.bf16.mxu0 0
    %1219 = vmatpush1.bf16.msra.mxu0 %v816
    %1220 = vmatprep.subr.bf16.mxu0 0
    %1221 = vmatpush1.bf16.msra.mxu0 %v819
    %1222 = vmatprep.subr.bf16.mxu0 0
    %1223 = vmatpush1.bf16.msra.mxu0 %v822
    %1224 = vmatprep.subr.bf16.mxu0 0
    %1225 = vmatpush1.bf16.msra.mxu0 %v825
    %1226 = vmatprep.subr.bf16.mxu0 0
    %1227 = vmatpush1.bf16.msra.mxu0 %v828
    %1228 = vmatprep.subr.bf16.mxu0 0
    %1229 = vmatpush1.bf16.msra.mxu0 %v831
    %1230 = vmatprep.subr.bf16.mxu0 0
    %1231 = vmatpush1.bf16.msra.mxu0 %v834
    %1232 = vmatprep.subr.bf16.mxu0 0
    %1233 = vmatpush1.bf16.msra.mxu0 %v837
    %1234 = vmatprep.subr.bf16.mxu0 0
    %1235 = vmatpush1.bf16.msra.mxu0 %v840
    %1236 = vmatprep.mubr.bf16.mxu0 %v302
    %1237 = vmatmul.mubr.bf16.gmra.mrb[0].mxu0 %v301
    %v1238 = vpop.f32.mrb[0].mxu0
    %v1239 = vadd.f32 %v288, %v1238
    %v1240 = vpop.f32.mrb[0].mxu0
    %v1241 = vpop.f32.mrb[0].mxu0
    %v1242 = vpop.f32.mrb[0].mxu0
    %1243 = vdwg.mxu0
    %1244 = vmatprep.subr.bf16.mxu0 0
    %1245 = vmatpush1.bf16.msra.mxu0 %v843
    %1246 = vmatprep.subr.bf16.mxu0 0
    %1247 = vmatpush1.bf16.msra.mxu0 %v846
    %1248 = vmatprep.subr.bf16.mxu0 0
    %1249 = vmatpush1.bf16.msra.mxu0 %v849
    %1250 = vmatprep.subr.bf16.mxu0 0
    %1251 = vmatpush1.bf16.msra.mxu0 %v852
    %1252 = vmatprep.subr.bf16.mxu0 0
    %1253 = vmatpush1.bf16.msra.mxu0 %v855
    %1254 = vmatprep.subr.bf16.mxu0 0
    %1255 = vmatpush1.bf16.msra.mxu0 %v858
    %1256 = vmatprep.subr.bf16.mxu0 0
    %1257 = vmatpush1.bf16.msra.mxu0 %v861
    %1258 = vmatprep.subr.bf16.mxu0 0
    %1259 = vmatpush1.bf16.msra.mxu0 %v864
    %1260 = vmatprep.subr.bf16.mxu0 0
    %1261 = vmatpush1.bf16.msra.mxu0 %v867
    %1262 = vmatprep.subr.bf16.mxu0 0
    %1263 = vmatpush1.bf16.msra.mxu0 %v870
    %1264 = vmatprep.subr.bf16.mxu0 0
    %1265 = vmatpush1.bf16.msra.mxu0 %v873
    %1266 = vmatprep.subr.bf16.mxu0 0
    %1267 = vmatpush1.bf16.msra.mxu0 %v876
    %1268 = vmatprep.subr.bf16.mxu0 0
    %1269 = vmatpush1.bf16.msra.mxu0 %v879
    %1270 = vmatprep.subr.bf16.mxu0 0
    %1271 = vmatpush1.bf16.msra.mxu0 %v882
    %1272 = vmatprep.subr.bf16.mxu0 0
    %1273 = vmatpush1.bf16.msra.mxu0 %v885
    %1274 = vmatprep.subr.bf16.mxu0 0
    %1275 = vmatpush1.bf16.msra.mxu0 %v888
    %1276 = vmatprep.mubr.bf16.mxu0 %v304
    %1277 = vmatmul.mubr.bf16.gmra.mrb[0].mxu0 %v303
    %v1278 = vpop.f32.mrb[0].mxu0
    %v1279 = vadd.f32 %v1239, %v1278
    %v1280 = vpop.f32.mrb[0].mxu0
    %v1281 = vpop.f32.mrb[0].mxu0
    %v1282 = vpop.f32.mrb[0].mxu0
    %1283 = vdwg.mxu0
    %1284 = vmatprep.subr.bf16.mxu0 0
    %1285 = vmatpush1.bf16.msra.mxu0 %v891
    %1286 = vmatprep.subr.bf16.mxu0 0
    %1287 = vmatpush1.bf16.msra.mxu0 %v894
    %1288 = vmatprep.subr.bf16.mxu0 0
    %1289 = vmatpush1.bf16.msra.mxu0 %v897
    %1290 = vmatprep.subr.bf16.mxu0 0
    %1291 = vmatpush1.bf16.msra.mxu0 %v900
    %1292 = vmatprep.subr.bf16.mxu0 0
    %1293 = vmatpush1.bf16.msra.mxu0 %v903
    %1294 = vmatprep.subr.bf16.mxu0 0
    %1295 = vmatpush1.bf16.msra.mxu0 %v906
    %1296 = vmatprep.subr.bf16.mxu0 0
    %1297 = vmatpush1.bf16.msra.mxu0 %v909
    %1298 = vmatprep.subr.bf16.mxu0 0
    %1299 = vmatpush1.bf16.msra.mxu0 %v912
    %1300 = vmatprep.subr.bf16.mxu0 0
    %1301 = vmatpush1.bf16.msra.mxu0 %v915
    %1302 = vmatprep.subr.bf16.mxu0 0
    %1303 = vmatpush1.bf16.msra.mxu0 %v918
    %1304 = vmatprep.subr.bf16.mxu0 0
    %1305 = vmatpush1.bf16.msra.mxu0 %v921
    %1306 = vmatprep.subr.bf16.mxu0 0
    %1307 = vmatpush1.bf16.msra.mxu0 %v924
    %1308 = vmatprep.subr.bf16.mxu0 0
    %1309 = vmatpush1.bf16.msra.mxu0 %v927
    %1310 = vmatprep.subr.bf16.mxu0 0
    %1311 = vmatpush1.bf16.msra.mxu0 %v930
    %1312 = vmatprep.subr.bf16.mxu0 0
    %1313 = vmatpush1.bf16.msra.mxu0 %v933
    %1314 = vmatprep.subr.bf16.mxu0 0
    %1315 = vmatpush1.bf16.msra.mxu0 %v936
    %1316 = vmatprep.mubr.bf16.mxu0 %v306
    %1317 = vmatmul.mubr.bf16.gmra.mrb[0].mxu0 %v305
    %v1318 = vpop.f32.mrb[0].mxu0
    %v1319 = vadd.f32 %v1279, %v1318
    %v1320 = vpop.f32.mrb[0].mxu0
    %v1321 = vpop.f32.mrb[0].mxu0
    %v1322 = vpop.f32.mrb[0].mxu0
    %1323 = vdwg.mxu0
    %v1324 = vmul.f32 %v1198, 0.5
    %v1325 = vmul.f32 %v1200, 0.5
    %v1326 = vmul.f32 %v1319, 0.5
    %v1327 = vmul.f32 %v1198, %v1198
    %v1328 = vmul.f32 %v1200, %v1200
    %v1329 = vmul.f32 %v1319, %v1319
    %v1330 = vmul.f32 %v1327, %v1198
    %v1331 = vmul.f32 %v1328, %v1200
    %v1332 = vmul.f32 %v1329, %v1319
    %v1333 = vmul.f32 %v1330, 0.044715
    %v1334 = vmul.f32 %v1331, 0.044715
    %v1335 = vmul.f32 %v1332, 0.044715
    %v1336 = vadd.f32 %v1198, %v1333
    %v1337 = vadd.f32 %v1200, %v1334
    %v1338 = vadd.f32 %v1319, %v1335
    %v1339 = vmul.f32 %v1336, 0.7978846
    %v1340 = vmul.f32 %v1337, 0.7978846
    %v1341 = vmul.f32 %v1338, 0.7978846
    %v1342 = vtanh.pop %v1339
    %v1343 = vtanh.pop %v1340
    %v1344 = vtanh.pop %v1341
    %v1345 = vadd.f32 %v1342, 1.0
    %v1346 = vadd.f32 %v1343, 1.0
    %v1347 = vadd.f32 %v1344, 1.0
    %v1348 = vmul.f32 %v1324, %v1345
    %v1349 = vmul.f32 %v1325, %v1346
    %v1350 = vmul.f32 %v1326, %v1347
    %v1351 = vpack.c.bf16 %v1348, %v1348
    %v1352 = vpack.c.bf16 %v1349, %v1349
    %v1353 = vpack.c.bf16 %v1350, %v1350
    %v1354 = vld [vmem:[#allocation6] sm:$0xff]
    %v1355 = vld [vmem:[#allocation6 + $0x8] sm:$0xf]
    %v1356 = vld [vmem:[#allocation6 + $0xc] sm:$0xff]
    %v1357 = vld [vmem:[#allocation6 + $0x14] sm:$0xf]
    %v1358 = vld [vmem:[#allocation6 + $0x18] sm:$0xff]
    %v1359 = vld [vmem:[#allocation6 + $0x20] sm:$0xf]
    %v1360 = vld [vmem:[#allocation6 + $0x24] sm:$0xff]
    %v1361 = vld [vmem:[#allocation6 + $0x2c] sm:$0xf]
    %v1362 = vld [vmem:[#allocation6 + $0x30] sm:$0xff]
    %v1363 = vld [vmem:[#allocation6 + $0x38] sm:$0xf]
    %v1364 = vld [vmem:[#allocation6 + $0x3c] sm:$0xff]
    %v1365 = vld [vmem:[#allocation6 + $0x44] sm:$0xf]
    %v1366 = vld [vmem:[#allocation6 + $0x48] sm:$0xff]
    %v1367 = vld [vmem:[#allocation6 + $0x50] sm:$0xf]
    %v1368 = vld [vmem:[#allocation6 + $0x54] sm:$0xff]
    %v1369 = vld [vmem:[#allocation6 + $0x5c] sm:$0xf]
    %v1370 = vld [vmem:[#allocation6 + $0x60] sm:$0xff]
    %v1371 = vld [vmem:[#allocation6 + $0x68] sm:$0xf]
    %v1372 = vld [vmem:[#allocation6 + $0x6c] sm:$0xff]
    %v1373 = vld [vmem:[#allocation6 + $0x74] sm:$0xf]
    %v1374 = vld [vmem:[#allocation6 + $0x78] sm:$0xff]
    %v1375 = vld [vmem:[#allocation6 + $0x80] sm:$0xf]
    %v1376 = vld [vmem:[#allocation6 + $0x84] sm:$0xff]
    %v1377 = vld [vmem:[#allocation6 + $0x8c] sm:$0xf]
    %v1378 = vld [vmem:[#allocation6 + $0x90] sm:$0xff]
    %v1379 = vld [vmem:[#allocation6 + $0x98] sm:$0xf]
    %v1380 = vld [vmem:[#allocation6 + $0x9c] sm:$0xff]
    %v1381 = vld [vmem:[#allocation6 + $0xa4] sm:$0xf]
    %v1382 = vld [vmem:[#allocation6 + $0xa8] sm:$0xff]
    %v1383 = vld [vmem:[#allocation6 + $0xb0] sm:$0xf]
    %v1384 = vld [vmem:[#allocation6 + $0xb4] sm:$0xff]
    %v1385 = vld [vmem:[#allocation6 + $0xbc] sm:$0xf]
    %v1386 = vld [vmem:[#allocation6 + $0xc0] sm:$0xff]
    %v1387 = vld [vmem:[#allocation6 + $0xc8] sm:$0xf]
    %v1388 = vld [vmem:[#allocation6 + $0xcc] sm:$0xff]
    %v1389 = vld [vmem:[#allocation6 + $0xd4] sm:$0xf]
    %v1390 = vld [vmem:[#allocation6 + $0xd8] sm:$0xff]
    %v1391 = vld [vmem:[#allocation6 + $0xe0] sm:$0xf]
    %v1392 = vld [vmem:[#allocation6 + $0xe4] sm:$0xff]
    %v1393 = vld [vmem:[#allocation6 + $0xec] sm:$0xf]
    %v1394 = vld [vmem:[#allocation6 + $0xf0] sm:$0xff]
    %v1395 = vld [vmem:[#allocation6 + $0xf8] sm:$0xf]
    %v1396 = vld [vmem:[#allocation6 + $0xfc] sm:$0xff]
    %v1397 = vld [vmem:[#allocation6 + $0x104] sm:$0xf]
    %v1398 = vld [vmem:[#allocation6 + $0x108] sm:$0xff]
    %v1399 = vld [vmem:[#allocation6 + $0x110] sm:$0xf]
    %v1400 = vld [vmem:[#allocation6 + $0x114] sm:$0xff]
    %v1401 = vld [vmem:[#allocation6 + $0x11c] sm:$0xf]
    %v1402 = vld [vmem:[#allocation6 + $0x120] sm:$0xff]
    %v1403 = vld [vmem:[#allocation6 + $0x128] sm:$0xf]
    %v1404 = vld [vmem:[#allocation6 + $0x12c] sm:$0xff]
    %v1405 = vld [vmem:[#allocation6 + $0x134] sm:$0xf]
    %v1406 = vld [vmem:[#allocation6 + $0x138] sm:$0xff]
    %v1407 = vld [vmem:[#allocation6 + $0x140] sm:$0xf]
    %v1408 = vld [vmem:[#allocation6 + $0x144] sm:$0xff]
    %v1409 = vld [vmem:[#allocation6 + $0x14c] sm:$0xf]
    %v1410 = vld [vmem:[#allocation6 + $0x150] sm:$0xff]
    %v1411 = vld [vmem:[#allocation6 + $0x158] sm:$0xf]
    %v1412 = vld [vmem:[#allocation6 + $0x15c] sm:$0xff]
    %v1413 = vld [vmem:[#allocation6 + $0x164] sm:$0xf]
    %v1414 = vld [vmem:[#allocation6 + $0x168] sm:$0xff]
    %v1415 = vld [vmem:[#allocation6 + $0x170] sm:$0xf]
    %v1416 = vld [vmem:[#allocation6 + $0x174] sm:$0xff]
    %v1417 = vld [vmem:[#allocation6 + $0x17c] sm:$0xf]
    %v1418 = vld [vmem:[#allocation6 + $0x180] sm:$0xff]
    %v1419 = vld [vmem:[#allocation6 + $0x188] sm:$0xf]
    %v1420 = vld [vmem:[#allocation6 + $0x18c] sm:$0xff]
    %v1421 = vld [vmem:[#allocation6 + $0x194] sm:$0xf]
    %v1422 = vld [vmem:[#allocation6 + $0x198] sm:$0xff]
    %v1423 = vld [vmem:[#allocation6 + $0x1a0] sm:$0xf]
    %v1424 = vld [vmem:[#allocation6 + $0x1a4] sm:$0xff]
    %v1425 = vld [vmem:[#allocation6 + $0x1ac] sm:$0xf]
    %v1426 = vld [vmem:[#allocation6 + $0x1b0] sm:$0xff]
    %v1427 = vld [vmem:[#allocation6 + $0x1b8] sm:$0xf]
    %v1428 = vld [vmem:[#allocation6 + $0x1bc] sm:$0xff]
    %v1429 = vld [vmem:[#allocation6 + $0x1c4] sm:$0xf]
    %v1430 = vld [vmem:[#allocation6 + $0x1c8] sm:$0xff]
    %v1431 = vld [vmem:[#allocation6 + $0x1d0] sm:$0xf]
    %v1432 = vld [vmem:[#allocation6 + $0x1d4] sm:$0xff]
    %v1433 = vld [vmem:[#allocation6 + $0x1dc] sm:$0xf]
    %v1434 = vld [vmem:[#allocation6 + $0x1e0] sm:$0xff]
    %v1435 = vld [vmem:[#allocation6 + $0x1e8] sm:$0xf]
    %v1436 = vld [vmem:[#allocation6 + $0x1ec] sm:$0xff]
    %v1437 = vld [vmem:[#allocation6 + $0x1f4] sm:$0xf]
    %v1438 = vld [vmem:[#allocation6 + $0x1f8] sm:$0xff]
    %v1439 = vld [vmem:[#allocation6 + $0x200] sm:$0xf]
    %v1440 = vld [vmem:[#allocation6 + $0x204] sm:$0xff]
    %v1441 = vld [vmem:[#allocation6 + $0x20c] sm:$0xf]
    %v1442 = vld [vmem:[#allocation6 + $0x210] sm:$0xff]
    %v1443 = vld [vmem:[#allocation6 + $0x218] sm:$0xf]
    %v1444 = vld [vmem:[#allocation6 + $0x21c] sm:$0xff]
    %v1445 = vld [vmem:[#allocation6 + $0x224] sm:$0xf]
    %v1446 = vld [vmem:[#allocation6 + $0x228] sm:$0xff]
    %v1447 = vld [vmem:[#allocation6 + $0x230] sm:$0xf]
    %v1448 = vld [vmem:[#allocation6 + $0x234] sm:$0xff]
    %v1449 = vld [vmem:[#allocation6 + $0x23c] sm:$0xf]
    %v1450 = vld [vmem:[%s4] sm:$0x7]
    %v1452 = vlaneseq
    %v1453 = vshrl.u32 %v1452, 7
    %v1454 = vsub.s32 0, %v1453
    %v1455 = vrot.slane %v1450, %v1454
    %v1456 = vlaneseq
    %v1457 = vshrl.u32 %v1456, 7
    %v1458 = vsub.s32 1, %v1457
    %v1459 = vrot.slane %v1450, %v1458
    %v1460 = vlaneseq
    %v1461 = vshrl.u32 %v1460, 7
    %v1462 = vsub.s32 2, %v1461
    %v1463 = vrot.slane %v1450, %v1462
    %v1563 = vunpack.c.l.b16 %v1354
    %v1564 = vunpack.c.h.b16 %v1354
    %v1565 = vunpack.c.l.b16 %v1355
    %v1566 = vunpack.c.l.b16 %v1356
    %v1567 = vunpack.c.h.b16 %v1356
    %v1568 = vunpack.c.l.b16 %v1357
    %v1569 = vunpack.c.l.b16 %v1358
    %v1570 = vunpack.c.h.b16 %v1358
    %v1571 = vunpack.c.l.b16 %v1359
    %v1572 = vunpack.c.l.b16 %v1360
    %v1573 = vunpack.c.h.b16 %v1360
    %v1574 = vunpack.c.l.b16 %v1361
    %v1575 = vunpack.c.l.b16 %v1362
    %v1576 = vunpack.c.h.b16 %v1362
    %v1577 = vunpack.c.l.b16 %v1363
    %v1578 = vunpack.c.l.b16 %v1364
    %v1579 = vunpack.c.h.b16 %v1364
    %v1580 = vunpack.c.l.b16 %v1365
    %v1581 = vunpack.c.l.b16 %v1366
    %v1582 = vunpack.c.h.b16 %v1366
    %v1583 = vunpack.c.l.b16 %v1367
    %v1584 = vunpack.c.l.b16 %v1368
    %v1585 = vunpack.c.h.b16 %v1368
    %v1586 = vunpack.c.l.b16 %v1369
    %v1587 = vunpack.c.l.b16 %v1370
    %v1588 = vunpack.c.h.b16 %v1370
    %v1589 = vunpack.c.l.b16 %v1371
    %v1590 = vunpack.c.l.b16 %v1372
    %v1591 = vunpack.c.h.b16 %v1372
    %v1592 = vunpack.c.l.b16 %v1373
    %v1593 = vunpack.c.l.b16 %v1374
    %v1594 = vunpack.c.h.b16 %v1374
    %v1595 = vunpack.c.l.b16 %v1375
    %v1596 = vunpack.c.l.b16 %v1376
    %v1597 = vunpack.c.h.b16 %v1376
    %v1598 = vunpack.c.l.b16 %v1377
    %v1599 = vunpack.c.l.b16 %v1378
    %v1600 = vunpack.c.h.b16 %v1378
    %v1601 = vunpack.c.l.b16 %v1379
    %v1602 = vunpack.c.l.b16 %v1380
    %v1603 = vunpack.c.h.b16 %v1380
    %v1604 = vunpack.c.l.b16 %v1381
    %v1605 = vunpack.c.l.b16 %v1382
    %v1606 = vunpack.c.h.b16 %v1382
    %v1607 = vunpack.c.l.b16 %v1383
    %v1608 = vunpack.c.l.b16 %v1384
    %v1609 = vunpack.c.h.b16 %v1384
    %v1610 = vunpack.c.l.b16 %v1385
    %v1611 = vunpack.c.l.b16 %v1386
    %v1612 = vunpack.c.h.b16 %v1386
    %v1613 = vunpack.c.l.b16 %v1387
    %v1614 = vunpack.c.l.b16 %v1388
    %v1615 = vunpack.c.h.b16 %v1388
    %v1616 = vunpack.c.l.b16 %v1389
    %v1617 = vunpack.c.l.b16 %v1390
    %v1618 = vunpack.c.h.b16 %v1390
    %v1619 = vunpack.c.l.b16 %v1391
    %v1620 = vunpack.c.l.b16 %v1392
    %v1621 = vunpack.c.h.b16 %v1392
    %v1622 = vunpack.c.l.b16 %v1393
    %v1623 = vunpack.c.l.b16 %v1394
    %v1624 = vunpack.c.h.b16 %v1394
    %v1625 = vunpack.c.l.b16 %v1395
    %v1626 = vunpack.c.l.b16 %v1396
    %v1627 = vunpack.c.h.b16 %v1396
    %v1628 = vunpack.c.l.b16 %v1397
    %v1629 = vunpack.c.l.b16 %v1398
    %v1630 = vunpack.c.h.b16 %v1398
    %v1631 = vunpack.c.l.b16 %v1399
    %v1632 = vunpack.c.l.b16 %v1400
    %v1633 = vunpack.c.h.b16 %v1400
    %v1634 = vunpack.c.l.b16 %v1401
    %v1635 = vunpack.c.l.b16 %v1402
    %v1636 = vunpack.c.h.b16 %v1402
    %v1637 = vunpack.c.l.b16 %v1403
    %v1638 = vunpack.c.l.b16 %v1404
    %v1639 = vunpack.c.h.b16 %v1404
    %v1640 = vunpack.c.l.b16 %v1405
    %v1641 = vunpack.c.l.b16 %v1406
    %v1642 = vunpack.c.h.b16 %v1406
    %v1643 = vunpack.c.l.b16 %v1407
    %v1644 = vunpack.c.l.b16 %v1408
    %v1645 = vunpack.c.h.b16 %v1408
    %v1646 = vunpack.c.l.b16 %v1409
    %v1647 = vunpack.c.l.b16 %v1410
    %v1648 = vunpack.c.h.b16 %v1410
    %v1649 = vunpack.c.l.b16 %v1411
    %v1650 = vunpack.c.l.b16 %v1412
    %v1651 = vunpack.c.h.b16 %v1412
    %v1652 = vunpack.c.l.b16 %v1413
    %v1653 = vunpack.c.l.b16 %v1414
    %v1654 = vunpack.c.h.b16 %v1414
    %v1655 = vunpack.c.l.b16 %v1415
    %v1656 = vunpack.c.l.b16 %v1416
    %v1657 = vunpack.c.h.b16 %v1416
    %v1658 = vunpack.c.l.b16 %v1417
    %v1659 = vunpack.c.l.b16 %v1418
    %v1660 = vunpack.c.h.b16 %v1418
    %v1661 = vunpack.c.l.b16 %v1419
    %v1662 = vunpack.c.l.b16 %v1420
    %v1663 = vunpack.c.h.b16 %v1420
    %v1664 = vunpack.c.l.b16 %v1421
    %v1665 = vunpack.c.l.b16 %v1422
    %v1666 = vunpack.c.h.b16 %v1422
    %v1667 = vunpack.c.l.b16 %v1423
    %v1668 = vunpack.c.l.b16 %v1424
    %v1669 = vunpack.c.h.b16 %v1424
    %v1670 = vunpack.c.l.b16 %v1425
    %v1671 = vunpack.c.l.b16 %v1426
    %v1672 = vunpack.c.h.b16 %v1426
    %v1673 = vunpack.c.l.b16 %v1427
    %v1674 = vunpack.c.l.b16 %v1428
    %v1675 = vunpack.c.h.b16 %v1428
    %v1676 = vunpack.c.l.b16 %v1429
    %v1677 = vunpack.c.l.b16 %v1430
    %v1678 = vunpack.c.h.b16 %v1430
    %v1679 = vunpack.c.l.b16 %v1431
    %v1680 = vunpack.c.l.b16 %v1432
    %v1681 = vunpack.c.h.b16 %v1432
    %v1682 = vunpack.c.l.b16 %v1433
    %v1683 = vunpack.c.l.b16 %v1434
    %v1684 = vunpack.c.h.b16 %v1434
    %v1685 = vunpack.c.l.b16 %v1435
    %v1686 = vunpack.c.l.b16 %v1436
    %v1687 = vunpack.c.h.b16 %v1436
    %v1688 = vunpack.c.l.b16 %v1437
    %v1689 = vunpack.c.l.b16 %v1438
    %v1690 = vunpack.c.h.b16 %v1438
    %v1691 = vunpack.c.l.b16 %v1439
    %v1692 = vunpack.c.l.b16 %v1440
    %v1693 = vunpack.c.h.b16 %v1440
    %v1694 = vunpack.c.l.b16 %v1441
    %v1695 = vunpack.c.l.b16 %v1442
    %v1696 = vunpack.c.h.b16 %v1442
    %v1697 = vunpack.c.l.b16 %v1443
    %v1698 = vunpack.c.l.b16 %v1444
    %v1699 = vunpack.c.h.b16 %v1444
    %v1700 = vunpack.c.l.b16 %v1445
    %v1701 = vunpack.c.l.b16 %v1446
    %v1702 = vunpack.c.h.b16 %v1446
    %v1703 = vunpack.c.l.b16 %v1447
    %v1704 = vunpack.c.l.b16 %v1448
    %v1705 = vunpack.c.h.b16 %v1448
    %v1706 = vunpack.c.l.b16 %v1449
    %v1707 = vpack.c.b16 %v1566, %v1563
    %v1708 = vpack.c.b16 %v1567, %v1564
    %v1709 = vpack.c.b16 %v1568, %v1565
    %v1710 = vpack.c.b16 %v1572, %v1569
    %v1711 = vpack.c.b16 %v1573, %v1570
    %v1712 = vpack.c.b16 %v1574, %v1571
    %v1713 = vpack.c.b16 %v1578, %v1575
    %v1714 = vpack.c.b16 %v1579, %v1576
    %v1715 = vpack.c.b16 %v1580, %v1577
    %v1716 = vpack.c.b16 %v1584, %v1581
    %v1717 = vpack.c.b16 %v1585, %v1582
    %v1718 = vpack.c.b16 %v1586, %v1583
    %v1719 = vpack.c.b16 %v1590, %v1587
    %v1720 = vpack.c.b16 %v1591, %v1588
    %v1721 = vpack.c.b16 %v1592, %v1589
    %v1722 = vpack.c.b16 %v1596, %v1593
    %v1723 = vpack.c.b16 %v1597, %v1594
    %v1724 = vpack.c.b16 %v1598, %v1595
    %v1725 = vpack.c.b16 %v1602, %v1599
    %v1726 = vpack.c.b16 %v1603, %v1600
    %v1727 = vpack.c.b16 %v1604, %v1601
    %v1728 = vpack.c.b16 %v1608, %v1605
    %v1729 = vpack.c.b16 %v1609, %v1606
    %v1730 = vpack.c.b16 %v1610, %v1607
    %v1731 = vpack.c.b16 %v1614, %v1611
    %v1732 = vpack.c.b16 %v1615, %v1612
    %v1733 = vpack.c.b16 %v1616, %v1613
    %v1734 = vpack.c.b16 %v1620, %v1617
    %v1735 = vpack.c.b16 %v1621, %v1618
    %v1736 = vpack.c.b16 %v1622, %v1619
    %v1737 = vpack.c.b16 %v1626, %v1623
    %v1738 = vpack.c.b16 %v1627, %v1624
    %v1739 = vpack.c.b16 %v1628, %v1625
    %v1740 = vpack.c.b16 %v1632, %v1629
    %v1741 = vpack.c.b16 %v1633, %v1630
    %v1742 = vpack.c.b16 %v1634, %v1631
    %v1743 = vpack.c.b16 %v1638, %v1635
    %v1744 = vpack.c.b16 %v1639, %v1636
    %v1745 = vpack.c.b16 %v1640, %v1637
    %v1746 = vpack.c.b16 %v1644, %v1641
    %v1747 = vpack.c.b16 %v1645, %v1642
    %v1748 = vpack.c.b16 %v1646, %v1643
    %v1749 = vpack.c.b16 %v1650, %v1647
    %v1750 = vpack.c.b16 %v1651, %v1648
    %v1751 = vpack.c.b16 %v1652, %v1649
    %v1752 = vpack.c.b16 %v1656, %v1653
    %v1753 = vpack.c.b16 %v1657, %v1654
    %v1754 = vpack.c.b16 %v1658, %v1655
    %v1755 = vpack.c.b16 %v1662, %v1659
    %v1756 = vpack.c.b16 %v1663, %v1660
    %v1757 = vpack.c.b16 %v1664, %v1661
    %v1758 = vpack.c.b16 %v1668, %v1665
    %v1759 = vpack.c.b16 %v1669, %v1666
    %v1760 = vpack.c.b16 %v1670, %v1667
    %v1761 = vpack.c.b16 %v1674, %v1671
    %v1762 = vpack.c.b16 %v1675, %v1672
    %v1763 = vpack.c.b16 %v1676, %v1673
    %v1764 = vpack.c.b16 %v1680, %v1677
    %v1765 = vpack.c.b16 %v1681, %v1678
    %v1766 = vpack.c.b16 %v1682, %v1679
    %v1767 = vpack.c.b16 %v1686, %v1683
    %v1768 = vpack.c.b16 %v1687, %v1684
    %v1769 = vpack.c.b16 %v1688, %v1685
    %v1770 = vpack.c.b16 %v1692, %v1689
    %v1771 = vpack.c.b16 %v1693, %v1690
    %v1772 = vpack.c.b16 %v1694, %v1691
    %v1773 = vpack.c.b16 %v1698, %v1695
    %v1774 = vpack.c.b16 %v1699, %v1696
    %v1775 = vpack.c.b16 %v1700, %v1697
    %v1776 = vpack.c.b16 %v1704, %v1701
    %v1777 = vpack.c.b16 %v1705, %v1702
    %v1778 = vpack.c.b16 %v1706, %v1703
    %1851 = vmatprep.subr.bf16.mxu0 %v1708
    %1852 = vmatpush1.bf16.msra.mxu0 %v1707
    %1853 = vmatprep.subr.bf16.mxu0 %v1711
    %1854 = vmatpush1.bf16.msra.mxu0 %v1710
    %1855 = vmatprep.subr.bf16.mxu0 %v1714
    %1856 = vmatpush1.bf16.msra.mxu0 %v1713
    %1857 = vmatprep.subr.bf16.mxu0 %v1717
    %1858 = vmatpush1.bf16.msra.mxu0 %v1716
    %1859 = vmatprep.subr.bf16.mxu0 %v1720
    %1860 = vmatpush1.bf16.msra.mxu0 %v1719
    %1861 = vmatprep.subr.bf16.mxu0 %v1723
    %1862 = vmatpush1.bf16.msra.mxu0 %v1722
    %1863 = vmatprep.subr.bf16.mxu0 %v1726
    %1864 = vmatpush1.bf16.msra.mxu0 %v1725
    %1865 = vmatprep.subr.bf16.mxu0 %v1729
    %1866 = vmatpush1.bf16.msra.mxu0 %v1728
    %1867 = vmatprep.subr.bf16.mxu0 %v1732
    %1868 = vmatpush1.bf16.msra.mxu0 %v1731
    %1869 = vmatprep.subr.bf16.mxu0 %v1735
    %1870 = vmatpush1.bf16.msra.mxu0 %v1734
    %1871 = vmatprep.subr.bf16.mxu0 %v1738
    %1872 = vmatpush1.bf16.msra.mxu0 %v1737
    %1873 = vmatprep.subr.bf16.mxu0 %v1741
    %1874 = vmatpush1.bf16.msra.mxu0 %v1740
    %1875 = vmatprep.subr.bf16.mxu0 %v1744
    %1876 = vmatpush1.bf16.msra.mxu0 %v1743
    %1877 = vmatprep.subr.bf16.mxu0 %v1747
    %1878 = vmatpush1.bf16.msra.mxu0 %v1746
    %1879 = vmatprep.subr.bf16.mxu0 %v1750
    %1880 = vmatpush1.bf16.msra.mxu0 %v1749
    %1881 = vmatprep.subr.bf16.mxu0 %v1753
    %1882 = vmatpush1.bf16.msra.mxu0 %v1752
    %1883 = vmatprep.mubr.bf16.mxu0 %v1352
    %1884 = vmatmul.mubr.bf16.gmra.mrb[0].mxu0 %v1351
    %v1885 = vpop.f32.mrb[0].mxu0
    %v1886 = vadd.f32 %v1455, %v1885
    %v1887 = vpop.f32.mrb[0].mxu0
    %v1888 = vadd.f32 %v1459, %v1887
    %v1889 = vpop.f32.mrb[0].mxu0
    %v1890 = vpop.f32.mrb[0].mxu0
    %1891 = vdwg.mxu0
    %1892 = vmatprep.subr.bf16.mxu0 %v1756
    %1893 = vmatpush1.bf16.msra.mxu0 %v1755
    %1894 = vmatprep.subr.bf16.mxu0 %v1759
    %1895 = vmatpush1.bf16.msra.mxu0 %v1758
    %1896 = vmatprep.subr.bf16.mxu0 %v1762
    %1897 = vmatpush1.bf16.msra.mxu0 %v1761
    %1898 = vmatprep.subr.bf16.mxu0 %v1765
    %1899 = vmatpush1.bf16.msra.mxu0 %v1764
    %1900 = vmatprep.subr.bf16.mxu0 %v1768
    %1901 = vmatpush1.bf16.msra.mxu0 %v1767
    %1902 = vmatprep.subr.bf16.mxu0 %v1771
    %1903 = vmatpush1.bf16.msra.mxu0 %v1770
    %1904 = vmatprep.subr.bf16.mxu0 %v1774
    %1905 = vmatpush1.bf16.msra.mxu0 %v1773
    %1906 = vmatprep.subr.bf16.mxu0 %v1777
    %1907 = vmatpush1.bf16.msra.mxu0 %v1776
    %1908 = vmatprep.subr.bf16.mxu0 0
    %1909 = vmatpush1.bf16.msra.mxu0 0
    %1910 = vmatprep.subr.bf16.mxu0 0
    %1911 = vmatpush1.bf16.msra.mxu0 0
    %1912 = vmatprep.subr.bf16.mxu0 0
    %1913 = vmatpush1.bf16.msra.mxu0 0
    %1914 = vmatprep.subr.bf16.mxu0 0
    %1915 = vmatpush1.bf16.msra.mxu0 0
    %1916 = vmatprep.subr.bf16.mxu0 0
    %1917 = vmatpush1.bf16.msra.mxu0 0
    %1918 = vmatprep.subr.bf16.mxu0 0
    %1919 = vmatpush1.bf16.msra.mxu0 0
    %1920 = vmatprep.subr.bf16.mxu0 0
    %1921 = vmatpush1.bf16.msra.mxu0 0
    %1922 = vmatprep.subr.bf16.mxu0 0
    %1923 = vmatpush1.bf16.msra.mxu0 0
    %1924 = vmatprep.mubr.bf16.mxu0 0
    %1925 = vmatmul.mubr.bf16.gmra.mrb[0].mxu0 %v1353
    %v1926 = vpop.f32.mrb[0].mxu0
    %v1927 = vadd.f32 %v1886, %v1926
    %v1928 = vpop.f32.mrb[0].mxu0
    %v1929 = vadd.f32 %v1888, %v1928
    %v1930 = vpop.f32.mrb[0].mxu0
    %v1931 = vpop.f32.mrb[0].mxu0
    %1932 = vdwg.mxu0
    %1933 = vmatprep.subr.bf16.mxu0 0
    %1934 = vmatpush1.bf16.msra.mxu0 %v1709
    %1935 = vmatprep.subr.bf16.mxu0 0
    %1936 = vmatpush1.bf16.msra.mxu0 %v1712
    %1937 = vmatprep.subr.bf16.mxu0 0
    %1938 = vmatpush1.bf16.msra.mxu0 %v1715
    %1939 = vmatprep.subr.bf16.mxu0 0
    %1940 = vmatpush1.bf16.msra.mxu0 %v1718
    %1941 = vmatprep.subr.bf16.mxu0 0
    %1942 = vmatpush1.bf16.msra.mxu0 %v1721
    %1943 = vmatprep.subr.bf16.mxu0 0
    %1944 = vmatpush1.bf16.msra.mxu0 %v1724
    %1945 = vmatprep.subr.bf16.mxu0 0
    %1946 = vmatpush1.bf16.msra.mxu0 %v1727
    %1947 = vmatprep.subr.bf16.mxu0 0
    %1948 = vmatpush1.bf16.msra.mxu0 %v1730
    %1949 = vmatprep.subr.bf16.mxu0 0
    %1950 = vmatpush1.bf16.msra.mxu0 %v1733
    %1951 = vmatprep.subr.bf16.mxu0 0
    %1952 = vmatpush1.bf16.msra.mxu0 %v1736
    %1953 = vmatprep.subr.bf16.mxu0 0
    %1954 = vmatpush1.bf16.msra.mxu0 %v1739
    %1955 = vmatprep.subr.bf16.mxu0 0
    %1956 = vmatpush1.bf16.msra.mxu0 %v1742
    %1957 = vmatprep.subr.bf16.mxu0 0
    %1958 = vmatpush1.bf16.msra.mxu0 %v1745
    %1959 = vmatprep.subr.bf16.mxu0 0
    %1960 = vmatpush1.bf16.msra.mxu0 %v1748
    %1961 = vmatprep.subr.bf16.mxu0 0
    %1962 = vmatpush1.bf16.msra.mxu0 %v1751
    %1963 = vmatprep.subr.bf16.mxu0 0
    %1964 = vmatpush1.bf16.msra.mxu0 %v1754
    %1965 = vmatprep.mubr.bf16.mxu0 %v1352
    %1966 = vmatmul.mubr.bf16.gmra.mrb[0].mxu0 %v1351
    %v1967 = vpop.f32.mrb[0].mxu0
    %v1968 = vadd.f32 %v1463, %v1967
    %v1969 = vpop.f32.mrb[0].mxu0
    %v1970 = vpop.f32.mrb[0].mxu0
    %v1971 = vpop.f32.mrb[0].mxu0
    %1972 = vdwg.mxu0
    %1973 = vmatprep.subr.bf16.mxu0 0
    %1974 = vmatpush1.bf16.msra.mxu0 %v1757
    %1975 = vmatprep.subr.bf16.mxu0 0
    %1976 = vmatpush1.bf16.msra.mxu0 %v1760
    %1977 = vmatprep.subr.bf16.mxu0 0
    %1978 = vmatpush1.bf16.msra.mxu0 %v1763
    %1979 = vmatprep.subr.bf16.mxu0 0
    %1980 = vmatpush1.bf16.msra.mxu0 %v1766
    %1981 = vmatprep.subr.bf16.mxu0 0
    %1982 = vmatpush1.bf16.msra.mxu0 %v1769
    %1983 = vmatprep.subr.bf16.mxu0 0
    %1984 = vmatpush1.bf16.msra.mxu0 %v1772
    %1985 = vmatprep.subr.bf16.mxu0 0
    %1986 = vmatpush1.bf16.msra.mxu0 %v1775
    %1987 = vmatprep.subr.bf16.mxu0 0
    %1988 = vmatpush1.bf16.msra.mxu0 %v1778
    %1989 = vmatprep.subr.bf16.mxu0 0
    %1990 = vmatpush1.bf16.msra.mxu0 0
    %1991 = vmatprep.subr.bf16.mxu0 0
    %1992 = vmatpush1.bf16.msra.mxu0 0
    %1993 = vmatprep.subr.bf16.mxu0 0
    %1994 = vmatpush1.bf16.msra.mxu0 0
    %1995 = vmatprep.subr.bf16.mxu0 0
    %1996 = vmatpush1.bf16.msra.mxu0 0
    %1997 = vmatprep.subr.bf16.mxu0 0
    %1998 = vmatpush1.bf16.msra.mxu0 0
    %1999 = vmatprep.subr.bf16.mxu0 0
    %2000 = vmatpush1.bf16.msra.mxu0 0
    %2001 = vmatprep.subr.bf16.mxu0 0
    %2002 = vmatpush1.bf16.msra.mxu0 0
    %2003 = vmatprep.subr.bf16.mxu0 0
    %2004 = vmatpush1.bf16.msra.mxu0 0
    %2005 = vmatprep.mubr.bf16.mxu0 0
    %2006 = vmatmul.mubr.bf16.gmra.mrb[0].mxu0 %v1353
    %v2007 = vpop.f32.mrb[0].mxu0
    %v2008 = vadd.f32 %v1968, %v2007
    %v2009 = vpop.f32.mrb[0].mxu0
    %v2010 = vpop.f32.mrb[0].mxu0
    %v2011 = vpop.f32.mrb[0].mxu0
    %2012 = vdwg.mxu0
    %v2013 = vmul.f32 %v1927, 0.5
    %v2014 = vmul.f32 %v1929, 0.5
    %v2015 = vmul.f32 %v2008, 0.5
    %v2016 = vmul.f32 %v1927, %v1927
    %v2017 = vmul.f32 %v1929, %v1929
    %v2018 = vmul.f32 %v2008, %v2008
    %v2019 = vmul.f32 %v2016, %v1927
    %v2020 = vmul.f32 %v2017, %v1929
    %v2021 = vmul.f32 %v2018, %v2008
    %v2022 = vmul.f32 %v2019, 0.044715
    %v2023 = vmul.f32 %v2020, 0.044715
    %v2024 = vmul.f32 %v2021, 0.044715
    %v2025 = vadd.f32 %v1927, %v2022
    %v2026 = vadd.f32 %v1929, %v2023
    %v2027 = vadd.f32 %v2008, %v2024
    %v2028 = vmul.f32 %v2025, 0.7978846
    %v2029 = vmul.f32 %v2026, 0.7978846
    %v2030 = vmul.f32 %v2027, 0.7978846
    %v2031 = vtanh.pop %v2028
    %v2032 = vtanh.pop %v2029
    %v2033 = vtanh.pop %v2030
    %v2034 = vadd.f32 %v2031, 1.0
    %v2035 = vadd.f32 %v2032, 1.0
    %v2036 = vadd.f32 %v2033, 1.0
    %v2037 = vmul.f32 %v2013, %v2034
    %v2038 = vmul.f32 %v2014, %v2035
    %v2039 = vmul.f32 %v2015, %v2036
    %v2040 = vpack.c.bf16 %v2037, %v2037
    %v2041 = vpack.c.bf16 %v2038, %v2038
    %v2042 = vpack.c.bf16 %v2039, %v2039
    %s2043 = scalar_lea.vmem [#allocation6], 576
    %v2044 = vld [vmem:[%s2043] sm:$0xff]
    %v2045 = vld [vmem:[%s2043 + $0x8] sm:$0xf]
    %v2046 = vld [vmem:[%s2043 + $0xc] sm:$0xff]
    %v2047 = vld [vmem:[%s2043 + $0x14] sm:$0xf]
    %v2048 = vld [vmem:[%s2043 + $0x18] sm:$0xff]
    %v2049 = vld [vmem:[%s2043 + $0x20] sm:$0xf]
    %v2050 = vld [vmem:[%s2043 + $0x24] sm:$0xff]
    %v2051 = vld [vmem:[%s2043 + $0x2c] sm:$0xf]
    %v2052 = vld [vmem:[%s2043 + $0x30] sm:$0xff]
    %v2053 = vld [vmem:[%s2043 + $0x38] sm:$0xf]
    %v2054 = vld [vmem:[%s2043 + $0x3c] sm:$0xff]
    %v2055 = vld [vmem:[%s2043 + $0x44] sm:$0xf]
    %v2056 = vld [vmem:[%s2043 + $0x48] sm:$0xff]
    %v2057 = vld [vmem:[%s2043 + $0x50] sm:$0xf]
    %v2058 = vld [vmem:[%s2043 + $0x54] sm:$0xff]
    %v2059 = vld [vmem:[%s2043 + $0x5c] sm:$0xf]
    %v2060 = vld [vmem:[%s2043 + $0x60] sm:$0xff]
    %v2061 = vld [vmem:[%s2043 + $0x68] sm:$0xf]
    %v2062 = vld [vmem:[%s2043 + $0x6c] sm:$0xff]
    %v2063 = vld [vmem:[%s2043 + $0x74] sm:$0xf]
    %v2064 = vld [vmem:[%s2043 + $0x78] sm:$0xff]
    %v2065 = vld [vmem:[%s2043 + $0x80] sm:$0xf]
    %v2066 = vld [vmem:[%s2043 + $0x84] sm:$0xff]
    %v2067 = vld [vmem:[%s2043 + $0x8c] sm:$0xf]
    %v2068 = vld [vmem:[%s2043 + $0x90] sm:$0xff]
    %v2069 = vld [vmem:[%s2043 + $0x98] sm:$0xf]
    %v2070 = vld [vmem:[%s2043 + $0x9c] sm:$0xff]
    %v2071 = vld [vmem:[%s2043 + $0xa4] sm:$0xf]
    %v2072 = vld [vmem:[%s2043 + $0xa8] sm:$0xff]
    %v2073 = vld [vmem:[%s2043 + $0xb0] sm:$0xf]
    %v2074 = vld [vmem:[%s2043 + $0xb4] sm:$0xff]
    %v2075 = vld [vmem:[%s2043 + $0xbc] sm:$0xf]
    %v2076 = vld [vmem:[%s2043 + $0xc0] sm:$0xff]
    %v2077 = vld [vmem:[%s2043 + $0xc8] sm:$0xf]
    %v2078 = vld [vmem:[%s2043 + $0xcc] sm:$0xff]
    %v2079 = vld [vmem:[%s2043 + $0xd4] sm:$0xf]
    %v2080 = vld [vmem:[%s2043 + $0xd8] sm:$0xff]
    %v2081 = vld [vmem:[%s2043 + $0xe0] sm:$0xf]
    %v2082 = vld [vmem:[%s2043 + $0xe4] sm:$0xff]
    %v2083 = vld [vmem:[%s2043 + $0xec] sm:$0xf]
    %v2084 = vld [vmem:[%s2043 + $0xf0] sm:$0xff]
    %v2085 = vld [vmem:[%s2043 + $0xf8] sm:$0xf]
    %v2086 = vld [vmem:[%s2043 + $0xfc] sm:$0xff]
    %v2087 = vld [vmem:[%s2043 + $0x104] sm:$0xf]
    %v2088 = vld [vmem:[%s2043 + $0x108] sm:$0xff]
    %v2089 = vld [vmem:[%s2043 + $0x110] sm:$0xf]
    %v2090 = vld [vmem:[%s2043 + $0x114] sm:$0xff]
    %v2091 = vld [vmem:[%s2043 + $0x11c] sm:$0xf]
    %v2092 = vld [vmem:[%s2043 + $0x120] sm:$0xff]
    %v2093 = vld [vmem:[%s2043 + $0x128] sm:$0xf]
    %v2094 = vld [vmem:[%s2043 + $0x12c] sm:$0xff]
    %v2095 = vld [vmem:[%s2043 + $0x134] sm:$0xf]
    %v2096 = vld [vmem:[%s2043 + $0x138] sm:$0xff]
    %v2097 = vld [vmem:[%s2043 + $0x140] sm:$0xf]
    %v2098 = vld [vmem:[%s2043 + $0x144] sm:$0xff]
    %v2099 = vld [vmem:[%s2043 + $0x14c] sm:$0xf]
    %v2100 = vld [vmem:[%s2043 + $0x150] sm:$0xff]
    %v2101 = vld [vmem:[%s2043 + $0x158] sm:$0xf]
    %v2102 = vld [vmem:[%s2043 + $0x15c] sm:$0xff]
    %v2103 = vld [vmem:[%s2043 + $0x164] sm:$0xf]
    %v2104 = vld [vmem:[%s2043 + $0x168] sm:$0xff]
    %v2105 = vld [vmem:[%s2043 + $0x170] sm:$0xf]
    %v2106 = vld [vmem:[%s2043 + $0x174] sm:$0xff]
    %v2107 = vld [vmem:[%s2043 + $0x17c] sm:$0xf]
    %v2108 = vld [vmem:[%s2043 + $0x180] sm:$0xff]
    %v2109 = vld [vmem:[%s2043 + $0x188] sm:$0xf]
    %v2110 = vld [vmem:[%s2043 + $0x18c] sm:$0xff]
    %v2111 = vld [vmem:[%s2043 + $0x194] sm:$0xf]
    %v2112 = vld [vmem:[%s2043 + $0x198] sm:$0xff]
    %v2113 = vld [vmem:[%s2043 + $0x1a0] sm:$0xf]
    %v2114 = vld [vmem:[%s2043 + $0x1a4] sm:$0xff]
    %v2115 = vld [vmem:[%s2043 + $0x1ac] sm:$0xf]
    %v2116 = vld [vmem:[%s2043 + $0x1b0] sm:$0xff]
    %v2117 = vld [vmem:[%s2043 + $0x1b8] sm:$0xf]
    %v2118 = vld [vmem:[%s2043 + $0x1bc] sm:$0xff]
    %v2119 = vld [vmem:[%s2043 + $0x1c4] sm:$0xf]
    %v2120 = vld [vmem:[%s2043 + $0x1c8] sm:$0xff]
    %v2121 = vld [vmem:[%s2043 + $0x1d0] sm:$0xf]
    %v2122 = vld [vmem:[%s2043 + $0x1d4] sm:$0xff]
    %v2123 = vld [vmem:[%s2043 + $0x1dc] sm:$0xf]
    %v2124 = vld [vmem:[%s2043 + $0x1e0] sm:$0xff]
    %v2125 = vld [vmem:[%s2043 + $0x1e8] sm:$0xf]
    %v2126 = vld [vmem:[%s2043 + $0x1ec] sm:$0xff]
    %v2127 = vld [vmem:[%s2043 + $0x1f4] sm:$0xf]
    %v2128 = vld [vmem:[%s2043 + $0x1f8] sm:$0xff]
    %v2129 = vld [vmem:[%s2043 + $0x200] sm:$0xf]
    %v2130 = vld [vmem:[%s2043 + $0x204] sm:$0xff]
    %v2131 = vld [vmem:[%s2043 + $0x20c] sm:$0xf]
    %v2132 = vld [vmem:[%s2043 + $0x210] sm:$0xff]
    %v2133 = vld [vmem:[%s2043 + $0x218] sm:$0xf]
    %v2134 = vld [vmem:[%s2043 + $0x21c] sm:$0xff]
    %v2135 = vld [vmem:[%s2043 + $0x224] sm:$0xf]
    %v2136 = vld [vmem:[%s2043 + $0x228] sm:$0xff]
    %v2137 = vld [vmem:[%s2043 + $0x230] sm:$0xf]
    %v2138 = vld [vmem:[%s2043 + $0x234] sm:$0xff]
    %v2139 = vld [vmem:[%s2043 + $0x23c] sm:$0xf]
    %s2140 = scalar_lea.vmem %s4, 3
    %v2141 = vld [vmem:[%s2140] sm:$0x7]
    %v2143 = vlaneseq
    %v2144 = vshrl.u32 %v2143, 7
    %v2145 = vsub.s32 0, %v2144
    %v2146 = vrot.slane %v2141, %v2145
    %v2147 = vlaneseq
    %v2148 = vshrl.u32 %v2147, 7
    %v2149 = vsub.s32 1, %v2148
    %v2150 = vrot.slane %v2141, %v2149
    %v2151 = vlaneseq
    %v2152 = vshrl.u32 %v2151, 7
    %v2153 = vsub.s32 2, %v2152
    %v2154 = vrot.slane %v2141, %v2153
    %v2254 = vunpack.c.l.b16 %v2044
    %v2255 = vunpack.c.h.b16 %v2044
    %v2256 = vunpack.c.l.b16 %v2045
    %v2257 = vunpack.c.l.b16 %v2046
    %v2258 = vunpack.c.h.b16 %v2046
    %v2259 = vunpack.c.l.b16 %v2047
    %v2260 = vunpack.c.l.b16 %v2048
    %v2261 = vunpack.c.h.b16 %v2048
    %v2262 = vunpack.c.l.b16 %v2049
    %v2263 = vunpack.c.l.b16 %v2050
    %v2264 = vunpack.c.h.b16 %v2050
    %v2265 = vunpack.c.l.b16 %v2051
    %v2266 = vunpack.c.l.b16 %v2052
    %v2267 = vunpack.c.h.b16 %v2052
    %v2268 = vunpack.c.l.b16 %v2053
    %v2269 = vunpack.c.l.b16 %v2054
    %v2270 = vunpack.c.h.b16 %v2054
    %v2271 = vunpack.c.l.b16 %v2055
    %v2272 = vunpack.c.l.b16 %v2056
    %v2273 = vunpack.c.h.b16 %v2056
    %v2274 = vunpack.c.l.b16 %v2057
    %v2275 = vunpack.c.l.b16 %v2058
    %v2276 = vunpack.c.h.b16 %v2058
    %v2277 = vunpack.c.l.b16 %v2059
    %v2278 = vunpack.c.l.b16 %v2060
    %v2279 = vunpack.c.h.b16 %v2060
    %v2280 = vunpack.c.l.b16 %v2061
    %v2281 = vunpack.c.l.b16 %v2062
    %v2282 = vunpack.c.h.b16 %v2062
    %v2283 = vunpack.c.l.b16 %v2063
    %v2284 = vunpack.c.l.b16 %v2064
    %v2285 = vunpack.c.h.b16 %v2064
    %v2286 = vunpack.c.l.b16 %v2065
    %v2287 = vunpack.c.l.b16 %v2066
    %v2288 = vunpack.c.h.b16 %v2066
    %v2289 = vunpack.c.l.b16 %v2067
    %v2290 = vunpack.c.l.b16 %v2068
    %v2291 = vunpack.c.h.b16 %v2068
    %v2292 = vunpack.c.l.b16 %v2069
    %v2293 = vunpack.c.l.b16 %v2070
    %v2294 = vunpack.c.h.b16 %v2070
    %v2295 = vunpack.c.l.b16 %v2071
    %v2296 = vunpack.c.l.b16 %v2072
    %v2297 = vunpack.c.h.b16 %v2072
    %v2298 = vunpack.c.l.b16 %v2073
    %v2299 = vunpack.c.l.b16 %v2074
    %v2300 = vunpack.c.h.b16 %v2074
    %v2301 = vunpack.c.l.b16 %v2075
    %v2302 = vunpack.c.l.b16 %v2076
    %v2303 = vunpack.c.h.b16 %v2076
    %v2304 = vunpack.c.l.b16 %v2077
    %v2305 = vunpack.c.l.b16 %v2078
    %v2306 = vunpack.c.h.b16 %v2078
    %v2307 = vunpack.c.l.b16 %v2079
    %v2308 = vunpack.c.l.b16 %v2080
    %v2309 = vunpack.c.h.b16 %v2080
    %v2310 = vunpack.c.l.b16 %v2081
    %v2311 = vunpack.c.l.b16 %v2082
    %v2312 = vunpack.c.h.b16 %v2082
    %v2313 = vunpack.c.l.b16 %v2083
    %v2314 = vunpack.c.l.b16 %v2084
    %v2315 = vunpack.c.h.b16 %v2084
    %v2316 = vunpack.c.l.b16 %v2085
    %v2317 = vunpack.c.l.b16 %v2086
    %v2318 = vunpack.c.h.b16 %v2086
    %v2319 = vunpack.c.l.b16 %v2087
    %v2320 = vunpack.c.l.b16 %v2088
    %v2321 = vunpack.c.h.b16 %v2088
    %v2322 = vunpack.c.l.b16 %v2089
    %v2323 = vunpack.c.l.b16 %v2090
    %v2324 = vunpack.c.h.b16 %v2090
    %v2325 = vunpack.c.l.b16 %v2091
    %v2326 = vunpack.c.l.b16 %v2092
    %v2327 = vunpack.c.h.b16 %v2092
    %v2328 = vunpack.c.l.b16 %v2093
    %v2329 = vunpack.c.l.b16 %v2094
    %v2330 = vunpack.c.h.b16 %v2094
    %v2331 = vunpack.c.l.b16 %v2095
    %v2332 = vunpack.c.l.b16 %v2096
    %v2333 = vunpack.c.h.b16 %v2096
    %v2334 = vunpack.c.l.b16 %v2097
    %v2335 = vunpack.c.l.b16 %v2098
    %v2336 = vunpack.c.h.b16 %v2098
    %v2337 = vunpack.c.l.b16 %v2099
    %v2338 = vunpack.c.l.b16 %v2100
    %v2339 = vunpack.c.h.b16 %v2100
    %v2340 = vunpack.c.l.b16 %v2101
    %v2341 = vunpack.c.l.b16 %v2102
    %v2342 = vunpack.c.h.b16 %v2102
    %v2343 = vunpack.c.l.b16 %v2103
    %v2344 = vunpack.c.l.b16 %v2104
    %v2345 = vunpack.c.h.b16 %v2104
    %v2346 = vunpack.c.l.b16 %v2105
    %v2347 = vunpack.c.l.b16 %v2106
    %v2348 = vunpack.c.h.b16 %v2106
    %v2349 = vunpack.c.l.b16 %v2107
    %v2350 = vunpack.c.l.b16 %v2108
    %v2351 = vunpack.c.h.b16 %v2108
    %v2352 = vunpack.c.l.b16 %v2109
    %v2353 = vunpack.c.l.b16 %v2110
    %v2354 = vunpack.c.h.b16 %v2110
    %v2355 = vunpack.c.l.b16 %v2111
    %v2356 = vunpack.c.l.b16 %v2112
    %v2357 = vunpack.c.h.b16 %v2112
    %v2358 = vunpack.c.l.b16 %v2113
    %v2359 = vunpack.c.l.b16 %v2114
    %v2360 = vunpack.c.h.b16 %v2114
    %v2361 = vunpack.c.l.b16 %v2115
    %v2362 = vunpack.c.l.b16 %v2116
    %v2363 = vunpack.c.h.b16 %v2116
    %v2364 = vunpack.c.l.b16 %v2117
    %v2365 = vunpack.c.l.b16 %v2118
    %v2366 = vunpack.c.h.b16 %v2118
    %v2367 = vunpack.c.l.b16 %v2119
    %v2368 = vunpack.c.l.b16 %v2120
    %v2369 = vunpack.c.h.b16 %v2120
    %v2370 = vunpack.c.l.b16 %v2121
    %v2371 = vunpack.c.l.b16 %v2122
    %v2372 = vunpack.c.h.b16 %v2122
    %v2373 = vunpack.c.l.b16 %v2123
    %v2374 = vunpack.c.l.b16 %v2124
    %v2375 = vunpack.c.h.b16 %v2124
    %v2376 = vunpack.c.l.b16 %v2125
    %v2377 = vunpack.c.l.b16 %v2126
    %v2378 = vunpack.c.h.b16 %v2126
    %v2379 = vunpack.c.l.b16 %v2127
    %v2380 = vunpack.c.l.b16 %v2128
    %v2381 = vunpack.c.h.b16 %v2128
    %v2382 = vunpack.c.l.b16 %v2129
    %v2383 = vunpack.c.l.b16 %v2130
    %v2384 = vunpack.c.h.b16 %v2130
    %v2385 = vunpack.c.l.b16 %v2131
    %v2386 = vunpack.c.l.b16 %v2132
    %v2387 = vunpack.c.h.b16 %v2132
    %v2388 = vunpack.c.l.b16 %v2133
    %v2389 = vunpack.c.l.b16 %v2134
    %v2390 = vunpack.c.h.b16 %v2134
    %v2391 = vunpack.c.l.b16 %v2135
    %v2392 = vunpack.c.l.b16 %v2136
    %v2393 = vunpack.c.h.b16 %v2136
    %v2394 = vunpack.c.l.b16 %v2137
    %v2395 = vunpack.c.l.b16 %v2138
    %v2396 = vunpack.c.h.b16 %v2138
    %v2397 = vunpack.c.l.b16 %v2139
    %v2398 = vpack.c.b16 %v2257, %v2254
    %v2399 = vpack.c.b16 %v2258, %v2255
    %v2400 = vpack.c.b16 %v2259, %v2256
    %v2401 = vpack.c.b16 %v2263, %v2260
    %v2402 = vpack.c.b16 %v2264, %v2261
    %v2403 = vpack.c.b16 %v2265, %v2262
    %v2404 = vpack.c.b16 %v2269, %v2266
    %v2405 = vpack.c.b16 %v2270, %v2267
    %v2406 = vpack.c.b16 %v2271, %v2268
    %v2407 = vpack.c.b16 %v2275, %v2272
    %v2408 = vpack.c.b16 %v2276, %v2273
    %v2409 = vpack.c.b16 %v2277, %v2274
    %v2410 = vpack.c.b16 %v2281, %v2278
    %v2411 = vpack.c.b16 %v2282, %v2279
    %v2412 = vpack.c.b16 %v2283, %v2280
    %v2413 = vpack.c.b16 %v2287, %v2284
    %v2414 = vpack.c.b16 %v2288, %v2285
    %v2415 = vpack.c.b16 %v2289, %v2286
    %v2416 = vpack.c.b16 %v2293, %v2290
    %v2417 = vpack.c.b16 %v2294, %v2291
    %v2418 = vpack.c.b16 %v2295, %v2292
    %v2419 = vpack.c.b16 %v2299, %v2296
    %v2420 = vpack.c.b16 %v2300, %v2297
    %v2421 = vpack.c.b16 %v2301, %v2298
    %v2422 = vpack.c.b16 %v2305, %v2302
    %v2423 = vpack.c.b16 %v2306, %v2303
    %v2424 = vpack.c.b16 %v2307, %v2304
    %v2425 = vpack.c.b16 %v2311, %v2308
    %v2426 = vpack.c.b16 %v2312, %v2309
    %v2427 = vpack.c.b16 %v2313, %v2310
    %v2428 = vpack.c.b16 %v2317, %v2314
    %v2429 = vpack.c.b16 %v2318, %v2315
    %v2430 = vpack.c.b16 %v2319, %v2316
    %v2431 = vpack.c.b16 %v2323, %v2320
    %v2432 = vpack.c.b16 %v2324, %v2321
    %v2433 = vpack.c.b16 %v2325, %v2322
    %v2434 = vpack.c.b16 %v2329, %v2326
    %v2435 = vpack.c.b16 %v2330, %v2327
    %v2436 = vpack.c.b16 %v2331, %v2328
    %v2437 = vpack.c.b16 %v2335, %v2332
    %v2438 = vpack.c.b16 %v2336, %v2333
    %v2439 = vpack.c.b16 %v2337, %v2334
    %v2440 = vpack.c.b16 %v2341, %v2338
    %v2441 = vpack.c.b16 %v2342, %v2339
    %v2442 = vpack.c.b16 %v2343, %v2340
    %v2443 = vpack.c.b16 %v2347, %v2344
    %v2444 = vpack.c.b16 %v2348, %v2345
    %v2445 = vpack.c.b16 %v2349, %v2346
    %v2446 = vpack.c.b16 %v2353, %v2350
    %v2447 = vpack.c.b16 %v2354, %v2351
    %v2448 = vpack.c.b16 %v2355, %v2352
    %v2449 = vpack.c.b16 %v2359, %v2356
    %v2450 = vpack.c.b16 %v2360, %v2357
    %v2451 = vpack.c.b16 %v2361, %v2358
    %v2452 = vpack.c.b16 %v2365, %v2362
    %v2453 = vpack.c.b16 %v2366, %v2363
    %v2454 = vpack.c.b16 %v2367, %v2364
    %v2455 = vpack.c.b16 %v2371, %v2368
    %v2456 = vpack.c.b16 %v2372, %v2369
    %v2457 = vpack.c.b16 %v2373, %v2370
    %v2458 = vpack.c.b16 %v2377, %v2374
    %v2459 = vpack.c.b16 %v2378, %v2375
    %v2460 = vpack.c.b16 %v2379, %v2376
    %v2461 = vpack.c.b16 %v2383, %v2380
    %v2462 = vpack.c.b16 %v2384, %v2381
    %v2463 = vpack.c.b16 %v2385, %v2382
    %v2464 = vpack.c.b16 %v2389, %v2386
    %v2465 = vpack.c.b16 %v2390, %v2387
    %v2466 = vpack.c.b16 %v2391, %v2388
    %v2467 = vpack.c.b16 %v2395, %v2392
    %v2468 = vpack.c.b16 %v2396, %v2393
    %v2469 = vpack.c.b16 %v2397, %v2394
    %2542 = vmatprep.subr.bf16.mxu0 %v2399
    %2543 = vmatpush1.bf16.msra.mxu0 %v2398
    %2544 = vmatprep.subr.bf16.mxu0 %v2402
    %2545 = vmatpush1.bf16.msra.mxu0 %v2401
    %2546 = vmatprep.subr.bf16.mxu0 %v2405
    %2547 = vmatpush1.bf16.msra.mxu0 %v2404
    %2548 = vmatprep.subr.bf16.mxu0 %v2408
    %2549 = vmatpush1.bf16.msra.mxu0 %v2407
    %2550 = vmatprep.subr.bf16.mxu0 %v2411
    %2551 = vmatpush1.bf16.msra.mxu0 %v2410
    %2552 = vmatprep.subr.bf16.mxu0 %v2414
    %2553 = vmatpush1.bf16.msra.mxu0 %v2413
    %2554 = vmatprep.subr.bf16.mxu0 %v2417
    %2555 = vmatpush1.bf16.msra.mxu0 %v2416
    %2556 = vmatprep.subr.bf16.mxu0 %v2420
    %2557 = vmatpush1.bf16.msra.mxu0 %v2419
    %2558 = vmatprep.subr.bf16.mxu0 %v2423
    %2559 = vmatpush1.bf16.msra.mxu0 %v2422
    %2560 = vmatprep.subr.bf16.mxu0 %v2426
    %2561 = vmatpush1.bf16.msra.mxu0 %v2425
    %2562 = vmatprep.subr.bf16.mxu0 %v2429
    %2563 = vmatpush1.bf16.msra.mxu0 %v2428
    %2564 = vmatprep.subr.bf16.mxu0 %v2432
    %2565 = vmatpush1.bf16.msra.mxu0 %v2431
    %2566 = vmatprep.subr.bf16.mxu0 %v2435
    %2567 = vmatpush1.bf16.msra.mxu0 %v2434
    %2568 = vmatprep.subr.bf16.mxu0 %v2438
    %2569 = vmatpush1.bf16.msra.mxu0 %v2437
    %2570 = vmatprep.subr.bf16.mxu0 %v2441
    %2571 = vmatpush1.bf16.msra.mxu0 %v2440
    %2572 = vmatprep.subr.bf16.mxu0 %v2444
    %2573 = vmatpush1.bf16.msra.mxu0 %v2443
    %2574 = vmatprep.mubr.bf16.mxu0 %v2041
    %2575 = vmatmul.mubr.bf16.gmra.mrb[0].mxu0 %v2040
    %v2576 = vpop.f32.mrb[0].mxu0
    %v2577 = vadd.f32 %v2146, %v2576
    %v2578 = vpop.f32.mrb[0].mxu0
    %v2579 = vadd.f32 %v2150, %v2578
    %v2580 = vpop.f32.mrb[0].mxu0
    %v2581 = vpop.f32.mrb[0].mxu0
    %2582 = vdwg.mxu0
    %2583 = vmatprep.subr.bf16.mxu0 %v2447
    %2584 = vmatpush1.bf16.msra.mxu0 %v2446
    %2585 = vmatprep.subr.bf16.mxu0 %v2450
    %2586 = vmatpush1.bf16.msra.mxu0 %v2449
    %2587 = vmatprep.subr.bf16.mxu0 %v2453
    %2588 = vmatpush1.bf16.msra.mxu0 %v2452
    %2589 = vmatprep.subr.bf16.mxu0 %v2456
    %2590 = vmatpush1.bf16.msra.mxu0 %v2455
    %2591 = vmatprep.subr.bf16.mxu0 %v2459
    %2592 = vmatpush1.bf16.msra.mxu0 %v2458
    %2593 = vmatprep.subr.bf16.mxu0 %v2462
    %2594 = vmatpush1.bf16.msra.mxu0 %v2461
    %2595 = vmatprep.subr.bf16.mxu0 %v2465
    %2596 = vmatpush1.bf16.msra.mxu0 %v2464
    %2597 = vmatprep.subr.bf16.mxu0 %v2468
    %2598 = vmatpush1.bf16.msra.mxu0 %v2467
    %2599 = vmatprep.subr.bf16.mxu0 0
    %2600 = vmatpush1.bf16.msra.mxu0 0
    %2601 = vmatprep.subr.bf16.mxu0 0
    %2602 = vmatpush1.bf16.msra.mxu0 0
    %2603 = vmatprep.subr.bf16.mxu0 0
    %2604 = vmatpush1.bf16.msra.mxu0 0
    %2605 = vmatprep.subr.bf16.mxu0 0
    %2606 = vmatpush1.bf16.msra.mxu0 0
    %2607 = vmatprep.subr.bf16.mxu0 0
    %2608 = vmatpush1.bf16.msra.mxu0 0
    %2609 = vmatprep.subr.bf16.mxu0 0
    %2610 = vmatpush1.bf16.msra.mxu0 0
    %2611 = vmatprep.subr.bf16.mxu0 0
    %2612 = vmatpush1.bf16.msra.mxu0 0
    %2613 = vmatprep.subr.bf16.mxu0 0
    %2614 = vmatpush1.bf16.msra.mxu0 0
    %2615 = vmatprep.mubr.bf16.mxu0 0
    %2616 = vmatmul.mubr.bf16.gmra.mrb[0].mxu0 %v2042
    %v2617 = vpop.f32.mrb[0].mxu0
    %v2618 = vadd.f32 %v2577, %v2617
    %v2619 = vpop.f32.mrb[0].mxu0
    %v2620 = vadd.f32 %v2579, %v2619
    %v2621 = vpop.f32.mrb[0].mxu0
    %v2622 = vpop.f32.mrb[0].mxu0
    %2623 = vdwg.mxu0
    %2624 = vmatprep.subr.bf16.mxu0 0
    %2625 = vmatpush1.bf16.msra.mxu0 %v2400
    %2626 = vmatprep.subr.bf16.mxu0 0
    %2627 = vmatpush1.bf16.msra.mxu0 %v2403
    %2628 = vmatprep.subr.bf16.mxu0 0
    %2629 = vmatpush1.bf16.msra.mxu0 %v2406
    %2630 = vmatprep.subr.bf16.mxu0 0
    %2631 = vmatpush1.bf16.msra.mxu0 %v2409
    %2632 = vmatprep.subr.bf16.mxu0 0
    %2633 = vmatpush1.bf16.msra.mxu0 %v2412
    %2634 = vmatprep.subr.bf16.mxu0 0
    %2635 = vmatpush1.bf16.msra.mxu0 %v2415
    %2636 = vmatprep.subr.bf16.mxu0 0
    %2637 = vmatpush1.bf16.msra.mxu0 %v2418
    %2638 = vmatprep.subr.bf16.mxu0 0
    %2639 = vmatpush1.bf16.msra.mxu0 %v2421
    %2640 = vmatprep.subr.bf16.mxu0 0
    %2641 = vmatpush1.bf16.msra.mxu0 %v2424
    %2642 = vmatprep.subr.bf16.mxu0 0
    %2643 = vmatpush1.bf16.msra.mxu0 %v2427
    %2644 = vmatprep.subr.bf16.mxu0 0
    %2645 = vmatpush1.bf16.msra.mxu0 %v2430
    %2646 = vmatprep.subr.bf16.mxu0 0
    %2647 = vmatpush1.bf16.msra.mxu0 %v2433
    %2648 = vmatprep.subr.bf16.mxu0 0
    %2649 = vmatpush1.bf16.msra.mxu0 %v2436
    %2650 = vmatprep.subr.bf16.mxu0 0
    %2651 = vmatpush1.bf16.msra.mxu0 %v2439
    %2652 = vmatprep.subr.bf16.mxu0 0
    %2653 = vmatpush1.bf16.msra.mxu0 %v2442
    %2654 = vmatprep.subr.bf16.mxu0 0
    %2655 = vmatpush1.bf16.msra.mxu0 %v2445
    %2656 = vmatprep.mubr.bf16.mxu0 %v2041
    %2657 = vmatmul.mubr.bf16.gmra.mrb[0].mxu0 %v2040
    %v2658 = vpop.f32.mrb[0].mxu0
    %v2659 = vadd.f32 %v2154, %v2658
    %v2660 = vpop.f32.mrb[0].mxu0
    %v2661 = vpop.f32.mrb[0].mxu0
    %v2662 = vpop.f32.mrb[0].mxu0
    %2663 = vdwg.mxu0
    %2664 = vmatprep.subr.bf16.mxu0 0
    %2665 = vmatpush1.bf16.msra.mxu0 %v2448
    %2666 = vmatprep.subr.bf16.mxu0 0
    %2667 = vmatpush1.bf16.msra.mxu0 %v2451
    %2668 = vmatprep.subr.bf16.mxu0 0
    %2669 = vmatpush1.bf16.msra.mxu0 %v2454
    %2670 = vmatprep.subr.bf16.mxu0 0
    %2671 = vmatpush1.bf16.msra.mxu0 %v2457
    %2672 = vmatprep.subr.bf16.mxu0 0
    %2673 = vmatpush1.bf16.msra.mxu0 %v2460
    %2674 = vmatprep.subr.bf16.mxu0 0
    %2675 = vmatpush1.bf16.msra.mxu0 %v2463
    %2676 = vmatprep.subr.bf16.mxu0 0
    %2677 = vmatpush1.bf16.msra.mxu0 %v2466
    %2678 = vmatprep.subr.bf16.mxu0 0
    %2679 = vmatpush1.bf16.msra.mxu0 %v2469
    %2680 = vmatprep.subr.bf16.mxu0 0
    %2681 = vmatpush1.bf16.msra.mxu0 0
    %2682 = vmatprep.subr.bf16.mxu0 0
    %2683 = vmatpush1.bf16.msra.mxu0 0
    %2684 = vmatprep.subr.bf16.mxu0 0
    %2685 = vmatpush1.bf16.msra.mxu0 0
    %2686 = vmatprep.subr.bf16.mxu0 0
    %2687 = vmatpush1.bf16.msra.mxu0 0
    %2688 = vmatprep.subr.bf16.mxu0 0
    %2689 = vmatpush1.bf16.msra.mxu0 0
    %2690 = vmatprep.subr.bf16.mxu0 0
    %2691 = vmatpush1.bf16.msra.mxu0 0
    %2692 = vmatprep.subr.bf16.mxu0 0
    %2693 = vmatpush1.bf16.msra.mxu0 0
    %2694 = vmatprep.subr.bf16.mxu0 0
    %2695 = vmatpush1.bf16.msra.mxu0 0
    %2696 = vmatprep.mubr.bf16.mxu0 0
    %2697 = vmatmul.mubr.bf16.gmra.mrb[0].mxu0 %v2042
    %v2698 = vpop.f32.mrb[0].mxu0
    %v2699 = vadd.f32 %v2659, %v2698
    %v2700 = vpop.f32.mrb[0].mxu0
    %v2701 = vpop.f32.mrb[0].mxu0
    %v2702 = vpop.f32.mrb[0].mxu0
    %2703 = vdwg.mxu0
    %v2704 = vmul.f32 %v2618, 0.5
    %v2705 = vmul.f32 %v2620, 0.5
    %v2706 = vmul.f32 %v2699, 0.5
    %v2707 = vmul.f32 %v2618, %v2618
    %v2708 = vmul.f32 %v2620, %v2620
    %v2709 = vmul.f32 %v2699, %v2699
    %v2710 = vmul.f32 %v2707, %v2618
    %v2711 = vmul.f32 %v2708, %v2620
    %v2712 = vmul.f32 %v2709, %v2699
    %v2713 = vmul.f32 %v2710, 0.044715
    %v2714 = vmul.f32 %v2711, 0.044715
    %v2715 = vmul.f32 %v2712, 0.044715
    %v2716 = vadd.f32 %v2618, %v2713
    %v2717 = vadd.f32 %v2620, %v2714
    %v2718 = vadd.f32 %v2699, %v2715
    %v2719 = vmul.f32 %v2716, 0.7978846
    %v2720 = vmul.f32 %v2717, 0.7978846
    %v2721 = vmul.f32 %v2718, 0.7978846
    %v2722 = vtanh.pop %v2719
    %v2723 = vtanh.pop %v2720
    %v2724 = vtanh.pop %v2721
    %v2725 = vadd.f32 %v2722, 1.0
    %v2726 = vadd.f32 %v2723, 1.0
    %v2727 = vadd.f32 %v2724, 1.0
    %v2728 = vmul.f32 %v2704, %v2725
    %v2729 = vmul.f32 %v2705, %v2726
    %v2730 = vmul.f32 %v2706, %v2727
    %v2731 = vpack.c.bf16 %v2728, %v2728
    %v2732 = vpack.c.bf16 %v2729, %v2729
    %v2733 = vpack.c.bf16 %v2730, %v2730
    %s2734 = scalar_lea.vmem [#allocation6], 1152
    %v2735 = vld [vmem:[%s2734] sm:$0xff]
    %v2736 = vld [vmem:[%s2734 + $0x8] sm:$0xf]
    %v2737 = vld [vmem:[%s2734 + $0xc] sm:$0xff]
    %v2738 = vld [vmem:[%s2734 + $0x14] sm:$0xf]
    %v2739 = vld [vmem:[%s2734 + $0x18] sm:$0xff]
    %v2740 = vld [vmem:[%s2734 + $0x20] sm:$0xf]
    %v2741 = vld [vmem:[%s2734 + $0x24] sm:$0xff]
    %v2742 = vld [vmem:[%s2734 + $0x2c] sm:$0xf]
    %v2743 = vld [vmem:[%s2734 + $0x30] sm:$0xff]
    %v2744 = vld [vmem:[%s2734 + $0x38] sm:$0xf]
    %v2745 = vld [vmem:[%s2734 + $0x3c] sm:$0xff]
    %v2746 = vld [vmem:[%s2734 + $0x44] sm:$0xf]
    %v2747 = vld [vmem:[%s2734 + $0x48] sm:$0xff]
    %v2748 = vld [vmem:[%s2734 + $0x50] sm:$0xf]
    %v2749 = vld [vmem:[%s2734 + $0x54] sm:$0xff]
    %v2750 = vld [vmem:[%s2734 + $0x5c] sm:$0xf]
    %v2751 = vld [vmem:[%s2734 + $0x60] sm:$0xff]
    %v2752 = vld [vmem:[%s2734 + $0x68] sm:$0xf]
    %v2753 = vld [vmem:[%s2734 + $0x6c] sm:$0xff]
    %v2754 = vld [vmem:[%s2734 + $0x74] sm:$0xf]
    %v2755 = vld [vmem:[%s2734 + $0x78] sm:$0xff]
    %v2756 = vld [vmem:[%s2734 + $0x80] sm:$0xf]
    %v2757 = vld [vmem:[%s2734 + $0x84] sm:$0xff]
    %v2758 = vld [vmem:[%s2734 + $0x8c] sm:$0xf]
    %v2759 = vld [vmem:[%s2734 + $0x90] sm:$0xff]
    %v2760 = vld [vmem:[%s2734 + $0x98] sm:$0xf]
    %v2761 = vld [vmem:[%s2734 + $0x9c] sm:$0xff]
    %v2762 = vld [vmem:[%s2734 + $0xa4] sm:$0xf]
    %v2763 = vld [vmem:[%s2734 + $0xa8] sm:$0xff]
    %v2764 = vld [vmem:[%s2734 + $0xb0] sm:$0xf]
    %v2765 = vld [vmem:[%s2734 + $0xb4] sm:$0xff]
    %v2766 = vld [vmem:[%s2734 + $0xbc] sm:$0xf]
    %v2767 = vld [vmem:[%s2734 + $0xc0] sm:$0xff]
    %v2768 = vld [vmem:[%s2734 + $0xc8] sm:$0xf]
    %v2769 = vld [vmem:[%s2734 + $0xcc] sm:$0xff]
    %v2770 = vld [vmem:[%s2734 + $0xd4] sm:$0xf]
    %v2771 = vld [vmem:[%s2734 + $0xd8] sm:$0xff]
    %v2772 = vld [vmem:[%s2734 + $0xe0] sm:$0xf]
    %v2773 = vld [vmem:[%s2734 + $0xe4] sm:$0xff]
    %v2774 = vld [vmem:[%s2734 + $0xec] sm:$0xf]
    %v2775 = vld [vmem:[%s2734 + $0xf0] sm:$0xff]
    %v2776 = vld [vmem:[%s2734 + $0xf8] sm:$0xf]
    %v2777 = vld [vmem:[%s2734 + $0xfc] sm:$0xff]
    %v2778 = vld [vmem:[%s2734 + $0x104] sm:$0xf]
    %v2779 = vld [vmem:[%s2734 + $0x108] sm:$0xff]
    %v2780 = vld [vmem:[%s2734 + $0x110] sm:$0xf]
    %v2781 = vld [vmem:[%s2734 + $0x114] sm:$0xff]
    %v2782 = vld [vmem:[%s2734 + $0x11c] sm:$0xf]
    %v2783 = vld [vmem:[%s2734 + $0x120] sm:$0xff]
    %v2784 = vld [vmem:[%s2734 + $0x128] sm:$0xf]
    %v2785 = vld [vmem:[%s2734 + $0x12c] sm:$0xff]
    %v2786 = vld [vmem:[%s2734 + $0x134] sm:$0xf]
    %v2787 = vld [vmem:[%s2734 + $0x138] sm:$0xff]
    %v2788 = vld [vmem:[%s2734 + $0x140] sm:$0xf]
    %v2789 = vld [vmem:[%s2734 + $0x144] sm:$0xff]
    %v2790 = vld [vmem:[%s2734 + $0x14c] sm:$0xf]
    %v2791 = vld [vmem:[%s2734 + $0x150] sm:$0xff]
    %v2792 = vld [vmem:[%s2734 + $0x158] sm:$0xf]
    %v2793 = vld [vmem:[%s2734 + $0x15c] sm:$0xff]
    %v2794 = vld [vmem:[%s2734 + $0x164] sm:$0xf]
    %v2795 = vld [vmem:[%s2734 + $0x168] sm:$0xff]
    %v2796 = vld [vmem:[%s2734 + $0x170] sm:$0xf]
    %v2797 = vld [vmem:[%s2734 + $0x174] sm:$0xff]
    %v2798 = vld [vmem:[%s2734 + $0x17c] sm:$0xf]
    %v2799 = vld [vmem:[%s2734 + $0x180] sm:$0xff]
    %v2800 = vld [vmem:[%s2734 + $0x188] sm:$0xf]
    %v2801 = vld [vmem:[%s2734 + $0x18c] sm:$0xff]
    %v2802 = vld [vmem:[%s2734 + $0x194] sm:$0xf]
    %v2803 = vld [vmem:[%s2734 + $0x198] sm:$0xff]
    %v2804 = vld [vmem:[%s2734 + $0x1a0] sm:$0xf]
    %v2805 = vld [vmem:[%s2734 + $0x1a4] sm:$0xff]
    %v2806 = vld [vmem:[%s2734 + $0x1ac] sm:$0xf]
    %v2807 = vld [vmem:[%s2734 + $0x1b0] sm:$0xff]
    %v2808 = vld [vmem:[%s2734 + $0x1b8] sm:$0xf]
    %v2809 = vld [vmem:[%s2734 + $0x1bc] sm:$0xff]
    %v2810 = vld [vmem:[%s2734 + $0x1c4] sm:$0xf]
    %v2811 = vld [vmem:[%s2734 + $0x1c8] sm:$0xff]
    %v2812 = vld [vmem:[%s2734 + $0x1d0] sm:$0xf]
    %v2813 = vld [vmem:[%s2734 + $0x1d4] sm:$0xff]
    %v2814 = vld [vmem:[%s2734 + $0x1dc] sm:$0xf]
    %v2815 = vld [vmem:[%s2734 + $0x1e0] sm:$0xff]
    %v2816 = vld [vmem:[%s2734 + $0x1e8] sm:$0xf]
    %v2817 = vld [vmem:[%s2734 + $0x1ec] sm:$0xff]
    %v2818 = vld [vmem:[%s2734 + $0x1f4] sm:$0xf]
    %v2819 = vld [vmem:[%s2734 + $0x1f8] sm:$0xff]
    %v2820 = vld [vmem:[%s2734 + $0x200] sm:$0xf]
    %v2821 = vld [vmem:[%s2734 + $0x204] sm:$0xff]
    %v2822 = vld [vmem:[%s2734 + $0x20c] sm:$0xf]
    %v2823 = vld [vmem:[%s2734 + $0x210] sm:$0xff]
    %v2824 = vld [vmem:[%s2734 + $0x218] sm:$0xf]
    %v2825 = vld [vmem:[%s2734 + $0x21c] sm:$0xff]
    %v2826 = vld [vmem:[%s2734 + $0x224] sm:$0xf]
    %v2827 = vld [vmem:[%s2734 + $0x228] sm:$0xff]
    %v2828 = vld [vmem:[%s2734 + $0x230] sm:$0xf]
    %v2829 = vld [vmem:[%s2734 + $0x234] sm:$0xff]
    %v2830 = vld [vmem:[%s2734 + $0x23c] sm:$0xf]
    %s2831 = scalar_lea.vmem %s4, 6
    %v2832 = vld [vmem:[%s2831] sm:$0x7]
    %v2834 = vlaneseq
    %v2835 = vshrl.u32 %v2834, 7
    %v2836 = vsub.s32 0, %v2835
    %v2837 = vrot.slane %v2832, %v2836
    %v2838 = vlaneseq
    %v2839 = vshrl.u32 %v2838, 7
    %v2840 = vsub.s32 1, %v2839
    %v2841 = vrot.slane %v2832, %v2840
    %v2842 = vlaneseq
    %v2843 = vshrl.u32 %v2842, 7
    %v2844 = vsub.s32 2, %v2843
    %v2845 = vrot.slane %v2832, %v2844
    %v2945 = vunpack.c.l.b16 %v2735
    %v2946 = vunpack.c.h.b16 %v2735
    %v2947 = vunpack.c.l.b16 %v2736
    %v2948 = vunpack.c.l.b16 %v2737
    %v2949 = vunpack.c.h.b16 %v2737
    %v2950 = vunpack.c.l.b16 %v2738
    %v2951 = vunpack.c.l.b16 %v2739
    %v2952 = vunpack.c.h.b16 %v2739
    %v2953 = vunpack.c.l.b16 %v2740
    %v2954 = vunpack.c.l.b16 %v2741
    %v2955 = vunpack.c.h.b16 %v2741
    %v2956 = vunpack.c.l.b16 %v2742
    %v2957 = vunpack.c.l.b16 %v2743
    %v2958 = vunpack.c.h.b16 %v2743
    %v2959 = vunpack.c.l.b16 %v2744
    %v2960 = vunpack.c.l.b16 %v2745
    %v2961 = vunpack.c.h.b16 %v2745
    %v2962 = vunpack.c.l.b16 %v2746
    %v2963 = vunpack.c.l.b16 %v2747
    %v2964 = vunpack.c.h.b16 %v2747
    %v2965 = vunpack.c.l.b16 %v2748
    %v2966 = vunpack.c.l.b16 %v2749
    %v2967 = vunpack.c.h.b16 %v2749
    %v2968 = vunpack.c.l.b16 %v2750
    %v2969 = vunpack.c.l.b16 %v2751
    %v2970 = vunpack.c.h.b16 %v2751
    %v2971 = vunpack.c.l.b16 %v2752
    %v2972 = vunpack.c.l.b16 %v2753
    %v2973 = vunpack.c.h.b16 %v2753
    %v2974 = vunpack.c.l.b16 %v2754
    %v2975 = vunpack.c.l.b16 %v2755
    %v2976 = vunpack.c.h.b16 %v2755
    %v2977 = vunpack.c.l.b16 %v2756
    %v2978 = vunpack.c.l.b16 %v2757
    %v2979 = vunpack.c.h.b16 %v2757
    %v2980 = vunpack.c.l.b16 %v2758
    %v2981 = vunpack.c.l.b16 %v2759
    %v2982 = vunpack.c.h.b16 %v2759
    %v2983 = vunpack.c.l.b16 %v2760
    %v2984 = vunpack.c.l.b16 %v2761
    %v2985 = vunpack.c.h.b16 %v2761
    %v2986 = vunpack.c.l.b16 %v2762
    %v2987 = vunpack.c.l.b16 %v2763
    %v2988 = vunpack.c.h.b16 %v2763
    %v2989 = vunpack.c.l.b16 %v2764
    %v2990 = vunpack.c.l.b16 %v2765
    %v2991 = vunpack.c.h.b16 %v2765
    %v2992 = vunpack.c.l.b16 %v2766
    %v2993 = vunpack.c.l.b16 %v2767
    %v2994 = vunpack.c.h.b16 %v2767
    %v2995 = vunpack.c.l.b16 %v2768
    %v2996 = vunpack.c.l.b16 %v2769
    %v2997 = vunpack.c.h.b16 %v2769
    %v2998 = vunpack.c.l.b16 %v2770
    %v2999 = vunpack.c.l.b16 %v2771
    %v3000 = vunpack.c.h.b16 %v2771
    %v3001 = vunpack.c.l.b16 %v2772
    %v3002 = vunpack.c.l.b16 %v2773
    %v3003 = vunpack.c.h.b16 %v2773
    %v3004 = vunpack.c.l.b16 %v2774
    %v3005 = vunpack.c.l.b16 %v2775
    %v3006 = vunpack.c.h.b16 %v2775
    %v3007 = vunpack.c.l.b16 %v2776
    %v3008 = vunpack.c.l.b16 %v2777
    %v3009 = vunpack.c.h.b16 %v2777
    %v3010 = vunpack.c.l.b16 %v2778
    %v3011 = vunpack.c.l.b16 %v2779
    %v3012 = vunpack.c.h.b16 %v2779
    %v3013 = vunpack.c.l.b16 %v2780
    %v3014 = vunpack.c.l.b16 %v2781
    %v3015 = vunpack.c.h.b16 %v2781
    %v3016 = vunpack.c.l.b16 %v2782
    %v3017 = vunpack.c.l.b16 %v2783
    %v3018 = vunpack.c.h.b16 %v2783
    %v3019 = vunpack.c.l.b16 %v2784
    %v3020 = vunpack.c.l.b16 %v2785
    %v3021 = vunpack.c.h.b16 %v2785
    %v3022 = vunpack.c.l.b16 %v2786
    %v3023 = vunpack.c.l.b16 %v2787
    %v3024 = vunpack.c.h.b16 %v2787
    %v3025 = vunpack.c.l.b16 %v2788
    %v3026 = vunpack.c.l.b16 %v2789
    %v3027 = vunpack.c.h.b16 %v2789
    %v3028 = vunpack.c.l.b16 %v2790
    %v3029 = vunpack.c.l.b16 %v2791
    %v3030 = vunpack.c.h.b16 %v2791
    %v3031 = vunpack.c.l.b16 %v2792
    %v3032 = vunpack.c.l.b16 %v2793
    %v3033 = vunpack.c.h.b16 %v2793
    %v3034 = vunpack.c.l.b16 %v2794
    %v3035 = vunpack.c.l.b16 %v2795
    %v3036 = vunpack.c.h.b16 %v2795
    %v3037 = vunpack.c.l.b16 %v2796
    %v3038 = vunpack.c.l.b16 %v2797
    %v3039 = vunpack.c.h.b16 %v2797
    %v3040 = vunpack.c.l.b16 %v2798
    %v3041 = vunpack.c.l.b16 %v2799
    %v3042 = vunpack.c.h.b16 %v2799
    %v3043 = vunpack.c.l.b16 %v2800
    %v3044 = vunpack.c.l.b16 %v2801
    %v3045 = vunpack.c.h.b16 %v2801
    %v3046 = vunpack.c.l.b16 %v2802
    %v3047 = vunpack.c.l.b16 %v2803
    %v3048 = vunpack.c.h.b16 %v2803
    %v3049 = vunpack.c.l.b16 %v2804
    %v3050 = vunpack.c.l.b16 %v2805
    %v3051 = vunpack.c.h.b16 %v2805
    %v3052 = vunpack.c.l.b16 %v2806
    %v3053 = vunpack.c.l.b16 %v2807
    %v3054 = vunpack.c.h.b16 %v2807
    %v3055 = vunpack.c.l.b16 %v2808
    %v3056 = vunpack.c.l.b16 %v2809
    %v3057 = vunpack.c.h.b16 %v2809
    %v3058 = vunpack.c.l.b16 %v2810
    %v3059 = vunpack.c.l.b16 %v2811
    %v3060 = vunpack.c.h.b16 %v2811
    %v3061 = vunpack.c.l.b16 %v2812
    %v3062 = vunpack.c.l.b16 %v2813
    %v3063 = vunpack.c.h.b16 %v2813
    %v3064 = vunpack.c.l.b16 %v2814
    %v3065 = vunpack.c.l.b16 %v2815
    %v3066 = vunpack.c.h.b16 %v2815
    %v3067 = vunpack.c.l.b16 %v2816
    %v3068 = vunpack.c.l.b16 %v2817
    %v3069 = vunpack.c.h.b16 %v2817
    %v3070 = vunpack.c.l.b16 %v2818
    %v3071 = vunpack.c.l.b16 %v2819
    %v3072 = vunpack.c.h.b16 %v2819
    %v3073 = vunpack.c.l.b16 %v2820
    %v3074 = vunpack.c.l.b16 %v2821
    %v3075 = vunpack.c.h.b16 %v2821
    %v3076 = vunpack.c.l.b16 %v2822
    %v3077 = vunpack.c.l.b16 %v2823
    %v3078 = vunpack.c.h.b16 %v2823
    %v3079 = vunpack.c.l.b16 %v2824
    %v3080 = vunpack.c.l.b16 %v2825
    %v3081 = vunpack.c.h.b16 %v2825
    %v3082 = vunpack.c.l.b16 %v2826
    %v3083 = vunpack.c.l.b16 %v2827
    %v3084 = vunpack.c.h.b16 %v2827
    %v3085 = vunpack.c.l.b16 %v2828
    %v3086 = vunpack.c.l.b16 %v2829
    %v3087 = vunpack.c.h.b16 %v2829
    %v3088 = vunpack.c.l.b16 %v2830
    %v3089 = vpack.c.b16 %v2948, %v2945
    %v3090 = vpack.c.b16 %v2949, %v2946
    %v3091 = vpack.c.b16 %v2950, %v2947
    %v3092 = vpack.c.b16 %v2954, %v2951
    %v3093 = vpack.c.b16 %v2955, %v2952
    %v3094 = vpack.c.b16 %v2956, %v2953
    %v3095 = vpack.c.b16 %v2960, %v2957
    %v3096 = vpack.c.b16 %v2961, %v2958
    %v3097 = vpack.c.b16 %v2962, %v2959
    %v3098 = vpack.c.b16 %v2966, %v2963
    %v3099 = vpack.c.b16 %v2967, %v2964
    %v3100 = vpack.c.b16 %v2968, %v2965
    %v3101 = vpack.c.b16 %v2972, %v2969
    %v3102 = vpack.c.b16 %v2973, %v2970
    %v3103 = vpack.c.b16 %v2974, %v2971
    %v3104 = vpack.c.b16 %v2978, %v2975
    %v3105 = vpack.c.b16 %v2979, %v2976
    %v3106 = vpack.c.b16 %v2980, %v2977
    %v3107 = vpack.c.b16 %v2984, %v2981
    %v3108 = vpack.c.b16 %v2985, %v2982
    %v3109 = vpack.c.b16 %v2986, %v2983
    %v3110 = vpack.c.b16 %v2990, %v2987
    %v3111 = vpack.c.b16 %v2991, %v2988
    %v3112 = vpack.c.b16 %v2992, %v2989
    %v3113 = vpack.c.b16 %v2996, %v2993
    %v3114 = vpack.c.b16 %v2997, %v2994
    %v3115 = vpack.c.b16 %v2998, %v2995
    %v3116 = vpack.c.b16 %v3002, %v2999
    %v3117 = vpack.c.b16 %v3003, %v3000
    %v3118 = vpack.c.b16 %v3004, %v3001
    %v3119 = vpack.c.b16 %v3008, %v3005
    %v3120 = vpack.c.b16 %v3009, %v3006
    %v3121 = vpack.c.b16 %v3010, %v3007
    %v3122 = vpack.c.b16 %v3014, %v3011
    %v3123 = vpack.c.b16 %v3015, %v3012
    %v3124 = vpack.c.b16 %v3016, %v3013
    %v3125 = vpack.c.b16 %v3020, %v3017
    %v3126 = vpack.c.b16 %v3021, %v3018
    %v3127 = vpack.c.b16 %v3022, %v3019
    %v3128 = vpack.c.b16 %v3026, %v3023
    %v3129 = vpack.c.b16 %v3027, %v3024
    %v3130 = vpack.c.b16 %v3028, %v3025
    %v3131 = vpack.c.b16 %v3032, %v3029
    %v3132 = vpack.c.b16 %v3033, %v3030
    %v3133 = vpack.c.b16 %v3034, %v3031
    %v3134 = vpack.c.b16 %v3038, %v3035
    %v3135 = vpack.c.b16 %v3039, %v3036
    %v3136 = vpack.c.b16 %v3040, %v3037
    %v3137 = vpack.c.b16 %v3044, %v3041
    %v3138 = vpack.c.b16 %v3045, %v3042
    %v3139 = vpack.c.b16 %v3046, %v3043
    %v3140 = vpack.c.b16 %v3050, %v3047
    %v3141 = vpack.c.b16 %v3051, %v3048
    %v3142 = vpack.c.b16 %v3052, %v3049
    %v3143 = vpack.c.b16 %v3056, %v3053
    %v3144 = vpack.c.b16 %v3057, %v3054
    %v3145 = vpack.c.b16 %v3058, %v3055
    %v3146 = vpack.c.b16 %v3062, %v3059
    %v3147 = vpack.c.b16 %v3063, %v3060
    %v3148 = vpack.c.b16 %v3064, %v3061
    %v3149 = vpack.c.b16 %v3068, %v3065
    %v3150 = vpack.c.b16 %v3069, %v3066
    %v3151 = vpack.c.b16 %v3070, %v3067
    %v3152 = vpack.c.b16 %v3074, %v3071
    %v3153 = vpack.c.b16 %v3075, %v3072
    %v3154 = vpack.c.b16 %v3076, %v3073
    %v3155 = vpack.c.b16 %v3080, %v3077
    %v3156 = vpack.c.b16 %v3081, %v3078
    %v3157 = vpack.c.b16 %v3082, %v3079
    %v3158 = vpack.c.b16 %v3086, %v3083
    %v3159 = vpack.c.b16 %v3087, %v3084
    %v3160 = vpack.c.b16 %v3088, %v3085
    %3233 = vmatprep.subr.bf16.mxu0 %v3090
    %3234 = vmatpush1.bf16.msra.mxu0 %v3089
    %3235 = vmatprep.subr.bf16.mxu0 %v3093
    %3236 = vmatpush1.bf16.msra.mxu0 %v3092
    %3237 = vmatprep.subr.bf16.mxu0 %v3096
    %3238 = vmatpush1.bf16.msra.mxu0 %v3095
    %3239 = vmatprep.subr.bf16.mxu0 %v3099
    %3240 = vmatpush1.bf16.msra.mxu0 %v3098
    %3241 = vmatprep.subr.bf16.mxu0 %v3102
    %3242 = vmatpush1.bf16.msra.mxu0 %v3101
    %3243 = vmatprep.subr.bf16.mxu0 %v3105
    %3244 = vmatpush1.bf16.msra.mxu0 %v3104
    %3245 = vmatprep.subr.bf16.mxu0 %v3108
    %3246 = vmatpush1.bf16.msra.mxu0 %v3107
    %3247 = vmatprep.subr.bf16.mxu0 %v3111
    %3248 = vmatpush1.bf16.msra.mxu0 %v3110
    %3249 = vmatprep.subr.bf16.mxu0 %v3114
    %3250 = vmatpush1.bf16.msra.mxu0 %v3113
    %3251 = vmatprep.subr.bf16.mxu0 %v3117
    %3252 = vmatpush1.bf16.msra.mxu0 %v3116
    %3253 = vmatprep.subr.bf16.mxu0 %v3120
    %3254 = vmatpush1.bf16.msra.mxu0 %v3119
    %3255 = vmatprep.subr.bf16.mxu0 %v3123
    %3256 = vmatpush1.bf16.msra.mxu0 %v3122
    %3257 = vmatprep.subr.bf16.mxu0 %v3126
    %3258 = vmatpush1.bf16.msra.mxu0 %v3125
    %3259 = vmatprep.subr.bf16.mxu0 %v3129
    %3260 = vmatpush1.bf16.msra.mxu0 %v3128
    %3261 = vmatprep.subr.bf16.mxu0 %v3132
    %3262 = vmatpush1.bf16.msra.mxu0 %v3131
    %3263 = vmatprep.subr.bf16.mxu0 %v3135
    %3264 = vmatpush1.bf16.msra.mxu0 %v3134
    %3265 = vmatprep.mubr.bf16.mxu0 %v2732
    %3266 = vmatmul.mubr.bf16.gmra.mrb[0].mxu0 %v2731
    %v3267 = vpop.f32.mrb[0].mxu0
    %v3268 = vadd.f32 %v2837, %v3267
    %v3269 = vpop.f32.mrb[0].mxu0
    %v3270 = vadd.f32 %v2841, %v3269
    %v3271 = vpop.f32.mrb[0].mxu0
    %v3272 = vpop.f32.mrb[0].mxu0
    %3273 = vdwg.mxu0
    %3274 = vmatprep.subr.bf16.mxu0 %v3138
    %3275 = vmatpush1.bf16.msra.mxu0 %v3137
    %3276 = vmatprep.subr.bf16.mxu0 %v3141
    %3277 = vmatpush1.bf16.msra.mxu0 %v3140
    %3278 = vmatprep.subr.bf16.mxu0 %v3144
    %3279 = vmatpush1.bf16.msra.mxu0 %v3143
    %3280 = vmatprep.subr.bf16.mxu0 %v3147
    %3281 = vmatpush1.bf16.msra.mxu0 %v3146
    %3282 = vmatprep.subr.bf16.mxu0 %v3150
    %3283 = vmatpush1.bf16.msra.mxu0 %v3149
    %3284 = vmatprep.subr.bf16.mxu0 %v3153
    %3285 = vmatpush1.bf16.msra.mxu0 %v3152
    %3286 = vmatprep.subr.bf16.mxu0 %v3156
    %3287 = vmatpush1.bf16.msra.mxu0 %v3155
    %3288 = vmatprep.subr.bf16.mxu0 %v3159
    %3289 = vmatpush1.bf16.msra.mxu0 %v3158
    %3290 = vmatprep.subr.bf16.mxu0 0
    %3291 = vmatpush1.bf16.msra.mxu0 0
    %3292 = vmatprep.subr.bf16.mxu0 0
    %3293 = vmatpush1.bf16.msra.mxu0 0
    %3294 = vmatprep.subr.bf16.mxu0 0
    %3295 = vmatpush1.bf16.msra.mxu0 0
    %3296 = vmatprep.subr.bf16.mxu0 0
    %3297 = vmatpush1.bf16.msra.mxu0 0
    %3298 = vmatprep.subr.bf16.mxu0 0
    %3299 = vmatpush1.bf16.msra.mxu0 0
    %3300 = vmatprep.subr.bf16.mxu0 0
    %3301 = vmatpush1.bf16.msra.mxu0 0
    %3302 = vmatprep.subr.bf16.mxu0 0
    %3303 = vmatpush1.bf16.msra.mxu0 0
    %3304 = vmatprep.subr.bf16.mxu0 0
    %3305 = vmatpush1.bf16.msra.mxu0 0
    %3306 = vmatprep.mubr.bf16.mxu0 0
    %3307 = vmatmul.mubr.bf16.gmra.mrb[0].mxu0 %v2733
    %v3308 = vpop.f32.mrb[0].mxu0
    %v3309 = vadd.f32 %v3268, %v3308
    %v3310 = vpop.f32.mrb[0].mxu0
    %v3311 = vadd.f32 %v3270, %v3310
    %v3312 = vpop.f32.mrb[0].mxu0
    %v3313 = vpop.f32.mrb[0].mxu0
    %3314 = vdwg.mxu0
    %3315 = vmatprep.subr.bf16.mxu0 0
    %3316 = vmatpush1.bf16.msra.mxu0 %v3091
    %3317 = vmatprep.subr.bf16.mxu0 0
    %3318 = vmatpush1.bf16.msra.mxu0 %v3094
    %3319 = vmatprep.subr.bf16.mxu0 0
    %3320 = vmatpush1.bf16.msra.mxu0 %v3097
    %3321 = vmatprep.subr.bf16.mxu0 0
    %3322 = vmatpush1.bf16.msra.mxu0 %v3100
    %3323 = vmatprep.subr.bf16.mxu0 0
    %3324 = vmatpush1.bf16.msra.mxu0 %v3103
    %3325 = vmatprep.subr.bf16.mxu0 0
    %3326 = vmatpush1.bf16.msra.mxu0 %v3106
    %3327 = vmatprep.subr.bf16.mxu0 0
    %3328 = vmatpush1.bf16.msra.mxu0 %v3109
    %3329 = vmatprep.subr.bf16.mxu0 0
    %3330 = vmatpush1.bf16.msra.mxu0 %v3112
    %3331 = vmatprep.subr.bf16.mxu0 0
    %3332 = vmatpush1.bf16.msra.mxu0 %v3115
    %3333 = vmatprep.subr.bf16.mxu0 0
    %3334 = vmatpush1.bf16.msra.mxu0 %v3118
    %3335 = vmatprep.subr.bf16.mxu0 0
    %3336 = vmatpush1.bf16.msra.mxu0 %v3121
    %3337 = vmatprep.subr.bf16.mxu0 0
    %3338 = vmatpush1.bf16.msra.mxu0 %v3124
    %3339 = vmatprep.subr.bf16.mxu0 0
    %3340 = vmatpush1.bf16.msra.mxu0 %v3127
    %3341 = vmatprep.subr.bf16.mxu0 0
    %3342 = vmatpush1.bf16.msra.mxu0 %v3130
    %3343 = vmatprep.subr.bf16.mxu0 0
    %3344 = vmatpush1.bf16.msra.mxu0 %v3133
    %3345 = vmatprep.subr.bf16.mxu0 0
    %3346 = vmatpush1.bf16.msra.mxu0 %v3136
    %3347 = vmatprep.mubr.bf16.mxu0 %v2732
    %3348 = vmatmul.mubr.bf16.gmra.mrb[0].mxu0 %v2731
    %v3349 = vpop.f32.mrb[0].mxu0
    %v3350 = vadd.f32 %v2845, %v3349
    %v3351 = vpop.f32.mrb[0].mxu0
    %v3352 = vpop.f32.mrb[0].mxu0
    %v3353 = vpop.f32.mrb[0].mxu0
    %3354 = vdwg.mxu0
    %3355 = vmatprep.subr.bf16.mxu0 0
    %3356 = vmatpush1.bf16.msra.mxu0 %v3139
    %3357 = vmatprep.subr.bf16.mxu0 0
    %3358 = vmatpush1.bf16.msra.mxu0 %v3142
    %3359 = vmatprep.subr.bf16.mxu0 0
    %3360 = vmatpush1.bf16.msra.mxu0 %v3145
    %3361 = vmatprep.subr.bf16.mxu0 0
    %3362 = vmatpush1.bf16.msra.mxu0 %v3148
    %3363 = vmatprep.subr.bf16.mxu0 0
    %3364 = vmatpush1.bf16.msra.mxu0 %v3151
    %3365 = vmatprep.subr.bf16.mxu0 0
    %3366 = vmatpush1.bf16.msra.mxu0 %v3154
    %3367 = vmatprep.subr.bf16.mxu0 0
    %3368 = vmatpush1.bf16.msra.mxu0 %v3157
    %3369 = vmatprep.subr.bf16.mxu0 0
    %3370 = vmatpush1.bf16.msra.mxu0 %v3160
    %3371 = vmatprep.subr.bf16.mxu0 0
    %3372 = vmatpush1.bf16.msra.mxu0 0
    %3373 = vmatprep.subr.bf16.mxu0 0
    %3374 = vmatpush1.bf16.msra.mxu0 0
    %3375 = vmatprep.subr.bf16.mxu0 0
    %3376 = vmatpush1.bf16.msra.mxu0 0
    %3377 = vmatprep.subr.bf16.mxu0 0
    %3378 = vmatpush1.bf16.msra.mxu0 0
    %3379 = vmatprep.subr.bf16.mxu0 0
    %3380 = vmatpush1.bf16.msra.mxu0 0
    %3381 = vmatprep.subr.bf16.mxu0 0
    %3382 = vmatpush1.bf16.msra.mxu0 0
    %3383 = vmatprep.subr.bf16.mxu0 0
    %3384 = vmatpush1.bf16.msra.mxu0 0
    %3385 = vmatprep.subr.bf16.mxu0 0
    %3386 = vmatpush1.bf16.msra.mxu0 0
    %3387 = vmatprep.mubr.bf16.mxu0 0
    %3388 = vmatmul.mubr.bf16.gmra.mrb[0].mxu0 %v2733
    %v3389 = vpop.f32.mrb[0].mxu0
    %v3390 = vadd.f32 %v3350, %v3389
    %v3391 = vpop.f32.mrb[0].mxu0
    %v3392 = vpop.f32.mrb[0].mxu0
    %v3393 = vpop.f32.mrb[0].mxu0
    %3394 = vdwg.mxu0
    %v3395 = vmul.f32 %v3309, 0.5
    %v3396 = vmul.f32 %v3311, 0.5
    %v3397 = vmul.f32 %v3390, 0.5
    %v3398 = vmul.f32 %v3309, %v3309
    %v3399 = vmul.f32 %v3311, %v3311
    %v3400 = vmul.f32 %v3390, %v3390
    %v3401 = vmul.f32 %v3398, %v3309
    %v3402 = vmul.f32 %v3399, %v3311
    %v3403 = vmul.f32 %v3400, %v3390
    %v3404 = vmul.f32 %v3401, 0.044715
    %v3405 = vmul.f32 %v3402, 0.044715
    %v3406 = vmul.f32 %v3403, 0.044715
    %v3407 = vadd.f32 %v3309, %v3404
    %v3408 = vadd.f32 %v3311, %v3405
    %v3409 = vadd.f32 %v3390, %v3406
    %v3410 = vmul.f32 %v3407, 0.7978846
    %v3411 = vmul.f32 %v3408, 0.7978846
    %v3412 = vmul.f32 %v3409, 0.7978846
    %v3413 = vtanh.pop %v3410
    %v3414 = vtanh.pop %v3411
    %v3415 = vtanh.pop %v3412
    %v3416 = vadd.f32 %v3413, 1.0
    %v3417 = vadd.f32 %v3414, 1.0
    %v3418 = vadd.f32 %v3415, 1.0
    %v3419 = vmul.f32 %v3395, %v3416
    %v3420 = vmul.f32 %v3396, %v3417
    %v3421 = vmul.f32 %v3397, %v3418
    %v3422 = vpack.c.bf16 %v3419, %v3419
    %v3423 = vpack.c.bf16 %v3420, %v3420
    %v3424 = vpack.c.bf16 %v3421, %v3421
    %v3425 = vld [vmem:[#allocation7] sm:$0xf]
    %v3426 = vld [vmem:[#allocation7 + $0x4] sm:$0xf]
    %v3427 = vld [vmem:[#allocation7 + $0x8] sm:$0xf]
    %v3428 = vld [vmem:[#allocation7 + $0xc] sm:$0xf]
    %v3429 = vld [vmem:[#allocation7 + $0x10] sm:$0xf]
    %v3430 = vld [vmem:[#allocation7 + $0x14] sm:$0xf]
    %v3431 = vld [vmem:[#allocation7 + $0x18] sm:$0xf]
    %v3432 = vld [vmem:[#allocation7 + $0x1c] sm:$0xf]
    %v3433 = vld [vmem:[#allocation7 + $0x20] sm:$0xf]
    %v3434 = vld [vmem:[#allocation7 + $0x24] sm:$0xf]
    %v3435 = vld [vmem:[#allocation7 + $0x28] sm:$0xf]
    %v3436 = vld [vmem:[#allocation7 + $0x2c] sm:$0xf]
    %v3437 = vld [vmem:[#allocation7 + $0x30] sm:$0xf]
    %v3438 = vld [vmem:[#allocation7 + $0x34] sm:$0xf]
    %v3439 = vld [vmem:[#allocation7 + $0x38] sm:$0xf]
    %v3440 = vld [vmem:[#allocation7 + $0x3c] sm:$0xf]
    %v3441 = vld [vmem:[#allocation7 + $0x40] sm:$0xf]
    %v3442 = vld [vmem:[#allocation7 + $0x44] sm:$0xf]
    %v3443 = vld [vmem:[#allocation7 + $0x48] sm:$0xf]
    %v3444 = vld [vmem:[#allocation7 + $0x4c] sm:$0xf]
    %v3445 = vld [vmem:[#allocation7 + $0x50] sm:$0xf]
    %v3446 = vld [vmem:[#allocation7 + $0x54] sm:$0xf]
    %v3447 = vld [vmem:[#allocation7 + $0x58] sm:$0xf]
    %v3448 = vld [vmem:[#allocation7 + $0x5c] sm:$0xf]
    %v3449 = vld [vmem:[#allocation7 + $0x60] sm:$0xf]
    %v3450 = vld [vmem:[#allocation7 + $0x64] sm:$0xf]
    %v3451 = vld [vmem:[#allocation7 + $0x68] sm:$0xf]
    %v3452 = vld [vmem:[#allocation7 + $0x6c] sm:$0xf]
    %v3453 = vld [vmem:[#allocation7 + $0x70] sm:$0xf]
    %v3454 = vld [vmem:[#allocation7 + $0x74] sm:$0xf]
    %v3455 = vld [vmem:[#allocation7 + $0x78] sm:$0xf]
    %v3456 = vld [vmem:[#allocation7 + $0x7c] sm:$0xf]
    %v3457 = vld [vmem:[#allocation7 + $0x80] sm:$0xf]
    %v3458 = vld [vmem:[#allocation7 + $0x84] sm:$0xf]
    %v3459 = vld [vmem:[#allocation7 + $0x88] sm:$0xf]
    %v3460 = vld [vmem:[#allocation7 + $0x8c] sm:$0xf]
    %v3461 = vld [vmem:[#allocation7 + $0x90] sm:$0xf]
    %v3462 = vld [vmem:[#allocation7 + $0x94] sm:$0xf]
    %v3463 = vld [vmem:[#allocation7 + $0x98] sm:$0xf]
    %v3464 = vld [vmem:[#allocation7 + $0x9c] sm:$0xf]
    %v3465 = vld [vmem:[#allocation7 + $0xa0] sm:$0xf]
    %v3466 = vld [vmem:[#allocation7 + $0xa4] sm:$0xf]
    %v3467 = vld [vmem:[#allocation7 + $0xa8] sm:$0xf]
    %v3468 = vld [vmem:[#allocation7 + $0xac] sm:$0xf]
    %v3469 = vld [vmem:[#allocation7 + $0xb0] sm:$0xf]
    %v3470 = vld [vmem:[#allocation7 + $0xb4] sm:$0xf]
    %v3471 = vld [vmem:[#allocation7 + $0xb8] sm:$0xf]
    %v3472 = vld [vmem:[#allocation7 + $0xbc] sm:$0xf]
    %v3473 = vld [vmem:[%s6] sm:$0x1]
    %v3475 = vlaneseq
    %v3476 = vshrl.u32 %v3475, 7
    %v3477 = vsub.s32 0, %v3476
    %v3478 = vrot.slane %v3473, %v3477
    %v3528 = vunpack.c.l.b16 %v3425
    %v3529 = vunpack.c.l.b16 %v3426
    %v3530 = vunpack.c.l.b16 %v3427
    %v3531 = vunpack.c.l.b16 %v3428
    %v3532 = vunpack.c.l.b16 %v3429
    %v3533 = vunpack.c.l.b16 %v3430
    %v3534 = vunpack.c.l.b16 %v3431
    %v3535 = vunpack.c.l.b16 %v3432
    %v3536 = vunpack.c.l.b16 %v3433
    %v3537 = vunpack.c.l.b16 %v3434
    %v3538 = vunpack.c.l.b16 %v3435
    %v3539 = vunpack.c.l.b16 %v3436
    %v3540 = vunpack.c.l.b16 %v3437
    %v3541 = vunpack.c.l.b16 %v3438
    %v3542 = vunpack.c.l.b16 %v3439
    %v3543 = vunpack.c.l.b16 %v3440
    %v3544 = vunpack.c.l.b16 %v3441
    %v3545 = vunpack.c.l.b16 %v3442
    %v3546 = vunpack.c.l.b16 %v3443
    %v3547 = vunpack.c.l.b16 %v3444
    %v3548 = vunpack.c.l.b16 %v3445
    %v3549 = vunpack.c.l.b16 %v3446
    %v3550 = vunpack.c.l.b16 %v3447
    %v3551 = vunpack.c.l.b16 %v3448
    %v3552 = vunpack.c.l.b16 %v3449
    %v3553 = vunpack.c.l.b16 %v3450
    %v3554 = vunpack.c.l.b16 %v3451
    %v3555 = vunpack.c.l.b16 %v3452
    %v3556 = vunpack.c.l.b16 %v3453
    %v3557 = vunpack.c.l.b16 %v3454
    %v3558 = vunpack.c.l.b16 %v3455
    %v3559 = vunpack.c.l.b16 %v3456
    %v3560 = vunpack.c.l.b16 %v3457
    %v3561 = vunpack.c.l.b16 %v3458
    %v3562 = vunpack.c.l.b16 %v3459
    %v3563 = vunpack.c.l.b16 %v3460
    %v3564 = vunpack.c.l.b16 %v3461
    %v3565 = vunpack.c.l.b16 %v3462
    %v3566 = vunpack.c.l.b16 %v3463
    %v3567 = vunpack.c.l.b16 %v3464
    %v3568 = vunpack.c.l.b16 %v3465
    %v3569 = vunpack.c.l.b16 %v3466
    %v3570 = vunpack.c.l.b16 %v3467
    %v3571 = vunpack.c.l.b16 %v3468
    %v3572 = vunpack.c.l.b16 %v3469
    %v3573 = vunpack.c.l.b16 %v3470
    %v3574 = vunpack.c.l.b16 %v3471
    %v3575 = vunpack.c.l.b16 %v3472
    %v3576 = vpack.c.b16 %v3529, %v3528
    %v3577 = vpack.c.b16 %v3531, %v3530
    %v3578 = vpack.c.b16 %v3533, %v3532
    %v3579 = vpack.c.b16 %v3535, %v3534
    %v3580 = vpack.c.b16 %v3537, %v3536
    %v3581 = vpack.c.b16 %v3539, %v3538
    %v3582 = vpack.c.b16 %v3541, %v3540
    %v3583 = vpack.c.b16 %v3543, %v3542
    %v3584 = vpack.c.b16 %v3545, %v3544
    %v3585 = vpack.c.b16 %v3547, %v3546
    %v3586 = vpack.c.b16 %v3549, %v3548
    %v3587 = vpack.c.b16 %v3551, %v3550
    %v3588 = vpack.c.b16 %v3553, %v3552
    %v3589 = vpack.c.b16 %v3555, %v3554
    %v3590 = vpack.c.b16 %v3557, %v3556
    %v3591 = vpack.c.b16 %v3559, %v3558
    %v3592 = vpack.c.b16 %v3561, %v3560
    %v3593 = vpack.c.b16 %v3563, %v3562
    %v3594 = vpack.c.b16 %v3565, %v3564
    %v3595 = vpack.c.b16 %v3567, %v3566
    %v3596 = vpack.c.b16 %v3569, %v3568
    %v3597 = vpack.c.b16 %v3571, %v3570
    %v3598 = vpack.c.b16 %v3573, %v3572
    %v3599 = vpack.c.b16 %v3575, %v3574
    %3624 = vmatprep.subr.bf16.mxu0 0
    %3625 = vmatpush1.bf16.msra.mxu0 %v3576
    %3626 = vmatprep.subr.bf16.mxu0 0
    %3627 = vmatpush1.bf16.msra.mxu0 %v3577
    %3628 = vmatprep.subr.bf16.mxu0 0
    %3629 = vmatpush1.bf16.msra.mxu0 %v3578
    %3630 = vmatprep.subr.bf16.mxu0 0
    %3631 = vmatpush1.bf16.msra.mxu0 %v3579
    %3632 = vmatprep.subr.bf16.mxu0 0
    %3633 = vmatpush1.bf16.msra.mxu0 %v3580
    %3634 = vmatprep.subr.bf16.mxu0 0
    %3635 = vmatpush1.bf16.msra.mxu0 %v3581
    %3636 = vmatprep.subr.bf16.mxu0 0
    %3637 = vmatpush1.bf16.msra.mxu0 %v3582
    %3638 = vmatprep.subr.bf16.mxu0 0
    %3639 = vmatpush1.bf16.msra.mxu0 %v3583
    %3640 = vmatprep.subr.bf16.mxu0 0
    %3641 = vmatpush1.bf16.msra.mxu0 %v3584
    %3642 = vmatprep.subr.bf16.mxu0 0
    %3643 = vmatpush1.bf16.msra.mxu0 %v3585
    %3644 = vmatprep.subr.bf16.mxu0 0
    %3645 = vmatpush1.bf16.msra.mxu0 %v3586
    %3646 = vmatprep.subr.bf16.mxu0 0
    %3647 = vmatpush1.bf16.msra.mxu0 %v3587
    %3648 = vmatprep.subr.bf16.mxu0 0
    %3649 = vmatpush1.bf16.msra.mxu0 %v3588
    %3650 = vmatprep.subr.bf16.mxu0 0
    %3651 = vmatpush1.bf16.msra.mxu0 %v3589
    %3652 = vmatprep.subr.bf16.mxu0 0
    %3653 = vmatpush1.bf16.msra.mxu0 %v3590
    %3654 = vmatprep.subr.bf16.mxu0 0
    %3655 = vmatpush1.bf16.msra.mxu0 %v3591
    %3656 = vmatprep.mubr.bf16.mxu0 %v3423
    %3657 = vmatmul.mubr.bf16.gmra.mrb[0].mxu0 %v3422
    %v3658 = vpop.f32.mrb[0].mxu0
    %v3659 = vadd.f32 %v3478, %v3658
    %v3660 = vpop.f32.mrb[0].mxu0
    %v3661 = vpop.f32.mrb[0].mxu0
    %v3662 = vpop.f32.mrb[0].mxu0
    %3663 = vdwg.mxu0
    %3664 = vmatprep.subr.bf16.mxu0 0
    %3665 = vmatpush1.bf16.msra.mxu0 %v3592
    %3666 = vmatprep.subr.bf16.mxu0 0
    %3667 = vmatpush1.bf16.msra.mxu0 %v3593
    %3668 = vmatprep.subr.bf16.mxu0 0
    %3669 = vmatpush1.bf16.msra.mxu0 %v3594
    %3670 = vmatprep.subr.bf16.mxu0 0
    %3671 = vmatpush1.bf16.msra.mxu0 %v3595
    %3672 = vmatprep.subr.bf16.mxu0 0
    %3673 = vmatpush1.bf16.msra.mxu0 %v3596
    %3674 = vmatprep.subr.bf16.mxu0 0
    %3675 = vmatpush1.bf16.msra.mxu0 %v3597
    %3676 = vmatprep.subr.bf16.mxu0 0
    %3677 = vmatpush1.bf16.msra.mxu0 %v3598
    %3678 = vmatprep.subr.bf16.mxu0 0
    %3679 = vmatpush1.bf16.msra.mxu0 %v3599
    %3680 = vmatprep.subr.bf16.mxu0 0
    %3681 = vmatpush1.bf16.msra.mxu0 0
    %3682 = vmatprep.subr.bf16.mxu0 0
    %3683 = vmatpush1.bf16.msra.mxu0 0
    %3684 = vmatprep.subr.bf16.mxu0 0
    %3685 = vmatpush1.bf16.msra.mxu0 0
    %3686 = vmatprep.subr.bf16.mxu0 0
    %3687 = vmatpush1.bf16.msra.mxu0 0
    %3688 = vmatprep.subr.bf16.mxu0 0
    %3689 = vmatpush1.bf16.msra.mxu0 0
    %3690 = vmatprep.subr.bf16.mxu0 0
    %3691 = vmatpush1.bf16.msra.mxu0 0
    %3692 = vmatprep.subr.bf16.mxu0 0
    %3693 = vmatpush1.bf16.msra.mxu0 0
    %3694 = vmatprep.subr.bf16.mxu0 0
    %3695 = vmatpush1.bf16.msra.mxu0 0
    %3696 = vmatprep.mubr.bf16.mxu0 0
    %3697 = vmatmul.mubr.bf16.gmra.mrb[0].mxu0 %v3424
    %v3698 = vpop.f32.mrb[0].mxu0
    %v3699 = vadd.f32 %v3659, %v3698
    %v3700 = vpop.f32.mrb[0].mxu0
    %v3701 = vpop.f32.mrb[0].mxu0
    %v3702 = vpop.f32.mrb[0].mxu0
    %3703 = vdwg.mxu0
    %v3704 = vmul.f32 %v3699, 0.5
    %v3705 = vmul.f32 %v3699, %v3699
    %v3706 = vmul.f32 %v3705, %v3699
    %v3707 = vmul.f32 %v3706, 0.044715
    %v3708 = vadd.f32 %v3699, %v3707
    %v3709 = vmul.f32 %v3708, 0.7978846
    %v3710 = vtanh.pop %v3709
    %v3711 = vadd.f32 %v3710, 1.0
    %v3712 = vmul.f32 %v3704, %v3711
    %v3713 = vlaneseq
    %v3714 = vand.u32 %v3713, 127
    %vm3715 = vcmp.lt.s32.totalorder %v3714, 5
    %v3716 = vsel %vm3715, %v3712, -1e+30
    %3717 = vmax.xlane.f32.xlu0 %v3716
    %v3718 = vpop.xlane.xlu0 %3717
    %v3719 = vsub.f32 %v3716, %v3718
    %v3720 = vmul.f32 %v3719, 1.442695
    %v3721 = vpow.pop %v3720
    %3722 = vadd.xlane.f32.xlu0 %v3721
    %v3723 = vpop.xlane.xlu0 %3722
    %v3724 = vrcp.pop %v3723
    %v3725 = vmul.f32 %v3721, %v3724
    %v3726 = vpack.c.bf16 %v3725, %v3725
    %3727 = vst [vmem:[%s7] sm:$0xf] %v3726
    // Predicated region
    $region46: #{action_classifier_forward.1} parent=1 // pred_check
      _
    $region47: #{action_classifier_forward.1} parent=1 // pred_check_branch
      %3729 = sbr.rel (0) target = $region49
    $region48: #{action_classifier_forward.1} parent=1 // pred_region
      _
    $region49: #{action_classifier_forward.1} parent=1 // pred_fallthru
      _
    // Predicated region
    $region50: #{action_classifier_forward.1} parent=1 // pred_check
      _
    $region51: #{action_classifier_forward.1} parent=1 // pred_check_branch
      %3731 = sbr.rel (0) target = $region53
    $region52: #{action_classifier_forward.1} parent=1 // pred_region
      _
    $region53: #{action_classifier_forward.1} parent=1 // pred_fallthru
      _
    %3732 = vsyncpa [#allocation3], 1
    %3733 = vsyncpa [#allocation5], 1
    %3734 = vsyncpa [#allocation8], 1

</llo_original>
